<compile_context>
chip_gen: v7x
topology: tpu7x:2x2x1
jax: 0.10.0
libtpu: 0.0.40
codegen_flags: <defaults>
</compile_context>

<pallas_src>
import numpy as np
import jax
import jax.numpy as jnp
from jax.experimental import pallas as pl
from jax.experimental.pallas import tpu as pltpu

VMEM_LIMIT = 32 * 1024 * 1024


# ----------------------------- Pallas kernels ------------------------------

def _make_level_kernel(H, W, C, nb):
    """One fused pyramid level: `nb` residual blocks in a single pallas_call.

    Activations are row-flattened NHWC.  The running activation `t` and the
    conv1 output `h` are kept in PADDED layout (Hp, Wp*C) f32 VMEM scratch, so
    the 3x3/pad=1 convolutions of successive blocks never re-pad and never
    touch HBM.  A 3x3 conv is 3 row-shifted matmuls against banded weights.
    """
    Hp, Wp = H + 2, W + 2
    K = Wp * C           # padded flattened row width
    M = W * C            # valid flattened row width

    def kernel(x_ref, w_ref, b_ref, o_ref, t_ref, h_ref):
        # x_ref : (1, H, M)     bf16  unpadded input image
        # w_ref : (nb*6, K, M)  bf16  banded weights [blk*6 + conv*3 + kh]
        # b_ref : (nb*2, 1, M)  f32   width-tiled biases
        # o_ref : (1, Hp, K)    bf16  PADDED output (zero halo)
        # t_ref : (Hp, K)       f32   running activation, padded (scratch)
        # h_ref : (Hp, K)       f32   conv1 output, padded       (scratch)
        t_ref[...] = jnp.zeros((Hp, K), jnp.float32)
        h_ref[...] = jnp.zeros((Hp, K), jnp.float32)
        t_ref[1:H + 1, C:(W + 1) * C] = x_ref[0].astype(jnp.float32)

        for blk in range(nb):                              # static unroll
            # ---- conv1 + bias + ReLU -----------------------------------
            acc = jnp.dot(t_ref[0:H, :].astype(jnp.bfloat16),
                          w_ref[blk * 6 + 0],
                          preferred_element_type=jnp.float32)
            acc += jnp.dot(t_ref[1:H + 1, :].astype(jnp.bfloat16),
                           w_ref[blk * 6 + 1],
                           preferred_element_type=jnp.float32)
            acc += jnp.dot(t_ref[2:H + 2, :].astype(jnp.bfloat16),
                           w_ref[blk * 6 + 2],
                           preferred_element_type=jnp.float32)
            acc += b_ref[2 * blk]
            h_ref[1:H + 1, C:(W + 1) * C] = jnp.maximum(acc, 0.0)

            # ---- conv2 + bias + residual add -----------------------------
            acc2 = jnp.dot(h_ref[0:H, :].astype(jnp.bfloat16),
                           w_ref[blk * 6 + 3],
                           preferred_element_type=jnp.float32)
            acc2 += jnp.dot(h_ref[1:H + 1, :].astype(jnp.bfloat16),
                            w_ref[blk * 6 + 4],
                            preferred_element_type=jnp.float32)
            acc2 += jnp.dot(h_ref[2:H + 2, :].astype(jnp.bfloat16),
                            w_ref[blk * 6 + 5],
                            preferred_element_type=jnp.float32)
            acc2 += b_ref[2 * blk + 1]
            t_ref[1:H + 1, C:(W + 1) * C] += acc2

        o_ref[0] = t_ref[...].astype(o_ref.dtype)

    return kernel


def _make_down_kernel(Ho, Wo, C, Kin):
    """Fused stride-2 3x3 conv + bias + PReLU (the `downs[i]` Sequential).

    The padded input arrives with consecutive row pairs packed side by side
    (row r of the block = [padded row 2r | padded row 2r+1]), so the H-stride
    of 2 becomes two plain matmuls with no duplicated or strided loads.
    """
    Mo = Wo * C

    def kernel(x_ref, w01_ref, w2_ref, b_ref, a_ref, o_ref):
        # x_ref  : (1, Ho+1, 2*Kin)  bf16  paired padded rows
        # w01_ref: (2*Kin, Mo)       bf16  bands for kernel rows 0 and 1
        # w2_ref : (Kin, Mo)         bf16  band  for kernel row 2
        # b_ref  : (1, Mo)           f32   width-tiled bias
        # a_ref  : (1, Mo)           f32   PReLU alpha (broadcast)
        # o_ref  : (1, Ho, Mo)       bf16  unpadded output
        xf = x_ref[0].astype(jnp.float32)        # slice in f32 (layout-safe)
        acc = jnp.dot(xf[0:Ho, :].astype(jnp.bfloat16), w01_ref[...],
                      preferred_element_type=jnp.float32)
        acc += jnp.dot(xf[1:Ho + 1, 0:Kin].astype(jnp.bfloat16), w2_ref[...],
                       preferred_element_type=jnp.float32)
        acc += b_ref[...]
        acc = jnp.where(acc >= 0.0, acc, a_ref[...] * acc)     # PReLU
        o_ref[0] = acc.astype(o_ref.dtype)

    return kernel


# ------------------------------ kernel wrappers ------------------------------

def _run_level(x, Wb, bb, H, W, C):
    # x: (N, H, W*C) bf16 unpadded  ->  (N, H+2, (W+2)*C) bf16 padded output
    N = x.shape[0]
    nb = Wb.shape[0] // 6
    Hp, Wp = H + 2, W + 2
    K, M = Wp * C, W * C
    return pl.pallas_call(
        _make_level_kernel(H, W, C, nb),
        out_shape=jax.ShapeDtypeStruct((N, Hp, K), jnp.bfloat16),
        grid=(N,),
        in_specs=[
            pl.BlockSpec((1, H, M), lambda n: (n, 0, 0)),
            pl.BlockSpec((nb * 6, K, M), lambda n: (0, 0, 0)),
            pl.BlockSpec((nb * 2, 1, M), lambda n: (0, 0, 0)),
        ],
        out_specs=pl.BlockSpec((1, Hp, K), lambda n: (n, 0, 0)),
        scratch_shapes=[pltpu.VMEM((Hp, K), jnp.float32),
                        pltpu.VMEM((Hp, K), jnp.float32)],
        compiler_params=pltpu.CompilerParams(
            dimension_semantics=("parallel",),
            vmem_limit_bytes=VMEM_LIMIT),
    )(x, Wb, bb)


def _run_down(x_padded, dn, C):
    # x_padded: (N, 2*Ho+2, Kin) bf16 padded level output
    N, Hp_in, Kin = x_padded.shape
    Ho, Wo = dn["Ho"], dn["Wo"]
    Mo = Wo * C
    xr = x_padded.reshape(N, Hp_in // 2, 2 * Kin)   # free: pairs adjacent rows
    return pl.pallas_call(
        _make_down_kernel(Ho, Wo, C, Kin),
        out_shape=jax.ShapeDtypeStruct((N, Ho, Mo), jnp.bfloat16),
        grid=(N,),
        in_specs=[
            pl.BlockSpec((1, Hp_in // 2, 2 * Kin), lambda n: (n, 0, 0)),
            pl.BlockSpec((2 * Kin, Mo), lambda n: (0, 0)),
            pl.BlockSpec((Kin, Mo), lambda n: (0, 0)),
            pl.BlockSpec((1, Mo), lambda n: (0, 0)),
            pl.BlockSpec((1, Mo), lambda n: (0, 0)),
        ],
        out_specs=pl.BlockSpec((1, Ho, Mo), lambda n: (n, 0, 0)),
        compiler_params=pltpu.CompilerParams(
            dimension_semantics=("parallel",),
            vmem_limit_bytes=VMEM_LIMIT),
    )(xr, dn["W01"], dn["W2"], dn["bb"], dn["aa"])


# --------------------------- parameter preparation ---------------------------

def _banded_weight_np(w_hwio, Wp, Wo, stride):
    """Expand a (3,3,Ci,Co) conv weight into 3 banded matrices (Wp*Ci, Wo*Co)
    so the W-taps (and the W-stride) become a plain matmul per kernel row."""
    w = np.asarray(w_hwio, np.float32)
    Ci, Co = w.shape[2], w.shape[3]
    out = np.zeros((3, Wp * Ci, Wo * Co), np.float32)
    for kh in range(3):
        for kw in range(3):
            for wo in range(Wo):
                r = (stride * wo + kw) * Ci
                out[kh, r:r + Ci, wo * Co:(wo + 1) * Co] = w[kh, kw]
    return out


def prepare_params(params, H, W):
    """One-time host-side conversion of conv weights into the banded bf16
    matrices consumed by the kernels (baked in as jit constants)."""
    C = int(params["blocks"][0][0][0].shape[2])
    levels, downs = [], []
    Hc, Wc = H, W
    for i, level in enumerate(params["blocks"]):
        if i > 0:
            w, b, a = params["downs"][i - 1]
            Win = Wc
            Ho, Wo = Hc // 2, Wc // 2
            band = _banded_weight_np(w, Win + 2, Wo, 2)       # (3, Kin, Wo*C)
            Kin = (Win + 2) * C
            downs.append(dict(
                W01=jnp.asarray(band[0:2].reshape(2 * Kin, Wo * C),
                                jnp.bfloat16),
                W2=jnp.asarray(band[2], jnp.bfloat16),
                bb=jnp.asarray(np.tile(np.asarray(b, np.float32), Wo)[None, :],
                               jnp.float32),
                aa=jnp.full((1, Wo * C), float(a), jnp.float32),
                Ho=Ho, Wo=Wo))
            Hc, Wc = Ho, Wo
        mats, biases = [], []
        for (w1, b1, w2, b2) in level:
            for (w, b) in ((w1, b1), (w2, b2)):
                mats.append(_banded_weight_np(w, Wc + 2, Wc, 1))
                biases.append(np.tile(np.asarray(b, np.float32), Wc))
        levels.append(dict(
            Wb=jnp.asarray(np.concatenate(mats, axis=0), jnp.bfloat16),
            bb=jnp.asarray(np.stack(biases)[:, None, :], jnp.float32),
            H=Hc, W=Wc))
    return dict(levels=levels, downs=downs, C=C)


# ------------------------------ Encoder forward ------------------------------

def build_encoder_forward(params, H, W):
    """Returns a jitted forward matching Encoder.forward (list of NCHW maps)."""
    prepared = prepare_params(params, H, W)
    C = prepared["C"]

    def fwd(x_nchw):
        N = x_nchw.shape[0]
        x = jnp.transpose(x_nchw, (0, 2, 3, 1))              # NCHW -> NHWC
        cur = x.reshape(N, H, W * C).astype(jnp.bfloat16)
        padded_outs = []
        for i, lv in enumerate(prepared["levels"]):
            if i > 0:
                cur = _run_down(cur, prepared["downs"][i - 1], C)
            cur = _run_level(cur, lv["Wb"], lv["bb"], lv["H"], lv["W"], C)
            padded_outs.append((cur, lv["H"], lv["W"]))
        results = []
        for (p, h, w) in padded_outs:
            t = p.reshape(N, h + 2, w + 2, C)[:, 1:h + 1, 1:w + 1, :]
            results.append(jnp.transpose(t, (0, 3, 1, 2)).astype(jnp.float32))
        return results

    return jax.jit(fwd)


# ------------------------------ parameter init -------------------------------

def init_params(key, mid_channels, num_blocks):
    C = mid_channels

    def conv_params(k, scale=0.1):
        kw, kb = jax.random.split(k)
        w = scale * jax.random.normal(kw, (3, 3, C, C), jnp.float32)  # HWIO
        b = scale * jax.random.normal(kb, (C,), jnp.float32)
        return w, b

    blocks, downs, cnt = [], [], 0
    for i, nb in enumerate(num_blocks):
        level = []
        for _ in range(nb):
            k1 = jax.random.fold_in(key, cnt); cnt += 1
            k2 = jax.random.fold_in(key, cnt); cnt += 1
            level.append(conv_params(k1) + conv_params(k2))
        blocks.append(level)
        if i > 0:
            kd = jax.random.fold_in(key, cnt); cnt += 1
            w, b = conv_params(kd)
            downs.append((w, b, jnp.float32(0.25)))   # PReLU default init
    return {"blocks": blocks, "downs": downs}


# --------------------------- pure-JAX reference ------------------------------

def ref_encoder_forward(x_nchw, params):
    """Reference with the same precision policy as the kernels:
    bf16 conv inputs / weights, f32 accumulation, bf16 storage between
    kernel boundaries."""
    f32, bf16 = jnp.float32, jnp.bfloat16

    def conv(t, w, b, stride):
        y = jax.lax.conv_general_dilated(
            t.astype(bf16), jnp.asarray(w, bf16),
            (stride, stride), ((1, 1), (1, 1)),
            dimension_numbers=("NHWC", "HWIO", "NHWC"),
            preferred_element_type=f32)
        return y + jnp.asarray(b, f32)

    def block_apply(t, level):
        for (w1, b1, w2, b2) in level:
            h = jnp.maximum(conv(t, w1, b1, 1), 0.0)
            t = t + conv(h, w2, b2, 1)
        return t

    x = jnp.transpose(x_nchw, (0, 2, 3, 1)).astype(f32)
    t = block_apply(x.astype(bf16).astype(f32), params["blocks"][0])
    results = [t]
    for i, (w, b, a) in enumerate(params["downs"]):
        y = conv(results[-1], w, b, 2)
        y = jnp.where(y >= 0.0, y, a * y)                 # PReLU
        y = y.astype(bf16).astype(f32)                    # kernels store bf16
        results.append(block_apply(y, params["blocks"][i + 1]))
    return [jnp.transpose(r.astype(bf16).astype(f32), (0, 3, 1, 2))
            for r in results]


# ---------------------------------- main -------------------------------------

if __name__ == "__main__":
    mid_channels = 8
    num_blocks = (1, 1, 1)          # 3 pyramid levels -> 2 downsampling stages
    N, H, W = 2, 16, 16

    key = jax.random.PRNGKey(0)
    params = init_params(jax.random.fold_in(key, 123), mid_channels, num_blocks)
    x = jax.random.normal(jax.random.fold_in(key, 7),
                          (N, mid_channels, H, W), jnp.float32)   # NCHW

    encoder = build_encoder_forward(params, H, W)
    outs = encoder(x)
    outs = [jax.block_until_ready(o) for o in outs]

    refs = ref_encoder_forward(x, params)
    for o, r in zip(outs, refs):
        assert o.shape == r.shape and o.dtype == r.dtype
        np.testing.assert_allclose(np.asarray(o), np.asarray(r),
                                   rtol=2e-2, atol=2e-2)

    print("KERNEL_OK")
</pallas_src>

<mosaic_0001>
module attributes {stable_mosaic.version = 11 : i64} {
  func.func @kernel(%arg0: i32, %arg1: memref<1x16x128xbf16, #tpu.memory_space<vmem>>, %arg2: memref<6x144x128xbf16, #tpu.memory_space<vmem>>, %arg3: memref<2x1x128xf32, #tpu.memory_space<vmem>>, %arg4: memref<1x18x144xbf16, #tpu.memory_space<vmem>>, %arg5: memref<18x144xf32, #tpu.memory_space<vmem>>, %arg6: memref<18x144xf32, #tpu.memory_space<vmem>>) attributes {dimension_semantics = [#tpu.dimension_semantics<parallel>], iteration_bounds = array<i64: 2>, scalar_prefetch = 0 : i64, scratch_operands = 2 : i64, tpu.core_type = #tpu.core_type<tc>, window_params = [{transform_indices = @transform_0, window_bounds = array<i64: 1, 16, 128>}, {pipeline_mode = #tpu.pipeline_mode<synchronous>, transform_indices = @transform_1, window_bounds = array<i64: 6, 144, 128>}, {pipeline_mode = #tpu.pipeline_mode<synchronous>, transform_indices = @transform_2, window_bounds = array<i64: 2, 1, 128>}, {transform_indices = @transform_3, window_bounds = array<i64: 1, 18, 144>}]} {
    %cst = arith.constant 0.000000e+00 : f32
    %0 = vector.broadcast %cst : f32 to vector<18x144xf32>
    %c0 = arith.constant 0 : index
    %c0_0 = arith.constant 0 : index
    %1 = vector.load %arg5[%c0, %c0_0] : memref<18x144xf32, #tpu.memory_space<vmem>>, vector<18x144xf32>
    tpu.vector_store %arg5[%c0, %c0_0], %0 {strides = array<i32>} : memref<18x144xf32, #tpu.memory_space<vmem>>, vector<18x144xf32>,
    %cst_1 = arith.constant 0.000000e+00 : f32
    %2 = vector.broadcast %cst_1 : f32 to vector<18x144xf32>
    %c0_2 = arith.constant 0 : index
    %c0_3 = arith.constant 0 : index
    %3 = vector.load %arg6[%c0_2, %c0_3] : memref<18x144xf32, #tpu.memory_space<vmem>>, vector<18x144xf32>
    tpu.vector_store %arg6[%c0_2, %c0_3], %2 {strides = array<i32>} : memref<18x144xf32, #tpu.memory_space<vmem>>, vector<18x144xf32>,
    %c0_4 = arith.constant 0 : index
    %c0_5 = arith.constant 0 : index
    %c0_6 = arith.constant 0 : index
    %4 = vector.load %arg1[%c0_4, %c0_5, %c0_6] : memref<1x16x128xbf16, #tpu.memory_space<vmem>>, vector<1x16x128xbf16>
    %5 = vector.shape_cast %4 : vector<1x16x128xbf16> to vector<16x128xbf16>
    %6 = arith.extf %5 : vector<16x128xbf16> to vector<16x128xf32>
    %c1 = arith.constant 1 : index
    %c8 = arith.constant 8 : index
    %7 = vector.load %arg5[%c1, %c8] : memref<18x144xf32, #tpu.memory_space<vmem>>, vector<16x128xf32>
    tpu.vector_store %arg5[%c1, %c8], %6 {strides = array<i32>} : memref<18x144xf32, #tpu.memory_space<vmem>>, vector<16x128xf32>,
    %c0_7 = arith.constant 0 : index
    %c0_8 = arith.constant 0 : index
    %8 = vector.load %arg5[%c0_7, %c0_8] : memref<18x144xf32, #tpu.memory_space<vmem>>, vector<16x144xf32>
    %9 = arith.truncf %8 : vector<16x144xf32> to vector<16x144xbf16>
    %c0_9 = arith.constant 0 : index
    %c0_10 = arith.constant 0 : index
    %c0_11 = arith.constant 0 : index
    %10 = vector.load %arg2[%c0_9, %c0_10, %c0_11] : memref<6x144x128xbf16, #tpu.memory_space<vmem>>, vector<1x144x128xbf16>
    %11 = vector.shape_cast %10 : vector<1x144x128xbf16> to vector<144x128xbf16>
    %cst_12 = arith.constant dense<0.000000e+00> : vector<16x128xf32>
    %12 = tpu.matmul %9, %11, %cst_12 {dimension_numbers = #tpu.dot_dimension_numbers<[1], [0], [0], [1], [0, 0, 1, 1], [], []>} : vector<16x144xbf16>, vector<144x128xbf16>, vector<16x128xf32> -> vector<16x128xf32>
    %c1_13 = arith.constant 1 : index
    %c0_14 = arith.constant 0 : index
    %13 = vector.load %arg5[%c1_13, %c0_14] : memref<18x144xf32, #tpu.memory_space<vmem>>, vector<16x144xf32>
    %14 = arith.truncf %13 : vector<16x144xf32> to vector<16x144xbf16>
    %c1_15 = arith.constant 1 : index
    %c0_16 = arith.constant 0 : index
    %c0_17 = arith.constant 0 : index
    %15 = vector.load %arg2[%c1_15, %c0_16, %c0_17] : memref<6x144x128xbf16, #tpu.memory_space<vmem>>, vector<1x144x128xbf16>
    %16 = vector.shape_cast %15 : vector<1x144x128xbf16> to vector<144x128xbf16>
    %cst_18 = arith.constant dense<0.000000e+00> : vector<16x128xf32>
    %17 = tpu.matmul %14, %16, %cst_18 {dimension_numbers = #tpu.dot_dimension_numbers<[1], [0], [0], [1], [0, 0, 1, 1], [], []>} : vector<16x144xbf16>, vector<144x128xbf16>, vector<16x128xf32> -> vector<16x128xf32>
    %18 = arith.addf %12, %17 : vector<16x128xf32>
    %c2 = arith.constant 2 : index
    %c0_19 = arith.constant 0 : index
    %19 = vector.load %arg5[%c2, %c0_19] : memref<18x144xf32, #tpu.memory_space<vmem>>, vector<16x144xf32>
    %20 = arith.truncf %19 : vector<16x144xf32> to vector<16x144xbf16>
    %c2_20 = arith.constant 2 : index
    %c0_21 = arith.constant 0 : index
    %c0_22 = arith.constant 0 : index
    %21 = vector.load %arg2[%c2_20, %c0_21, %c0_22] : memref<6x144x128xbf16, #tpu.memory_space<vmem>>, vector<1x144x128xbf16>
    %22 = vector.shape_cast %21 : vector<1x144x128xbf16> to vector<144x128xbf16>
    %cst_23 = arith.constant dense<0.000000e+00> : vector<16x128xf32>
    %23 = tpu.matmul %20, %22, %cst_23 {dimension_numbers = #tpu.dot_dimension_numbers<[1], [0], [0], [1], [0, 0, 1, 1], [], []>} : vector<16x144xbf16>, vector<144x128xbf16>, vector<16x128xf32> -> vector<16x128xf32>
    %24 = arith.addf %18, %23 : vector<16x128xf32>
    %c0_24 = arith.constant 0 : index
    %c0_25 = arith.constant 0 : index
    %c0_26 = arith.constant 0 : index
    %25 = vector.load %arg3[%c0_24, %c0_25, %c0_26] : memref<2x1x128xf32, #tpu.memory_space<vmem>>, vector<1x1x128xf32>
    %26 = vector.shape_cast %25 : vector<1x1x128xf32> to vector<1x128xf32>
    %27 = vector.broadcast %26 : vector<1x128xf32> to vector<16x128xf32>
    %28 = arith.addf %24, %27 : vector<16x128xf32>
    %cst_27 = arith.constant 0.000000e+00 : f32
    %29 = vector.broadcast %cst_27 : f32 to vector<16x128xf32>
    %30 = arith.maximumf %28, %29 : vector<16x128xf32>
    %c1_28 = arith.constant 1 : index
    %c8_29 = arith.constant 8 : index
    %31 = vector.load %arg6[%c1_28, %c8_29] : memref<18x144xf32, #tpu.memory_space<vmem>>, vector<16x128xf32>
    tpu.vector_store %arg6[%c1_28, %c8_29], %30 {strides = array<i32>} : memref<18x144xf32, #tpu.memory_space<vmem>>, vector<16x128xf32>,
    %c0_30 = arith.constant 0 : index
    %c0_31 = arith.constant 0 : index
    %32 = vector.load %arg6[%c0_30, %c0_31] : memref<18x144xf32, #tpu.memory_space<vmem>>, vector<16x144xf32>
    %33 = arith.truncf %32 : vector<16x144xf32> to vector<16x144xbf16>
    %c3 = arith.constant 3 : index
    %c0_32 = arith.constant 0 : index
    %c0_33 = arith.constant 0 : index
    %34 = vector.load %arg2[%c3, %c0_32, %c0_33] : memref<6x144x128xbf16, #tpu.memory_space<vmem>>, vector<1x144x128xbf16>
    %35 = vector.shape_cast %34 : vector<1x144x128xbf16> to vector<144x128xbf16>
    %cst_34 = arith.constant dense<0.000000e+00> : vector<16x128xf32>
    %36 = tpu.matmul %33, %35, %cst_34 {dimension_numbers = #tpu.dot_dimension_numbers<[1], [0], [0], [1], [0, 0, 1, 1], [], []>} : vector<16x144xbf16>, vector<144x128xbf16>, vector<16x128xf32> -> vector<16x128xf32>
    %c1_35 = arith.constant 1 : index
    %c0_36 = arith.constant 0 : index
    %37 = vector.load %arg6[%c1_35, %c0_36] : memref<18x144xf32, #tpu.memory_space<vmem>>, vector<16x144xf32>
    %38 = arith.truncf %37 : vector<16x144xf32> to vector<16x144xbf16>
    %c4 = arith.constant 4 : index
    %c0_37 = arith.constant 0 : index
    %c0_38 = arith.constant 0 : index
    %39 = vector.load %arg2[%c4, %c0_37, %c0_38] : memref<6x144x128xbf16, #tpu.memory_space<vmem>>, vector<1x144x128xbf16>
    %40 = vector.shape_cast %39 : vector<1x144x128xbf16> to vector<144x128xbf16>
    %cst_39 = arith.constant dense<0.000000e+00> : vector<16x128xf32>
    %41 = tpu.matmul %38, %40, %cst_39 {dimension_numbers = #tpu.dot_dimension_numbers<[1], [0], [0], [1], [0, 0, 1, 1], [], []>} : vector<16x144xbf16>, vector<144x128xbf16>, vector<16x128xf32> -> vector<16x128xf32>
    %42 = arith.addf %36, %41 : vector<16x128xf32>
    %c2_40 = arith.constant 2 : index
    %c0_41 = arith.constant 0 : index
    %43 = vector.load %arg6[%c2_40, %c0_41] : memref<18x144xf32, #tpu.memory_space<vmem>>, vector<16x144xf32>
    %44 = arith.truncf %43 : vector<16x144xf32> to vector<16x144xbf16>
    %c5 = arith.constant 5 : index
    %c0_42 = arith.constant 0 : index
    %c0_43 = arith.constant 0 : index
    %45 = vector.load %arg2[%c5, %c0_42, %c0_43] : memref<6x144x128xbf16, #tpu.memory_space<vmem>>, vector<1x144x128xbf16>
    %46 = vector.shape_cast %45 : vector<1x144x128xbf16> to vector<144x128xbf16>
    %cst_44 = arith.constant dense<0.000000e+00> : vector<16x128xf32>
    %47 = tpu.matmul %44, %46, %cst_44 {dimension_numbers = #tpu.dot_dimension_numbers<[1], [0], [0], [1], [0, 0, 1, 1], [], []>} : vector<16x144xbf16>, vector<144x128xbf16>, vector<16x128xf32> -> vector<16x128xf32>
    %48 = arith.addf %42, %47 : vector<16x128xf32>
    %c1_45 = arith.constant 1 : index
    %c0_46 = arith.constant 0 : index
    %c0_47 = arith.constant 0 : index
    %49 = vector.load %arg3[%c1_45, %c0_46, %c0_47] : memref<2x1x128xf32, #tpu.memory_space<vmem>>, vector<1x1x128xf32>
    %50 = vector.shape_cast %49 : vector<1x1x128xf32> to vector<1x128xf32>
    %51 = vector.broadcast %50 : vector<1x128xf32> to vector<16x128xf32>
    %52 = arith.addf %48, %51 : vector<16x128xf32>
    %c1_48 = arith.constant 1 : index
    %c8_49 = arith.constant 8 : index
    %53 = vector.load %arg5[%c1_48, %c8_49] : memref<18x144xf32, #tpu.memory_space<vmem>>, vector<16x128xf32>
    %54 = arith.addf %53, %52 : vector<16x128xf32>
    %c1_50 = arith.constant 1 : index
    %c8_51 = arith.constant 8 : index
    %55 = vector.load %arg5[%c1_50, %c8_51] : memref<18x144xf32, #tpu.memory_space<vmem>>, vector<16x128xf32>
    tpu.vector_store %arg5[%c1_50, %c8_51], %54 {strides = array<i32>} : memref<18x144xf32, #tpu.memory_space<vmem>>, vector<16x128xf32>,
    %c0_52 = arith.constant 0 : index
    %c0_53 = arith.constant 0 : index
    %56 = vector.load %arg5[%c0_52, %c0_53] : memref<18x144xf32, #tpu.memory_space<vmem>>, vector<18x144xf32>
    %57 = arith.truncf %56 : vector<18x144xf32> to vector<18x144xbf16>
    %c0_54 = arith.constant 0 : index
    %c0_55 = arith.constant 0 : index
    %c0_56 = arith.constant 0 : index
    %58 = vector.load %arg4[%c0_54, %c0_55, %c0_56] : memref<1x18x144xbf16, #tpu.memory_space<vmem>>, vector<1x18x144xbf16>
    %59 = vector.shape_cast %58 : vector<1x18x144xbf16> to vector<18x144xbf16>
    %60 = vector.shape_cast %57 : vector<18x144xbf16> to vector<1x18x144xbf16>
    tpu.vector_store %arg4[%c0_54, %c0_55, %c0_56], %60 {strides = array<i32>} : memref<1x18x144xbf16, #tpu.memory_space<vmem>>, vector<1x18x144xbf16>,
    return
  }
  func.func @transform_0(%arg0: i32) -> (i32, i32, i32) {
    %c0_i32 = arith.constant 0 : i32
    %c0_i32_0 = arith.constant 0 : i32
    %c0_i32_1 = arith.constant 0 : i32
    return %arg0, %c0_i32, %c0_i32_0 : i32, i32, i32
  }
  func.func @transform_1(%arg0: i32) -> (i32, i32, i32) {
    %c0_i32 = arith.constant 0 : i32
    %c0_i32_0 = arith.constant 0 : i32
    %c0_i32_1 = arith.constant 0 : i32
    %c0_i32_2 = arith.constant 0 : i32
    return %c0_i32, %c0_i32_0, %c0_i32_1 : i32, i32, i32
  }
  func.func @transform_2(%arg0: i32) -> (i32, i32, i32) {
    %c0_i32 = arith.constant 0 : i32
    %c0_i32_0 = arith.constant 0 : i32
    %c0_i32_1 = arith.constant 0 : i32
    %c0_i32_2 = arith.constant 0 : i32
    return %c0_i32, %c0_i32_0, %c0_i32_1 : i32, i32, i32
  }
  func.func @transform_3(%arg0: i32) -> (i32, i32, i32) {
    %c0_i32 = arith.constant 0 : i32
    %c0_i32_0 = arith.constant 0 : i32
    %c0_i32_1 = arith.constant 0 : i32
    return %arg0, %c0_i32, %c0_i32_0 : i32, i32, i32
  }
}

module attributes {stable_mosaic.version = 11 : i64} {
  func.func @kernel(%arg0: i32, %arg1: memref<1x9x288xbf16, #tpu.memory_space<vmem>>, %arg2: memref<288x64xbf16, #tpu.memory_space<vmem>>, %arg3: memref<144x64xbf16, #tpu.memory_space<vmem>>, %arg4: memref<1x64xf32, #tpu.memory_space<vmem>>, %arg5: memref<1x64xf32, #tpu.memory_space<vmem>>, %arg6: memref<1x8x64xbf16, #tpu.memory_space<vmem>>) attributes {dimension_semantics = [#tpu.dimension_semantics<parallel>], iteration_bounds = array<i64: 2>, scalar_prefetch = 0 : i64, scratch_operands = 0 : i64, tpu.core_type = #tpu.core_type<tc>, window_params = [{transform_indices = @transform_0, window_bounds = array<i64: 1, 9, 288>}, {pipeline_mode = #tpu.pipeline_mode<synchronous>, transform_indices = @transform_1, window_bounds = array<i64: 288, 64>}, {pipeline_mode = #tpu.pipeline_mode<synchronous>, transform_indices = @transform_2, window_bounds = array<i64: 144, 64>}, {pipeline_mode = #tpu.pipeline_mode<synchronous>, transform_indices = @transform_3, window_bounds = array<i64: 1, 64>}, {pipeline_mode = #tpu.pipeline_mode<synchronous>, transform_indices = @transform_4, window_bounds = array<i64: 1, 64>}, {transform_indices = @transform_5, window_bounds = array<i64: 1, 8, 64>}]} {
    %c0 = arith.constant 0 : index
    %c0_0 = arith.constant 0 : index
    %c0_1 = arith.constant 0 : index
    %0 = vector.load %arg1[%c0, %c0_0, %c0_1] : memref<1x9x288xbf16, #tpu.memory_space<vmem>>, vector<1x9x288xbf16>
    %1 = vector.shape_cast %0 : vector<1x9x288xbf16> to vector<9x288xbf16>
    %2 = arith.extf %1 : vector<9x288xbf16> to vector<9x288xf32>
    %3 = vector.extract_strided_slice %2 {offsets = [0, 0], sizes = [8, 288], strides = [1, 1]} : vector<9x288xf32> to vector<8x288xf32>
    %4 = arith.truncf %3 : vector<8x288xf32> to vector<8x288xbf16>
    %c0_2 = arith.constant 0 : index
    %c0_3 = arith.constant 0 : index
    %5 = vector.load %arg2[%c0_2, %c0_3] : memref<288x64xbf16, #tpu.memory_space<vmem>>, vector<288x64xbf16>
    %cst = arith.constant dense<0.000000e+00> : vector<8x64xf32>
    %6 = tpu.matmul %4, %5, %cst {dimension_numbers = #tpu.dot_dimension_numbers<[1], [0], [0], [1], [0, 0, 1, 1], [], []>} : vector<8x288xbf16>, vector<288x64xbf16>, vector<8x64xf32> -> vector<8x64xf32>
    %7 = vector.extract_strided_slice %2 {offsets = [1, 0], sizes = [8, 144], strides = [1, 1]} : vector<9x288xf32> to vector<8x144xf32>
    %8 = arith.truncf %7 : vector<8x144xf32> to vector<8x144xbf16>
    %c0_4 = arith.constant 0 : index
    %c0_5 = arith.constant 0 : index
    %9 = vector.load %arg3[%c0_4, %c0_5] : memref<144x64xbf16, #tpu.memory_space<vmem>>, vector<144x64xbf16>
    %cst_6 = arith.constant dense<0.000000e+00> : vector<8x64xf32>
    %10 = tpu.matmul %8, %9, %cst_6 {dimension_numbers = #tpu.dot_dimension_numbers<[1], [0], [0], [1], [0, 0, 1, 1], [], []>} : vector<8x144xbf16>, vector<144x64xbf16>, vector<8x64xf32> -> vector<8x64xf32>
    %11 = arith.addf %6, %10 : vector<8x64xf32>
    %c0_7 = arith.constant 0 : index
    %c0_8 = arith.constant 0 : index
    %12 = vector.load %arg4[%c0_7, %c0_8] : memref<1x64xf32, #tpu.memory_space<vmem>>, vector<1x64xf32>
    %13 = vector.broadcast %12 : vector<1x64xf32> to vector<8x64xf32>
    %14 = arith.addf %11, %13 : vector<8x64xf32>
    %cst_9 = arith.constant 0.000000e+00 : f32
    %15 = vector.broadcast %cst_9 : f32 to vector<8x64xf32>
    %16 = arith.cmpf oge, %14, %15 : vector<8x64xf32>
    %c0_10 = arith.constant 0 : index
    %c0_11 = arith.constant 0 : index
    %17 = vector.load %arg5[%c0_10, %c0_11] : memref<1x64xf32, #tpu.memory_space<vmem>>, vector<1x64xf32>
    %18 = vector.broadcast %17 : vector<1x64xf32> to vector<8x64xf32>
    %19 = arith.mulf %18, %14 : vector<8x64xf32>
    %20 = arith.select %16, %14, %19 : vector<8x64xi1>, vector<8x64xf32>
    %21 = arith.truncf %20 : vector<8x64xf32> to vector<8x64xbf16>
    %c0_12 = arith.constant 0 : index
    %c0_13 = arith.constant 0 : index
    %c0_14 = arith.constant 0 : index
    %22 = vector.load %arg6[%c0_12, %c0_13, %c0_14] : memref<1x8x64xbf16, #tpu.memory_space<vmem>>, vector<1x8x64xbf16>
    %23 = vector.shape_cast %22 : vector<1x8x64xbf16> to vector<8x64xbf16>
    %24 = vector.shape_cast %21 : vector<8x64xbf16> to vector<1x8x64xbf16>
    tpu.vector_store %arg6[%c0_12, %c0_13, %c0_14], %24 {strides = array<i32>} : memref<1x8x64xbf16, #tpu.memory_space<vmem>>, vector<1x8x64xbf16>,
    return
  }
  func.func @transform_0(%arg0: i32) -> (i32, i32, i32) {
    %c0_i32 = arith.constant 0 : i32
    %c0_i32_0 = arith.constant 0 : i32
    %c0_i32_1 = arith.constant 0 : i32
    return %arg0, %c0_i32, %c0_i32_0 : i32, i32, i32
  }
  func.func @transform_1(%arg0: i32) -> (i32, i32) {
    %c0_i32 = arith.constant 0 : i32
    %c0_i32_0 = arith.constant 0 : i32
    %c0_i32_1 = arith.constant 0 : i32
    return %c0_i32, %c0_i32_0 : i32, i32
  }
  func.func @transform_2(%arg0: i32) -> (i32, i32) {
    %c0_i32 = arith.constant 0 : i32
    %c0_i32_0 = arith.constant 0 : i32
    %c0_i32_1 = arith.constant 0 : i32
    return %c0_i32, %c0_i32_0 : i32, i32
  }
  func.func @transform_3(%arg0: i32) -> (i32, i32) {
    %c0_i32 = arith.constant 0 : i32
    %c0_i32_0 = arith.constant 0 : i32
    %c0_i32_1 = arith.constant 0 : i32
    return %c0_i32, %c0_i32_0 : i32, i32
  }
  func.func @transform_4(%arg0: i32) -> (i32, i32) {
    %c0_i32 = arith.constant 0 : i32
    %c0_i32_0 = arith.constant 0 : i32
    %c0_i32_1 = arith.constant 0 : i32
    return %c0_i32, %c0_i32_0 : i32, i32
  }
  func.func @transform_5(%arg0: i32) -> (i32, i32, i32) {
    %c0_i32 = arith.constant 0 : i32
    %c0_i32_0 = arith.constant 0 : i32
    %c0_i32_1 = arith.constant 0 : i32
    return %arg0, %c0_i32, %c0_i32_0 : i32, i32, i32
  }
}

module attributes {stable_mosaic.version = 11 : i64} {
  func.func @kernel(%arg0: i32, %arg1: memref<1x8x64xbf16, #tpu.memory_space<vmem>>, %arg2: memref<6x80x64xbf16, #tpu.memory_space<vmem>>, %arg3: memref<2x1x64xf32, #tpu.memory_space<vmem>>, %arg4: memref<1x10x80xbf16, #tpu.memory_space<vmem>>, %arg5: memref<10x80xf32, #tpu.memory_space<vmem>>, %arg6: memref<10x80xf32, #tpu.memory_space<vmem>>) attributes {dimension_semantics = [#tpu.dimension_semantics<parallel>], iteration_bounds = array<i64: 2>, scalar_prefetch = 0 : i64, scratch_operands = 2 : i64, tpu.core_type = #tpu.core_type<tc>, window_params = [{transform_indices = @transform_0, window_bounds = array<i64: 1, 8, 64>}, {pipeline_mode = #tpu.pipeline_mode<synchronous>, transform_indices = @transform_1, window_bounds = array<i64: 6, 80, 64>}, {pipeline_mode = #tpu.pipeline_mode<synchronous>, transform_indices = @transform_2, window_bounds = array<i64: 2, 1, 64>}, {transform_indices = @transform_3, window_bounds = array<i64: 1, 10, 80>}]} {
    %cst = arith.constant 0.000000e+00 : f32
    %0 = vector.broadcast %cst : f32 to vector<10x80xf32>
    %c0 = arith.constant 0 : index
    %c0_0 = arith.constant 0 : index
    %1 = vector.load %arg5[%c0, %c0_0] : memref<10x80xf32, #tpu.memory_space<vmem>>, vector<10x80xf32>
    tpu.vector_store %arg5[%c0, %c0_0], %0 {strides = array<i32>} : memref<10x80xf32, #tpu.memory_space<vmem>>, vector<10x80xf32>,
    %cst_1 = arith.constant 0.000000e+00 : f32
    %2 = vector.broadcast %cst_1 : f32 to vector<10x80xf32>
    %c0_2 = arith.constant 0 : index
    %c0_3 = arith.constant 0 : index
    %3 = vector.load %arg6[%c0_2, %c0_3] : memref<10x80xf32, #tpu.memory_space<vmem>>, vector<10x80xf32>
    tpu.vector_store %arg6[%c0_2, %c0_3], %2 {strides = array<i32>} : memref<10x80xf32, #tpu.memory_space<vmem>>, vector<10x80xf32>,
    %c0_4 = arith.constant 0 : index
    %c0_5 = arith.constant 0 : index
    %c0_6 = arith.constant 0 : index
    %4 = vector.load %arg1[%c0_4, %c0_5, %c0_6] : memref<1x8x64xbf16, #tpu.memory_space<vmem>>, vector<1x8x64xbf16>
    %5 = vector.shape_cast %4 : vector<1x8x64xbf16> to vector<8x64xbf16>
    %6 = arith.extf %5 : vector<8x64xbf16> to vector<8x64xf32>
    %c1 = arith.constant 1 : index
    %c8 = arith.constant 8 : index
    %7 = vector.load %arg5[%c1, %c8] : memref<10x80xf32, #tpu.memory_space<vmem>>, vector<8x64xf32>
    tpu.vector_store %arg5[%c1, %c8], %6 {strides = array<i32>} : memref<10x80xf32, #tpu.memory_space<vmem>>, vector<8x64xf32>,
    %c0_7 = arith.constant 0 : index
    %c0_8 = arith.constant 0 : index
    %8 = vector.load %arg5[%c0_7, %c0_8] : memref<10x80xf32, #tpu.memory_space<vmem>>, vector<8x80xf32>
    %9 = arith.truncf %8 : vector<8x80xf32> to vector<8x80xbf16>
    %c0_9 = arith.constant 0 : index
    %c0_10 = arith.constant 0 : index
    %c0_11 = arith.constant 0 : index
    %10 = vector.load %arg2[%c0_9, %c0_10, %c0_11] : memref<6x80x64xbf16, #tpu.memory_space<vmem>>, vector<1x80x64xbf16>
    %11 = vector.shape_cast %10 : vector<1x80x64xbf16> to vector<80x64xbf16>
    %cst_12 = arith.constant dense<0.000000e+00> : vector<8x64xf32>
    %12 = tpu.matmul %9, %11, %cst_12 {dimension_numbers = #tpu.dot_dimension_numbers<[1], [0], [0], [1], [0, 0, 1, 1], [], []>} : vector<8x80xbf16>, vector<80x64xbf16>, vector<8x64xf32> -> vector<8x64xf32>
    %c1_13 = arith.constant 1 : index
    %c0_14 = arith.constant 0 : index
    %13 = vector.load %arg5[%c1_13, %c0_14] : memref<10x80xf32, #tpu.memory_space<vmem>>, vector<8x80xf32>
    %14 = arith.truncf %13 : vector<8x80xf32> to vector<8x80xbf16>
    %c1_15 = arith.constant 1 : index
    %c0_16 = arith.constant 0 : index
    %c0_17 = arith.constant 0 : index
    %15 = vector.load %arg2[%c1_15, %c0_16, %c0_17] : memref<6x80x64xbf16, #tpu.memory_space<vmem>>, vector<1x80x64xbf16>
    %16 = vector.shape_cast %15 : vector<1x80x64xbf16> to vector<80x64xbf16>
    %cst_18 = arith.constant dense<0.000000e+00> : vector<8x64xf32>
    %17 = tpu.matmul %14, %16, %cst_18 {dimension_numbers = #tpu.dot_dimension_numbers<[1], [0], [0], [1], [0, 0, 1, 1], [], []>} : vector<8x80xbf16>, vector<80x64xbf16>, vector<8x64xf32> -> vector<8x64xf32>
    %18 = arith.addf %12, %17 : vector<8x64xf32>
    %c2 = arith.constant 2 : index
    %c0_19 = arith.constant 0 : index
    %19 = vector.load %arg5[%c2, %c0_19] : memref<10x80xf32, #tpu.memory_space<vmem>>, vector<8x80xf32>
    %20 = arith.truncf %19 : vector<8x80xf32> to vector<8x80xbf16>
    %c2_20 = arith.constant 2 : index
    %c0_21 = arith.constant 0 : index
    %c0_22 = arith.constant 0 : index
    %21 = vector.load %arg2[%c2_20, %c0_21, %c0_22] : memref<6x80x64xbf16, #tpu.memory_space<vmem>>, vector<1x80x64xbf16>
    %22 = vector.shape_cast %21 : vector<1x80x64xbf16> to vector<80x64xbf16>
    %cst_23 = arith.constant dense<0.000000e+00> : vector<8x64xf32>
    %23 = tpu.matmul %20, %22, %cst_23 {dimension_numbers = #tpu.dot_dimension_numbers<[1], [0], [0], [1], [0, 0, 1, 1], [], []>} : vector<8x80xbf16>, vector<80x64xbf16>, vector<8x64xf32> -> vector<8x64xf32>
    %24 = arith.addf %18, %23 : vector<8x64xf32>
    %c0_24 = arith.constant 0 : index
    %c0_25 = arith.constant 0 : index
    %c0_26 = arith.constant 0 : index
    %25 = vector.load %arg3[%c0_24, %c0_25, %c0_26] : memref<2x1x64xf32, #tpu.memory_space<vmem>>, vector<1x1x64xf32>
    %26 = vector.shape_cast %25 : vector<1x1x64xf32> to vector<1x64xf32>
    %27 = vector.broadcast %26 : vector<1x64xf32> to vector<8x64xf32>
    %28 = arith.addf %24, %27 : vector<8x64xf32>
    %cst_27 = arith.constant 0.000000e+00 : f32
    %29 = vector.broadcast %cst_27 : f32 to vector<8x64xf32>
    %30 = arith.maximumf %28, %29 : vector<8x64xf32>
    %c1_28 = arith.constant 1 : index
    %c8_29 = arith.constant 8 : index
    %31 = vector.load %arg6[%c1_28, %c8_29] : memref<10x80xf32, #tpu.memory_space<vmem>>, vector<8x64xf32>
    tpu.vector_store %arg6[%c1_28, %c8_29], %30 {strides = array<i32>} : memref<10x80xf32, #tpu.memory_space<vmem>>, vector<8x64xf32>,
    %c0_30 = arith.constant 0 : index
    %c0_31 = arith.constant 0 : index
    %32 = vector.load %arg6[%c0_30, %c0_31] : memref<10x80xf32, #tpu.memory_space<vmem>>, vector<8x80xf32>
    %33 = arith.truncf %32 : vector<8x80xf32> to vector<8x80xbf16>
    %c3 = arith.constant 3 : index
    %c0_32 = arith.constant 0 : index
    %c0_33 = arith.constant 0 : index
    %34 = vector.load %arg2[%c3, %c0_32, %c0_33] : memref<6x80x64xbf16, #tpu.memory_space<vmem>>, vector<1x80x64xbf16>
    %35 = vector.shape_cast %34 : vector<1x80x64xbf16> to vector<80x64xbf16>
    %cst_34 = arith.constant dense<0.000000e+00> : vector<8x64xf32>
    %36 = tpu.matmul %33, %35, %cst_34 {dimension_numbers = #tpu.dot_dimension_numbers<[1], [0], [0], [1], [0, 0, 1, 1], [], []>} : vector<8x80xbf16>, vector<80x64xbf16>, vector<8x64xf32> -> vector<8x64xf32>
    %c1_35 = arith.constant 1 : index
    %c0_36 = arith.constant 0 : index
    %37 = vector.load %arg6[%c1_35, %c0_36] : memref<10x80xf32, #tpu.memory_space<vmem>>, vector<8x80xf32>
    %38 = arith.truncf %37 : vector<8x80xf32> to vector<8x80xbf16>
    %c4 = arith.constant 4 : index
    %c0_37 = arith.constant 0 : index
    %c0_38 = arith.constant 0 : index
    %39 = vector.load %arg2[%c4, %c0_37, %c0_38] : memref<6x80x64xbf16, #tpu.memory_space<vmem>>, vector<1x80x64xbf16>
    %40 = vector.shape_cast %39 : vector<1x80x64xbf16> to vector<80x64xbf16>
    %cst_39 = arith.constant dense<0.000000e+00> : vector<8x64xf32>
    %41 = tpu.matmul %38, %40, %cst_39 {dimension_numbers = #tpu.dot_dimension_numbers<[1], [0], [0], [1], [0, 0, 1, 1], [], []>} : vector<8x80xbf16>, vector<80x64xbf16>, vector<8x64xf32> -> vector<8x64xf32>
    %42 = arith.addf %36, %41 : vector<8x64xf32>
    %c2_40 = arith.constant 2 : index
    %c0_41 = arith.constant 0 : index
    %43 = vector.load %arg6[%c2_40, %c0_41] : memref<10x80xf32, #tpu.memory_space<vmem>>, vector<8x80xf32>
    %44 = arith.truncf %43 : vector<8x80xf32> to vector<8x80xbf16>
    %c5 = arith.constant 5 : index
    %c0_42 = arith.constant 0 : index
    %c0_43 = arith.constant 0 : index
    %45 = vector.load %arg2[%c5, %c0_42, %c0_43] : memref<6x80x64xbf16, #tpu.memory_space<vmem>>, vector<1x80x64xbf16>
    %46 = vector.shape_cast %45 : vector<1x80x64xbf16> to vector<80x64xbf16>
    %cst_44 = arith.constant dense<0.000000e+00> : vector<8x64xf32>
    %47 = tpu.matmul %44, %46, %cst_44 {dimension_numbers = #tpu.dot_dimension_numbers<[1], [0], [0], [1], [0, 0, 1, 1], [], []>} : vector<8x80xbf16>, vector<80x64xbf16>, vector<8x64xf32> -> vector<8x64xf32>
    %48 = arith.addf %42, %47 : vector<8x64xf32>
    %c1_45 = arith.constant 1 : index
    %c0_46 = arith.constant 0 : index
    %c0_47 = arith.constant 0 : index
    %49 = vector.load %arg3[%c1_45, %c0_46, %c0_47] : memref<2x1x64xf32, #tpu.memory_space<vmem>>, vector<1x1x64xf32>
    %50 = vector.shape_cast %49 : vector<1x1x64xf32> to vector<1x64xf32>
    %51 = vector.broadcast %50 : vector<1x64xf32> to vector<8x64xf32>
    %52 = arith.addf %48, %51 : vector<8x64xf32>
    %c1_48 = arith.constant 1 : index
    %c8_49 = arith.constant 8 : index
    %53 = vector.load %arg5[%c1_48, %c8_49] : memref<10x80xf32, #tpu.memory_space<vmem>>, vector<8x64xf32>
    %54 = arith.addf %53, %52 : vector<8x64xf32>
    %c1_50 = arith.constant 1 : index
    %c8_51 = arith.constant 8 : index
    %55 = vector.load %arg5[%c1_50, %c8_51] : memref<10x80xf32, #tpu.memory_space<vmem>>, vector<8x64xf32>
    tpu.vector_store %arg5[%c1_50, %c8_51], %54 {strides = array<i32>} : memref<10x80xf32, #tpu.memory_space<vmem>>, vector<8x64xf32>,
    %c0_52 = arith.constant 0 : index
    %c0_53 = arith.constant 0 : index
    %56 = vector.load %arg5[%c0_52, %c0_53] : memref<10x80xf32, #tpu.memory_space<vmem>>, vector<10x80xf32>
    %57 = arith.truncf %56 : vector<10x80xf32> to vector<10x80xbf16>
    %c0_54 = arith.constant 0 : index
    %c0_55 = arith.constant 0 : index
    %c0_56 = arith.constant 0 : index
    %58 = vector.load %arg4[%c0_54, %c0_55, %c0_56] : memref<1x10x80xbf16, #tpu.memory_space<vmem>>, vector<1x10x80xbf16>
    %59 = vector.shape_cast %58 : vector<1x10x80xbf16> to vector<10x80xbf16>
    %60 = vector.shape_cast %57 : vector<10x80xbf16> to vector<1x10x80xbf16>
    tpu.vector_store %arg4[%c0_54, %c0_55, %c0_56], %60 {strides = array<i32>} : memref<1x10x80xbf16, #tpu.memory_space<vmem>>, vector<1x10x80xbf16>,
    return
  }
  func.func @transform_0(%arg0: i32) -> (i32, i32, i32) {
    %c0_i32 = arith.constant 0 : i32
    %c0_i32_0 = arith.constant 0 : i32
    %c0_i32_1 = arith.constant 0 : i32
    return %arg0, %c0_i32, %c0_i32_0 : i32, i32, i32
  }
  func.func @transform_1(%arg0: i32) -> (i32, i32, i32) {
    %c0_i32 = arith.constant 0 : i32
    %c0_i32_0 = arith.constant 0 : i32
    %c0_i32_1 = arith.constant 0 : i32
    %c0_i32_2 = arith.constant 0 : i32
    return %c0_i32, %c0_i32_0, %c0_i32_1 : i32, i32, i32
  }
  func.func @transform_2(%arg0: i32) -> (i32, i32, i32) {
    %c0_i32 = arith.constant 0 : i32
    %c0_i32_0 = arith.constant 0 : i32
    %c0_i32_1 = arith.constant 0 : i32
    %c0_i32_2 = arith.constant 0 : i32
    return %c0_i32, %c0_i32_0, %c0_i32_1 : i32, i32, i32
  }
  func.func @transform_3(%arg0: i32) -> (i32, i32, i32) {
    %c0_i32 = arith.constant 0 : i32
    %c0_i32_0 = arith.constant 0 : i32
    %c0_i32_1 = arith.constant 0 : i32
    return %arg0, %c0_i32, %c0_i32_0 : i32, i32, i32
  }
}

module attributes {stable_mosaic.version = 11 : i64} {
  func.func @kernel(%arg0: i32, %arg1: memref<1x5x160xbf16, #tpu.memory_space<vmem>>, %arg2: memref<160x32xbf16, #tpu.memory_space<vmem>>, %arg3: memref<80x32xbf16, #tpu.memory_space<vmem>>, %arg4: memref<1x32xf32, #tpu.memory_space<vmem>>, %arg5: memref<1x32xf32, #tpu.memory_space<vmem>>, %arg6: memref<1x4x32xbf16, #tpu.memory_space<vmem>>) attributes {dimension_semantics = [#tpu.dimension_semantics<parallel>], iteration_bounds = array<i64: 2>, scalar_prefetch = 0 : i64, scratch_operands = 0 : i64, tpu.core_type = #tpu.core_type<tc>, window_params = [{transform_indices = @transform_0, window_bounds = array<i64: 1, 5, 160>}, {pipeline_mode = #tpu.pipeline_mode<synchronous>, transform_indices = @transform_1, window_bounds = array<i64: 160, 32>}, {pipeline_mode = #tpu.pipeline_mode<synchronous>, transform_indices = @transform_2, window_bounds = array<i64: 80, 32>}, {pipeline_mode = #tpu.pipeline_mode<synchronous>, transform_indices = @transform_3, window_bounds = array<i64: 1, 32>}, {pipeline_mode = #tpu.pipeline_mode<synchronous>, transform_indices = @transform_4, window_bounds = array<i64: 1, 32>}, {transform_indices = @transform_5, window_bounds = array<i64: 1, 4, 32>}]} {
    %c0 = arith.constant 0 : index
    %c0_0 = arith.constant 0 : index
    %c0_1 = arith.constant 0 : index
    %0 = vector.load %arg1[%c0, %c0_0, %c0_1] : memref<1x5x160xbf16, #tpu.memory_space<vmem>>, vector<1x5x160xbf16>
    %1 = vector.shape_cast %0 : vector<1x5x160xbf16> to vector<5x160xbf16>
    %2 = arith.extf %1 : vector<5x160xbf16> to vector<5x160xf32>
    %3 = vector.extract_strided_slice %2 {offsets = [0, 0], sizes = [4, 160], strides = [1, 1]} : vector<5x160xf32> to vector<4x160xf32>
    %4 = arith.truncf %3 : vector<4x160xf32> to vector<4x160xbf16>
    %c0_2 = arith.constant 0 : index
    %c0_3 = arith.constant 0 : index
    %5 = vector.load %arg2[%c0_2, %c0_3] : memref<160x32xbf16, #tpu.memory_space<vmem>>, vector<160x32xbf16>
    %cst = arith.constant dense<0.000000e+00> : vector<4x32xf32>
    %6 = tpu.matmul %4, %5, %cst {dimension_numbers = #tpu.dot_dimension_numbers<[1], [0], [0], [1], [0, 0, 1, 1], [], []>} : vector<4x160xbf16>, vector<160x32xbf16>, vector<4x32xf32> -> vector<4x32xf32>
    %7 = vector.extract_strided_slice %2 {offsets = [1, 0], sizes = [4, 80], strides = [1, 1]} : vector<5x160xf32> to vector<4x80xf32>
    %8 = arith.truncf %7 : vector<4x80xf32> to vector<4x80xbf16>
    %c0_4 = arith.constant 0 : index
    %c0_5 = arith.constant 0 : index
    %9 = vector.load %arg3[%c0_4, %c0_5] : memref<80x32xbf16, #tpu.memory_space<vmem>>, vector<80x32xbf16>
    %cst_6 = arith.constant dense<0.000000e+00> : vector<4x32xf32>
    %10 = tpu.matmul %8, %9, %cst_6 {dimension_numbers = #tpu.dot_dimension_numbers<[1], [0], [0], [1], [0, 0, 1, 1], [], []>} : vector<4x80xbf16>, vector<80x32xbf16>, vector<4x32xf32> -> vector<4x32xf32>
    %11 = arith.addf %6, %10 : vector<4x32xf32>
    %c0_7 = arith.constant 0 : index
    %c0_8 = arith.constant 0 : index
    %12 = vector.load %arg4[%c0_7, %c0_8] : memref<1x32xf32, #tpu.memory_space<vmem>>, vector<1x32xf32>
    %13 = vector.broadcast %12 : vector<1x32xf32> to vector<4x32xf32>
    %14 = arith.addf %11, %13 : vector<4x32xf32>
    %cst_9 = arith.constant 0.000000e+00 : f32
    %15 = vector.broadcast %cst_9 : f32 to vector<4x32xf32>
    %16 = arith.cmpf oge, %14, %15 : vector<4x32xf32>
    %c0_10 = arith.constant 0 : index
    %c0_11 = arith.constant 0 : index
    %17 = vector.load %arg5[%c0_10, %c0_11] : memref<1x32xf32, #tpu.memory_space<vmem>>, vector<1x32xf32>
    %18 = vector.broadcast %17 : vector<1x32xf32> to vector<4x32xf32>
    %19 = arith.mulf %18, %14 : vector<4x32xf32>
    %20 = arith.select %16, %14, %19 : vector<4x32xi1>, vector<4x32xf32>
    %21 = arith.truncf %20 : vector<4x32xf32> to vector<4x32xbf16>
    %c0_12 = arith.constant 0 : index
    %c0_13 = arith.constant 0 : index
    %c0_14 = arith.constant 0 : index
    %22 = vector.load %arg6[%c0_12, %c0_13, %c0_14] : memref<1x4x32xbf16, #tpu.memory_space<vmem>>, vector<1x4x32xbf16>
    %23 = vector.shape_cast %22 : vector<1x4x32xbf16> to vector<4x32xbf16>
    %24 = vector.shape_cast %21 : vector<4x32xbf16> to vector<1x4x32xbf16>
    tpu.vector_store %arg6[%c0_12, %c0_13, %c0_14], %24 {strides = array<i32>} : memref<1x4x32xbf16, #tpu.memory_space<vmem>>, vector<1x4x32xbf16>,
    return
  }
  func.func @transform_0(%arg0: i32) -> (i32, i32, i32) {
    %c0_i32 = arith.constant 0 : i32
    %c0_i32_0 = arith.constant 0 : i32
    %c0_i32_1 = arith.constant 0 : i32
    return %arg0, %c0_i32, %c0_i32_0 : i32, i32, i32
  }
  func.func @transform_1(%arg0: i32) -> (i32, i32) {
    %c0_i32 = arith.constant 0 : i32
    %c0_i32_0 = arith.constant 0 : i32
    %c0_i32_1 = arith.constant 0 : i32
    return %c0_i32, %c0_i32_0 : i32, i32
  }
  func.func @transform_2(%arg0: i32) -> (i32, i32) {
    %c0_i32 = arith.constant 0 : i32
    %c0_i32_0 = arith.constant 0 : i32
    %c0_i32_1 = arith.constant 0 : i32
    return %c0_i32, %c0_i32_0 : i32, i32
  }
  func.func @transform_3(%arg0: i32) -> (i32, i32) {
    %c0_i32 = arith.constant 0 : i32
    %c0_i32_0 = arith.constant 0 : i32
    %c0_i32_1 = arith.constant 0 : i32
    return %c0_i32, %c0_i32_0 : i32, i32
  }
  func.func @transform_4(%arg0: i32) -> (i32, i32) {
    %c0_i32 = arith.constant 0 : i32
    %c0_i32_0 = arith.constant 0 : i32
    %c0_i32_1 = arith.constant 0 : i32
    return %c0_i32, %c0_i32_0 : i32, i32
  }
  func.func @transform_5(%arg0: i32) -> (i32, i32, i32) {
    %c0_i32 = arith.constant 0 : i32
    %c0_i32_0 = arith.constant 0 : i32
    %c0_i32_1 = arith.constant 0 : i32
    return %arg0, %c0_i32, %c0_i32_0 : i32, i32, i32
  }
}

module attributes {stable_mosaic.version = 11 : i64} {
  func.func @kernel(%arg0: i32, %arg1: memref<1x4x32xbf16, #tpu.memory_space<vmem>>, %arg2: memref<6x48x32xbf16, #tpu.memory_space<vmem>>, %arg3: memref<2x1x32xf32, #tpu.memory_space<vmem>>, %arg4: memref<1x6x48xbf16, #tpu.memory_space<vmem>>, %arg5: memref<6x48xf32, #tpu.memory_space<vmem>>, %arg6: memref<6x48xf32, #tpu.memory_space<vmem>>) attributes {dimension_semantics = [#tpu.dimension_semantics<parallel>], iteration_bounds = array<i64: 2>, scalar_prefetch = 0 : i64, scratch_operands = 2 : i64, tpu.core_type = #tpu.core_type<tc>, window_params = [{transform_indices = @transform_0, window_bounds = array<i64: 1, 4, 32>}, {pipeline_mode = #tpu.pipeline_mode<synchronous>, transform_indices = @transform_1, window_bounds = array<i64: 6, 48, 32>}, {pipeline_mode = #tpu.pipeline_mode<synchronous>, transform_indices = @transform_2, window_bounds = array<i64: 2, 1, 32>}, {transform_indices = @transform_3, window_bounds = array<i64: 1, 6, 48>}]} {
    %cst = arith.constant 0.000000e+00 : f32
    %0 = vector.broadcast %cst : f32 to vector<6x48xf32>
    %c0 = arith.constant 0 : index
    %c0_0 = arith.constant 0 : index
    %1 = vector.load %arg5[%c0, %c0_0] : memref<6x48xf32, #tpu.memory_space<vmem>>, vector<6x48xf32>
    tpu.vector_store %arg5[%c0, %c0_0], %0 {strides = array<i32>} : memref<6x48xf32, #tpu.memory_space<vmem>>, vector<6x48xf32>,
    %cst_1 = arith.constant 0.000000e+00 : f32
    %2 = vector.broadcast %cst_1 : f32 to vector<6x48xf32>
    %c0_2 = arith.constant 0 : index
    %c0_3 = arith.constant 0 : index
    %3 = vector.load %arg6[%c0_2, %c0_3] : memref<6x48xf32, #tpu.memory_space<vmem>>, vector<6x48xf32>
    tpu.vector_store %arg6[%c0_2, %c0_3], %2 {strides = array<i32>} : memref<6x48xf32, #tpu.memory_space<vmem>>, vector<6x48xf32>,
    %c0_4 = arith.constant 0 : index
    %c0_5 = arith.constant 0 : index
    %c0_6 = arith.constant 0 : index
    %4 = vector.load %arg1[%c0_4, %c0_5, %c0_6] : memref<1x4x32xbf16, #tpu.memory_space<vmem>>, vector<1x4x32xbf16>
    %5 = vector.shape_cast %4 : vector<1x4x32xbf16> to vector<4x32xbf16>
    %6 = arith.extf %5 : vector<4x32xbf16> to vector<4x32xf32>
    %c1 = arith.constant 1 : index
    %c8 = arith.constant 8 : index
    %7 = vector.load %arg5[%c1, %c8] : memref<6x48xf32, #tpu.memory_space<vmem>>, vector<4x32xf32>
    tpu.vector_store %arg5[%c1, %c8], %6 {strides = array<i32>} : memref<6x48xf32, #tpu.memory_space<vmem>>, vector<4x32xf32>,
    %c0_7 = arith.constant 0 : index
    %c0_8 = arith.constant 0 : index
    %8 = vector.load %arg5[%c0_7, %c0_8] : memref<6x48xf32, #tpu.memory_space<vmem>>, vector<4x48xf32>
    %9 = arith.truncf %8 : vector<4x48xf32> to vector<4x48xbf16>
    %c0_9 = arith.constant 0 : index
    %c0_10 = arith.constant 0 : index
    %c0_11 = arith.constant 0 : index
    %10 = vector.load %arg2[%c0_9, %c0_10, %c0_11] : memref<6x48x32xbf16, #tpu.memory_space<vmem>>, vector<1x48x32xbf16>
    %11 = vector.shape_cast %10 : vector<1x48x32xbf16> to vector<48x32xbf16>
    %cst_12 = arith.constant dense<0.000000e+00> : vector<4x32xf32>
    %12 = tpu.matmul %9, %11, %cst_12 {dimension_numbers = #tpu.dot_dimension_numbers<[1], [0], [0], [1], [0, 0, 1, 1], [], []>} : vector<4x48xbf16>, vector<48x32xbf16>, vector<4x32xf32> -> vector<4x32xf32>
    %c1_13 = arith.constant 1 : index
    %c0_14 = arith.constant 0 : index
    %13 = vector.load %arg5[%c1_13, %c0_14] : memref<6x48xf32, #tpu.memory_space<vmem>>, vector<4x48xf32>
    %14 = arith.truncf %13 : vector<4x48xf32> to vector<4x48xbf16>
    %c1_15 = arith.constant 1 : index
    %c0_16 = arith.constant 0 : index
    %c0_17 = arith.constant 0 : index
    %15 = vector.load %arg2[%c1_15, %c0_16, %c0_17] : memref<6x48x32xbf16, #tpu.memory_space<vmem>>, vector<1x48x32xbf16>
    %16 = vector.shape_cast %15 : vector<1x48x32xbf16> to vector<48x32xbf16>
    %cst_18 = arith.constant dense<0.000000e+00> : vector<4x32xf32>
    %17 = tpu.matmul %14, %16, %cst_18 {dimension_numbers = #tpu.dot_dimension_numbers<[1], [0], [0], [1], [0, 0, 1, 1], [], []>} : vector<4x48xbf16>, vector<48x32xbf16>, vector<4x32xf32> -> vector<4x32xf32>
    %18 = arith.addf %12, %17 : vector<4x32xf32>
    %c2 = arith.constant 2 : index
    %c0_19 = arith.constant 0 : index
    %19 = vector.load %arg5[%c2, %c0_19] : memref<6x48xf32, #tpu.memory_space<vmem>>, vector<4x48xf32>
    %20 = arith.truncf %19 : vector<4x48xf32> to vector<4x48xbf16>
    %c2_20 = arith.constant 2 : index
    %c0_21 = arith.constant 0 : index
    %c0_22 = arith.constant 0 : index
    %21 = vector.load %arg2[%c2_20, %c0_21, %c0_22] : memref<6x48x32xbf16, #tpu.memory_space<vmem>>, vector<1x48x32xbf16>
    %22 = vector.shape_cast %21 : vector<1x48x32xbf16> to vector<48x32xbf16>
    %cst_23 = arith.constant dense<0.000000e+00> : vector<4x32xf32>
    %23 = tpu.matmul %20, %22, %cst_23 {dimension_numbers = #tpu.dot_dimension_numbers<[1], [0], [0], [1], [0, 0, 1, 1], [], []>} : vector<4x48xbf16>, vector<48x32xbf16>, vector<4x32xf32> -> vector<4x32xf32>
    %24 = arith.addf %18, %23 : vector<4x32xf32>
    %c0_24 = arith.constant 0 : index
    %c0_25 = arith.constant 0 : index
    %c0_26 = arith.constant 0 : index
    %25 = vector.load %arg3[%c0_24, %c0_25, %c0_26] : memref<2x1x32xf32, #tpu.memory_space<vmem>>, vector<1x1x32xf32>
    %26 = vector.shape_cast %25 : vector<1x1x32xf32> to vector<1x32xf32>
    %27 = vector.broadcast %26 : vector<1x32xf32> to vector<4x32xf32>
    %28 = arith.addf %24, %27 : vector<4x32xf32>
    %cst_27 = arith.constant 0.000000e+00 : f32
    %29 = vector.broadcast %cst_27 : f32 to vector<4x32xf32>
    %30 = arith.maximumf %28, %29 : vector<4x32xf32>
    %c1_28 = arith.constant 1 : index
    %c8_29 = arith.constant 8 : index
    %31 = vector.load %arg6[%c1_28, %c8_29] : memref<6x48xf32, #tpu.memory_space<vmem>>, vector<4x32xf32>
    tpu.vector_store %arg6[%c1_28, %c8_29], %30 {strides = array<i32>} : memref<6x48xf32, #tpu.memory_space<vmem>>, vector<4x32xf32>,
    %c0_30 = arith.constant 0 : index
    %c0_31 = arith.constant 0 : index
    %32 = vector.load %arg6[%c0_30, %c0_31] : memref<6x48xf32, #tpu.memory_space<vmem>>, vector<4x48xf32>
    %33 = arith.truncf %32 : vector<4x48xf32> to vector<4x48xbf16>
    %c3 = arith.constant 3 : index
    %c0_32 = arith.constant 0 : index
    %c0_33 = arith.constant 0 : index
    %34 = vector.load %arg2[%c3, %c0_32, %c0_33] : memref<6x48x32xbf16, #tpu.memory_space<vmem>>, vector<1x48x32xbf16>
    %35 = vector.shape_cast %34 : vector<1x48x32xbf16> to vector<48x32xbf16>
    %cst_34 = arith.constant dense<0.000000e+00> : vector<4x32xf32>
    %36 = tpu.matmul %33, %35, %cst_34 {dimension_numbers = #tpu.dot_dimension_numbers<[1], [0], [0], [1], [0, 0, 1, 1], [], []>} : vector<4x48xbf16>, vector<48x32xbf16>, vector<4x32xf32> -> vector<4x32xf32>
    %c1_35 = arith.constant 1 : index
    %c0_36 = arith.constant 0 : index
    %37 = vector.load %arg6[%c1_35, %c0_36] : memref<6x48xf32, #tpu.memory_space<vmem>>, vector<4x48xf32>
    %38 = arith.truncf %37 : vector<4x48xf32> to vector<4x48xbf16>
    %c4 = arith.constant 4 : index
    %c0_37 = arith.constant 0 : index
    %c0_38 = arith.constant 0 : index
    %39 = vector.load %arg2[%c4, %c0_37, %c0_38] : memref<6x48x32xbf16, #tpu.memory_space<vmem>>, vector<1x48x32xbf16>
    %40 = vector.shape_cast %39 : vector<1x48x32xbf16> to vector<48x32xbf16>
    %cst_39 = arith.constant dense<0.000000e+00> : vector<4x32xf32>
    %41 = tpu.matmul %38, %40, %cst_39 {dimension_numbers = #tpu.dot_dimension_numbers<[1], [0], [0], [1], [0, 0, 1, 1], [], []>} : vector<4x48xbf16>, vector<48x32xbf16>, vector<4x32xf32> -> vector<4x32xf32>
    %42 = arith.addf %36, %41 : vector<4x32xf32>
    %c2_40 = arith.constant 2 : index
    %c0_41 = arith.constant 0 : index
    %43 = vector.load %arg6[%c2_40, %c0_41] : memref<6x48xf32, #tpu.memory_space<vmem>>, vector<4x48xf32>
    %44 = arith.truncf %43 : vector<4x48xf32> to vector<4x48xbf16>
    %c5 = arith.constant 5 : index
    %c0_42 = arith.constant 0 : index
    %c0_43 = arith.constant 0 : index
    %45 = vector.load %arg2[%c5, %c0_42, %c0_43] : memref<6x48x32xbf16, #tpu.memory_space<vmem>>, vector<1x48x32xbf16>
    %46 = vector.shape_cast %45 : vector<1x48x32xbf16> to vector<48x32xbf16>
    %cst_44 = arith.constant dense<0.000000e+00> : vector<4x32xf32>
    %47 = tpu.matmul %44, %46, %cst_44 {dimension_numbers = #tpu.dot_dimension_numbers<[1], [0], [0], [1], [0, 0, 1, 1], [], []>} : vector<4x48xbf16>, vector<48x32xbf16>, vector<4x32xf32> -> vector<4x32xf32>
    %48 = arith.addf %42, %47 : vector<4x32xf32>
    %c1_45 = arith.constant 1 : index
    %c0_46 = arith.constant 0 : index
    %c0_47 = arith.constant 0 : index
    %49 = vector.load %arg3[%c1_45, %c0_46, %c0_47] : memref<2x1x32xf32, #tpu.memory_space<vmem>>, vector<1x1x32xf32>
    %50 = vector.shape_cast %49 : vector<1x1x32xf32> to vector<1x32xf32>
    %51 = vector.broadcast %50 : vector<1x32xf32> to vector<4x32xf32>
    %52 = arith.addf %48, %51 : vector<4x32xf32>
    %c1_48 = arith.constant 1 : index
    %c8_49 = arith.constant 8 : index
    %53 = vector.load %arg5[%c1_48, %c8_49] : memref<6x48xf32, #tpu.memory_space<vmem>>, vector<4x32xf32>
    %54 = arith.addf %53, %52 : vector<4x32xf32>
    %c1_50 = arith.constant 1 : index
    %c8_51 = arith.constant 8 : index
    %55 = vector.load %arg5[%c1_50, %c8_51] : memref<6x48xf32, #tpu.memory_space<vmem>>, vector<4x32xf32>
    tpu.vector_store %arg5[%c1_50, %c8_51], %54 {strides = array<i32>} : memref<6x48xf32, #tpu.memory_space<vmem>>, vector<4x32xf32>,
    %c0_52 = arith.constant 0 : index
    %c0_53 = arith.constant 0 : index
    %56 = vector.load %arg5[%c0_52, %c0_53] : memref<6x48xf32, #tpu.memory_space<vmem>>, vector<6x48xf32>
    %57 = arith.truncf %56 : vector<6x48xf32> to vector<6x48xbf16>
    %c0_54 = arith.constant 0 : index
    %c0_55 = arith.constant 0 : index
    %c0_56 = arith.constant 0 : index
    %58 = vector.load %arg4[%c0_54, %c0_55, %c0_56] : memref<1x6x48xbf16, #tpu.memory_space<vmem>>, vector<1x6x48xbf16>
    %59 = vector.shape_cast %58 : vector<1x6x48xbf16> to vector<6x48xbf16>
    %60 = vector.shape_cast %57 : vector<6x48xbf16> to vector<1x6x48xbf16>
    tpu.vector_store %arg4[%c0_54, %c0_55, %c0_56], %60 {strides = array<i32>} : memref<1x6x48xbf16, #tpu.memory_space<vmem>>, vector<1x6x48xbf16>,
    return
  }
  func.func @transform_0(%arg0: i32) -> (i32, i32, i32) {
    %c0_i32 = arith.constant 0 : i32
    %c0_i32_0 = arith.constant 0 : i32
    %c0_i32_1 = arith.constant 0 : i32
    return %arg0, %c0_i32, %c0_i32_0 : i32, i32, i32
  }
  func.func @transform_1(%arg0: i32) -> (i32, i32, i32) {
    %c0_i32 = arith.constant 0 : i32
    %c0_i32_0 = arith.constant 0 : i32
    %c0_i32_1 = arith.constant 0 : i32
    %c0_i32_2 = arith.constant 0 : i32
    return %c0_i32, %c0_i32_0, %c0_i32_1 : i32, i32, i32
  }
  func.func @transform_2(%arg0: i32) -> (i32, i32, i32) {
    %c0_i32 = arith.constant 0 : i32
    %c0_i32_0 = arith.constant 0 : i32
    %c0_i32_1 = arith.constant 0 : i32
    %c0_i32_2 = arith.constant 0 : i32
    return %c0_i32, %c0_i32_0, %c0_i32_1 : i32, i32, i32
  }
  func.func @transform_3(%arg0: i32) -> (i32, i32, i32) {
    %c0_i32 = arith.constant 0 : i32
    %c0_i32_0 = arith.constant 0 : i32
    %c0_i32_1 = arith.constant 0 : i32
    return %arg0, %c0_i32, %c0_i32_0 : i32, i32, i32
  }
}

</mosaic_0001>

<llo_original>
// kernel: fwd.6
$region0: #{fwd.6}
  #allocation0 [shape = 'u32[]', space=smem, size = 0x4, offset = 0x4, fixed_abs, tag = 'smem constant byte address 0x4 - core index']
  #allocation1 [shape = 'u32[144,128]{1,0:T(1,128)}', space=vmem, size = 0x12000, scoped, tag = 'internal scratch']
  %s0 = inlined_call_operand.vmem [shape: bf16[2,9,288], index: 0, kind: input, shape index: {}]
  %s1 = inlined_call_operand.vmem [shape: bf16[288,64], index: 1, kind: input, shape index: {}]
  %s2 = inlined_call_operand.vmem [shape: bf16[144,64], index: 2, kind: input, shape index: {}]
  %s3 = inlined_call_operand.vmem [shape: f32[1,64], index: 3, kind: input, shape index: {}]
  %s4 = inlined_call_operand.vmem [shape: f32[1,64], index: 4, kind: input, shape index: {}]
  %s5 = inlined_call_operand.vmem [shape: bf16[2,8,64], index: 5, kind: output, shape index: {}]
  %s6 = sld [smem:[#allocation0]]
  $region53: #{fwd.6} parent=0
    _
  %s8 = ssub.s32 1, %s6
  %s9 = scalar_select 0, %s8, %s6
  loop: start=0, step=1, limit=4
  $region2: #{fwd.6} parent=0 // loop_pre_header
    _
  $region3: #{fwd.6} parent=0 // loop_header
    %s11 = sphi 0, %s15
    %p12 = scmp.ge.s32.totalorder %s11, 4
    %s21 = sphi 0, %s23
    %s24 = sphi 0, %s21
    %s25 = sphi 0, %s24
    %s41 = sphi 0, %s25
    %s45 = sphi 0, %s45
    %s47 = sphi 0, %s45
    %s48 = sphi 0, %s47
    %s62 = sphi 0, %s48
    %s66 = sphi 0, %s66
    %s68 = sphi 0, %s66
    %s69 = sphi 0, %s68
    %s83 = sphi 0, %s69
    %s87 = sphi 0, %s87
    %s89 = sphi 0, %s87
    %s90 = sphi 0, %s89
    %s104 = sphi 0, %s90
    %s108 = sphi 0, %s108
    %s110 = sphi 0, %s108
    %s111 = sphi 0, %s110
    %s125 = sphi 0, %s111
    %s131 = sphi 0, %s133
    %s134 = sphi 0, %s131
    %s135 = sphi 0, %s134
    %s151 = sphi 0, %s135
  $region4: #{fwd.6} parent=0 // loop_header_branch
    %14 = sbr.rel (%p12) target = $region8
  $region5: #{fwd.6} parent=0 // loop_body
    %s16 = ssub.s32 %s11, 1
    %s17 = ssub.s32 %s11, 2
    %s18 = sadd.s32 %s11, 1
    %s19 = ssub.s32 %s11, %s18
    %p20 = scmp.eq.s32.totalorder %s19, 0
    %s22 = sadd.s32 %s21, 1
    %s23 = scalar_select %p20, %s21, %s22
    %p26 = pneg %p20
    %p27 = scmp.eq.s32.totalorder %s11, 1
    %p28 = por %p26, %p27
    %p29 = scmp.ne.s32.totalorder %s21, %s24
    %p30 = scmp.eq.s32.totalorder %s11, 0
    %p31 = por %p29, %p30
    %p32 = scmp.ne.s32.totalorder %s21, %s24
    %p33 = scmp.eq.s32.totalorder %s16, 1
    %p34 = por %p32, %p33
    %p35 = scmp.ne.s32.totalorder %s24, %s25
    %p36 = scmp.eq.s32.totalorder %s16, 0
    %p37 = por %p35, %p36
    %p38 = scmp.ne.s32.totalorder %s24, %s25
    %p39 = scmp.eq.s32.totalorder %s17, 1
    %p40 = por %p38, %p39
    %p42 = scmp.ne.s32.totalorder %s25, %s41
    %p43 = scmp.eq.s32.totalorder %s17, 0
    %p44 = por %p42, %p43
    %s46 = sadd.s32 %s45, 1
    %p49 = scmp.eq.s32.totalorder %s11, 1
    %p50 = scmp.ne.s32.totalorder %s45, %s47
    %p51 = scmp.eq.s32.totalorder %s11, 0
    %p52 = por %p50, %p51
    %p53 = scmp.ne.s32.totalorder %s45, %s47
    %p54 = scmp.eq.s32.totalorder %s16, 1
    %p55 = por %p53, %p54
    %p56 = scmp.ne.s32.totalorder %s47, %s48
    %p57 = scmp.eq.s32.totalorder %s16, 0
    %p58 = por %p56, %p57
    %p59 = scmp.ne.s32.totalorder %s47, %s48
    %p60 = scmp.eq.s32.totalorder %s17, 1
    %p61 = por %p59, %p60
    %p63 = scmp.ne.s32.totalorder %s48, %s62
    %p64 = scmp.eq.s32.totalorder %s17, 0
    %p65 = por %p63, %p64
    %s67 = sadd.s32 %s66, 1
    %p70 = scmp.eq.s32.totalorder %s11, 1
    %p71 = scmp.ne.s32.totalorder %s66, %s68
    %p72 = scmp.eq.s32.totalorder %s11, 0
    %p73 = por %p71, %p72
    %p74 = scmp.ne.s32.totalorder %s66, %s68
    %p75 = scmp.eq.s32.totalorder %s16, 1
    %p76 = por %p74, %p75
    %p77 = scmp.ne.s32.totalorder %s68, %s69
    %p78 = scmp.eq.s32.totalorder %s16, 0
    %p79 = por %p77, %p78
    %p80 = scmp.ne.s32.totalorder %s68, %s69
    %p81 = scmp.eq.s32.totalorder %s17, 1
    %p82 = por %p80, %p81
    %p84 = scmp.ne.s32.totalorder %s69, %s83
    %p85 = scmp.eq.s32.totalorder %s17, 0
    %p86 = por %p84, %p85
    %s88 = sadd.s32 %s87, 1
    %p91 = scmp.eq.s32.totalorder %s11, 1
    %p92 = scmp.ne.s32.totalorder %s87, %s89
    %p93 = scmp.eq.s32.totalorder %s11, 0
    %p94 = por %p92, %p93
    %p95 = scmp.ne.s32.totalorder %s87, %s89
    %p96 = scmp.eq.s32.totalorder %s16, 1
    %p97 = por %p95, %p96
    %p98 = scmp.ne.s32.totalorder %s89, %s90
    %p99 = scmp.eq.s32.totalorder %s16, 0
    %p100 = por %p98, %p99
    %p101 = scmp.ne.s32.totalorder %s89, %s90
    %p102 = scmp.eq.s32.totalorder %s17, 1
    %p103 = por %p101, %p102
    %p105 = scmp.ne.s32.totalorder %s90, %s104
    %p106 = scmp.eq.s32.totalorder %s17, 0
    %p107 = por %p105, %p106
    %s109 = sadd.s32 %s108, 1
    %p112 = scmp.eq.s32.totalorder %s11, 1
    %p113 = scmp.ne.s32.totalorder %s108, %s110
    %p114 = scmp.eq.s32.totalorder %s11, 0
    %p115 = por %p113, %p114
    %p116 = scmp.ne.s32.totalorder %s108, %s110
    %p117 = scmp.eq.s32.totalorder %s16, 1
    %p118 = por %p116, %p117
    %p119 = scmp.ne.s32.totalorder %s110, %s111
    %p120 = scmp.eq.s32.totalorder %s16, 0
    %p121 = por %p119, %p120
    %p122 = scmp.ne.s32.totalorder %s110, %s111
    %p123 = scmp.eq.s32.totalorder %s17, 1
    %p124 = por %p122, %p123
    %p126 = scmp.ne.s32.totalorder %s111, %s125
    %p127 = scmp.eq.s32.totalorder %s17, 0
    %p128 = por %p126, %p127
    %s129 = ssub.s32 %s11, %s18
    %p130 = scmp.eq.s32.totalorder %s129, 0
    %s132 = sadd.s32 %s131, 1
    %s133 = scalar_select %p130, %s131, %s132
    %p136 = pneg %p130
    %p137 = scmp.eq.s32.totalorder %s11, 1
    %p138 = por %p136, %p137
    %p139 = scmp.ne.s32.totalorder %s131, %s134
    %p140 = scmp.eq.s32.totalorder %s11, 0
    %p141 = por %p139, %p140
    %p142 = scmp.ne.s32.totalorder %s131, %s134
    %p143 = scmp.eq.s32.totalorder %s16, 1
    %p144 = por %p142, %p143
    %p145 = scmp.ne.s32.totalorder %s134, %s135
    %p146 = scmp.eq.s32.totalorder %s16, 0
    %p147 = por %p145, %p146
    %p148 = scmp.ne.s32.totalorder %s134, %s135
    %p149 = scmp.eq.s32.totalorder %s17, 1
    %p150 = por %p148, %p149
    %p152 = scmp.ne.s32.totalorder %s135, %s151
    %p153 = scmp.eq.s32.totalorder %s17, 0
    %p154 = por %p152, %p153
    %p155 = scmp.le.s32.totalorder 1, %s11
    %p156 = scmp.lt.s32.totalorder %s11, 3
    %p157 = pnand %p155, %p156
    %p158 = pneg %p157
    // Predicated region
    $region9: #{fwd.6} parent=5 // pred_check
      _
    $region10: #{fwd.6} parent=5 // pred_check_branch
      %160 = sbr.rel (%p157) target = $region12
    $region11: #{fwd.6} parent=5 // pred_region
      %s161 = ssub.s32 %s11, 1
      // Predicated region
      $region13: #{fwd.6} parent=11 // pred_check
        %p162 = pneg %p58
      $region14: #{fwd.6} parent=11 // pred_check_branch
        %164 = sbr.rel (%p162) target = $region16
      $region15: #{fwd.6} parent=11 // pred_region
        _
      $region16: #{fwd.6} parent=11 // pred_fallthru
        _
      // Predicated region
      $region17: #{fwd.6} parent=11 // pred_check
        %p165 = pneg %p79
      $region18: #{fwd.6} parent=11 // pred_check_branch
        %167 = sbr.rel (%p165) target = $region20
      $region19: #{fwd.6} parent=11 // pred_region
        _
      $region20: #{fwd.6} parent=11 // pred_fallthru
        _
      // Predicated region
      $region21: #{fwd.6} parent=11 // pred_check
        %p168 = pneg %p100
      $region22: #{fwd.6} parent=11 // pred_check_branch
        %170 = sbr.rel (%p168) target = $region24
      $region23: #{fwd.6} parent=11 // pred_region
        _
      $region24: #{fwd.6} parent=11 // pred_fallthru
        _
      // Predicated region
      $region25: #{fwd.6} parent=11 // pred_check
        %p171 = pneg %p121
      $region26: #{fwd.6} parent=11 // pred_check_branch
        %173 = sbr.rel (%p171) target = $region28
      $region27: #{fwd.6} parent=11 // pred_region
        _
      $region28: #{fwd.6} parent=11 // pred_fallthru
        _
    $region12: #{fwd.6} parent=5 // pred_fallthru
      _
    %p174 = scmp.lt.s32.totalorder %s11, 2
    // Predicated region
    $region29: #{fwd.6} parent=5 // pred_check
      %p175 = pneg %p174
    $region30: #{fwd.6} parent=5 // pred_check_branch
      %177 = sbr.rel (%p175) target = $region32
    $region31: #{fwd.6} parent=5 // pred_region
      // Predicated region
      $region33: #{fwd.6} parent=31 // pred_check
        %p178 = pneg %p31
      $region34: #{fwd.6} parent=31 // pred_check_branch
        %180 = sbr.rel (%p178) target = $region36
      $region35: #{fwd.6} parent=31 // pred_region
        %p181 = scmp.lt.s32.totalorder %s11, 1
        %s182 = scalar_select %p181, %s11, 1
        %s183 = smul.addr %s182, 6
        %s184 = smul.addr %s183, 4
        %s185 = scalar_lea.vmem %s0, %s184
      $region36: #{fwd.6} parent=31 // pred_fallthru
        _
    $region32: #{fwd.6} parent=5 // pred_fallthru
      _
    %p186 = scmp.le.s32.totalorder 1, %s11
    %p187 = scmp.lt.s32.totalorder %s11, 3
    %p188 = pnand %p186, %p187
    %p189 = pneg %p188
    // Predicated region
    $region37: #{fwd.6} parent=5 // pred_check
      _
    $region38: #{fwd.6} parent=5 // pred_check_branch
      %191 = sbr.rel (%p188) target = $region40
    $region39: #{fwd.6} parent=5 // pred_region
      %s192 = ssub.s32 %s11, 1
      %p193 = scmp.lt.s32.totalorder %s16, 1
      %s194 = scalar_select %p193, %s16, 1
      %s195 = smul.addr %s194, 6
      %s196 = smul.addr %s195, 4
      %s197 = scalar_lea.vmem %s0, %s196
      %p198 = pneg %p37
      %p199 = pneg %p34
      %p200 = pneg %p58
      %p201 = pneg %p55
      %p202 = pneg %p79
      %p203 = pneg %p76
      %p204 = pneg %p100
      %p205 = pneg %p97
      %p206 = pneg %p121
      %p207 = pneg %p118
      %p208 = pneg %p147
      %p209 = pneg %p144
      %p210 = scmp.lt.s32.totalorder %s16, 1
      %s211 = scalar_select %p210, %s16, 1
      %s212 = smul.addr %s211, 4
      %s213 = scalar_lea.vmem %s5, %s212
      %p214 = scmp.lt.s32.totalorder %s16, 1
      %s215 = scalar_select %p214, %s16, 1
      %s216 = smul.addr %s215, 6
      %s217 = smul.addr %s216, 4
      %s218 = scalar_lea.vmem %s0, %s217
      %p219 = scmp.lt.s32.totalorder %s16, 1
      %s220 = scalar_select %p219, %s16, 1
      %s221 = smul.addr %s220, 4
      %s222 = scalar_lea.vmem %s5, %s221
      %v224 = vld [vmem:[%s218] sm:$0xff]
      %v225 = vld [vmem:[%s218 + $0x8] sm:$0xf]
      %v226 = vld [vmem:[%s218 + $0xc] sm:$0x11]
      %v227 = vunpack.c.l.bf16 %v224
      %v228 = vunpack.c.h.bf16 %v224
      %v229 = vunpack.c.l.bf16 %v225
      %v230 = vunpack.c.l.bf16 %v226
      %v231 = vunpack.c.h.bf16 %v226
      %v232 = vpack.c.bf16 %v227, %v227
      %v233 = vpack.c.bf16 %v228, %v228
      %v234 = vpack.c.bf16 %v229, %v229
      %v235 = vld [vmem:[%s1] sm:$0xf]
      %v236 = vld [vmem:[%s1 + $0x4] sm:$0xf]
      %v237 = vld [vmem:[%s1 + $0x8] sm:$0xf]
      %v238 = vld [vmem:[%s1 + $0xc] sm:$0xf]
      %v239 = vld [vmem:[%s1 + $0x10] sm:$0xf]
      %v240 = vld [vmem:[%s1 + $0x14] sm:$0xf]
      %v241 = vld [vmem:[%s1 + $0x18] sm:$0xf]
      %v242 = vld [vmem:[%s1 + $0x1c] sm:$0xf]
      %v243 = vld [vmem:[%s1 + $0x20] sm:$0xf]
      %v244 = vld [vmem:[%s1 + $0x24] sm:$0xf]
      %v245 = vld [vmem:[%s1 + $0x28] sm:$0xf]
      %v246 = vld [vmem:[%s1 + $0x2c] sm:$0xf]
      %v247 = vld [vmem:[%s1 + $0x30] sm:$0xf]
      %v248 = vld [vmem:[%s1 + $0x34] sm:$0xf]
      %v249 = vld [vmem:[%s1 + $0x38] sm:$0xf]
      %v250 = vld [vmem:[%s1 + $0x3c] sm:$0xf]
      %v251 = vld [vmem:[%s1 + $0x40] sm:$0xf]
      %v252 = vld [vmem:[%s1 + $0x44] sm:$0xf]
      %v253 = vld [vmem:[%s1 + $0x48] sm:$0xf]
      %v254 = vld [vmem:[%s1 + $0x4c] sm:$0xf]
      %v255 = vld [vmem:[%s1 + $0x50] sm:$0xf]
      %v256 = vld [vmem:[%s1 + $0x54] sm:$0xf]
      %v257 = vld [vmem:[%s1 + $0x58] sm:$0xf]
      %v258 = vld [vmem:[%s1 + $0x5c] sm:$0xf]
      %v259 = vld [vmem:[%s1 + $0x60] sm:$0xf]
      %v260 = vld [vmem:[%s1 + $0x64] sm:$0xf]
      %v261 = vld [vmem:[%s1 + $0x68] sm:$0xf]
      %v262 = vld [vmem:[%s1 + $0x6c] sm:$0xf]
      %v263 = vld [vmem:[%s1 + $0x70] sm:$0xf]
      %v264 = vld [vmem:[%s1 + $0x74] sm:$0xf]
      %v265 = vld [vmem:[%s1 + $0x78] sm:$0xf]
      %v266 = vld [vmem:[%s1 + $0x7c] sm:$0xf]
      %v267 = vld [vmem:[%s1 + $0x80] sm:$0xf]
      %v268 = vld [vmem:[%s1 + $0x84] sm:$0xf]
      %v269 = vld [vmem:[%s1 + $0x88] sm:$0xf]
      %v270 = vld [vmem:[%s1 + $0x8c] sm:$0xf]
      %v271 = vpack.c.bf16 %v230, %v227
      %v272 = vpack.c.bf16 %v231, %v228
      %v273 = vld [vmem:[%s2] sm:$0xf]
      %v274 = vld [vmem:[%s2 + $0x4] sm:$0xf]
      %v275 = vld [vmem:[%s2 + $0x8] sm:$0xf]
      %v276 = vld [vmem:[%s2 + $0xc] sm:$0xf]
      %v277 = vld [vmem:[%s2 + $0x10] sm:$0xf]
      %v278 = vld [vmem:[%s2 + $0x14] sm:$0xf]
      %v279 = vld [vmem:[%s2 + $0x18] sm:$0xf]
      %v280 = vld [vmem:[%s2 + $0x1c] sm:$0xf]
      %v281 = vld [vmem:[%s2 + $0x20] sm:$0xf]
      %v282 = vld [vmem:[%s2 + $0x24] sm:$0xf]
      %v283 = vld [vmem:[%s2 + $0x28] sm:$0xf]
      %v284 = vld [vmem:[%s2 + $0x2c] sm:$0xf]
      %v285 = vld [vmem:[%s2 + $0x30] sm:$0xf]
      %v286 = vld [vmem:[%s2 + $0x34] sm:$0xf]
      %v287 = vld [vmem:[%s2 + $0x38] sm:$0xf]
      %v288 = vld [vmem:[%s2 + $0x3c] sm:$0xf]
      %v289 = vld [vmem:[%s2 + $0x40] sm:$0xf]
      %v290 = vld [vmem:[%s2 + $0x44] sm:$0xf]
      %v292 = vshrl.u32 %v271, 16
      %v294 = vshll.u32 %v271, 16
      %v296 = vrot.slane %v294, 1
      %v297 = vor.u32 %v292, %v296
      %v299 = vshrl.u32 %v272, 16
      %v301 = vshll.u32 %v272, 16
      %v303 = vrot.slane %v301, 1
      %v304 = vor.u32 %v299, %v303
      %v324 = vunpack.c.l.b16 %v273
      %v325 = vunpack.c.l.b16 %v274
      %v326 = vunpack.c.l.b16 %v275
      %v327 = vunpack.c.l.b16 %v276
      %v328 = vunpack.c.l.b16 %v277
      %v329 = vunpack.c.l.b16 %v278
      %v330 = vunpack.c.l.b16 %v279
      %v331 = vunpack.c.l.b16 %v280
      %v332 = vunpack.c.l.b16 %v281
      %v333 = vunpack.c.l.b16 %v282
      %v334 = vunpack.c.l.b16 %v283
      %v335 = vunpack.c.l.b16 %v284
      %v336 = vunpack.c.l.b16 %v285
      %v337 = vunpack.c.l.b16 %v286
      %v338 = vunpack.c.l.b16 %v287
      %v339 = vunpack.c.l.b16 %v288
      %v340 = vunpack.c.l.b16 %v289
      %v341 = vunpack.c.l.b16 %v290
      %v342 = vpack.c.b16 %v325, %v324
      %v343 = vpack.c.b16 %v327, %v326
      %v344 = vpack.c.b16 %v329, %v328
      %v345 = vpack.c.b16 %v331, %v330
      %v346 = vpack.c.b16 %v333, %v332
      %v347 = vpack.c.b16 %v335, %v334
      %v348 = vpack.c.b16 %v337, %v336
      %v349 = vpack.c.b16 %v339, %v338
      %v350 = vpack.c.b16 %v341, %v340
      %vm360 = vcmask 130048
      %v362 = vsel %vm360, %v304, 0
      %364 = vmatprep.subr.bf16.mxu0 0
      %365 = vmatpush1.bf16.msra.mxu0 %v342
      %366 = vmatprep.subr.bf16.mxu0 0
      %367 = vmatpush1.bf16.msra.mxu0 %v343
      %368 = vmatprep.subr.bf16.mxu0 0
      %369 = vmatpush1.bf16.msra.mxu0 %v344
      %370 = vmatprep.subr.bf16.mxu0 0
      %371 = vmatpush1.bf16.msra.mxu0 %v345
      %372 = vmatprep.subr.bf16.mxu0 0
      %373 = vmatpush1.bf16.msra.mxu0 %v346
      %374 = vmatprep.subr.bf16.mxu0 0
      %375 = vmatpush1.bf16.msra.mxu0 %v347
      %376 = vmatprep.subr.bf16.mxu0 0
      %377 = vmatpush1.bf16.msra.mxu0 %v348
      %378 = vmatprep.subr.bf16.mxu0 0
      %379 = vmatpush1.bf16.msra.mxu0 %v349
      %380 = vmatprep.subr.bf16.mxu0 0
      %381 = vmatpush1.bf16.msra.mxu0 %v350
      %382 = vmatprep.subr.bf16.mxu0 0
      %383 = vmatpush1.bf16.msra.mxu0 0
      %384 = vmatprep.subr.bf16.mxu0 0
      %385 = vmatpush1.bf16.msra.mxu0 0
      %386 = vmatprep.subr.bf16.mxu0 0
      %387 = vmatpush1.bf16.msra.mxu0 0
      %388 = vmatprep.subr.bf16.mxu0 0
      %389 = vmatpush1.bf16.msra.mxu0 0
      %390 = vmatprep.subr.bf16.mxu0 0
      %391 = vmatpush1.bf16.msra.mxu0 0
      %392 = vmatprep.subr.bf16.mxu0 0
      %393 = vmatpush1.bf16.msra.mxu0 0
      %394 = vmatprep.subr.bf16.mxu0 0
      %395 = vmatpush1.bf16.msra.mxu0 0
      %396 = vmatprep.mubr.bf16.mxu0 %v362
      %397 = vmatmul.mubr.bf16.gmra.mrb[0].mxu0 %v297
      %v398 = vpop.f32.mrb[0].mxu0
      %v399 = vadd.f32 0.0, %v398
      %v400 = vpop.f32.mrb[0].mxu0
      %v401 = vpop.f32.mrb[0].mxu0
      %v402 = vpop.f32.mrb[0].mxu0
      %403 = vdwg.mxu0
      %v440 = vunpack.c.l.b16 %v235
      %v441 = vunpack.c.l.b16 %v236
      %v442 = vunpack.c.l.b16 %v237
      %v443 = vunpack.c.l.b16 %v238
      %v444 = vunpack.c.l.b16 %v239
      %v445 = vunpack.c.l.b16 %v240
      %v446 = vunpack.c.l.b16 %v241
      %v447 = vunpack.c.l.b16 %v242
      %v448 = vunpack.c.l.b16 %v243
      %v449 = vunpack.c.l.b16 %v244
      %v450 = vunpack.c.l.b16 %v245
      %v451 = vunpack.c.l.b16 %v246
      %v452 = vunpack.c.l.b16 %v247
      %v453 = vunpack.c.l.b16 %v248
      %v454 = vunpack.c.l.b16 %v249
      %v455 = vunpack.c.l.b16 %v250
      %v456 = vunpack.c.l.b16 %v251
      %v457 = vunpack.c.l.b16 %v252
      %v458 = vunpack.c.l.b16 %v253
      %v459 = vunpack.c.l.b16 %v254
      %v460 = vunpack.c.l.b16 %v255
      %v461 = vunpack.c.l.b16 %v256
      %v462 = vunpack.c.l.b16 %v257
      %v463 = vunpack.c.l.b16 %v258
      %v464 = vunpack.c.l.b16 %v259
      %v465 = vunpack.c.l.b16 %v260
      %v466 = vunpack.c.l.b16 %v261
      %v467 = vunpack.c.l.b16 %v262
      %v468 = vunpack.c.l.b16 %v263
      %v469 = vunpack.c.l.b16 %v264
      %v470 = vunpack.c.l.b16 %v265
      %v471 = vunpack.c.l.b16 %v266
      %v472 = vunpack.c.l.b16 %v267
      %v473 = vunpack.c.l.b16 %v268
      %v474 = vunpack.c.l.b16 %v269
      %v475 = vunpack.c.l.b16 %v270
      %v476 = vpack.c.b16 %v441, %v440
      %v477 = vpack.c.b16 %v443, %v442
      %v478 = vpack.c.b16 %v445, %v444
      %v479 = vpack.c.b16 %v447, %v446
      %v480 = vpack.c.b16 %v449, %v448
      %v481 = vpack.c.b16 %v451, %v450
      %v482 = vpack.c.b16 %v453, %v452
      %v483 = vpack.c.b16 %v455, %v454
      %v484 = vpack.c.b16 %v457, %v456
      %v485 = vpack.c.b16 %v459, %v458
      %v486 = vpack.c.b16 %v461, %v460
      %v487 = vpack.c.b16 %v463, %v462
      %v488 = vpack.c.b16 %v465, %v464
      %v489 = vpack.c.b16 %v467, %v466
      %v490 = vpack.c.b16 %v469, %v468
      %v491 = vpack.c.b16 %v471, %v470
      %v492 = vpack.c.b16 %v473, %v472
      %v493 = vpack.c.b16 %v475, %v474
      %vm512 = vcmask 261120
      %v514 = vsel %vm512, %v234, 0
      %516 = vmatprep.subr.bf16.mxu0 0
      %517 = vmatpush1.bf16.msra.mxu0 %v476
      %518 = vmatprep.subr.bf16.mxu0 0
      %519 = vmatpush1.bf16.msra.mxu0 %v477
      %520 = vmatprep.subr.bf16.mxu0 0
      %521 = vmatpush1.bf16.msra.mxu0 %v478
      %522 = vmatprep.subr.bf16.mxu0 0
      %523 = vmatpush1.bf16.msra.mxu0 %v479
      %524 = vmatprep.subr.bf16.mxu0 0
      %525 = vmatpush1.bf16.msra.mxu0 %v480
      %526 = vmatprep.subr.bf16.mxu0 0
      %527 = vmatpush1.bf16.msra.mxu0 %v481
      %528 = vmatprep.subr.bf16.mxu0 0
      %529 = vmatpush1.bf16.msra.mxu0 %v482
      %530 = vmatprep.subr.bf16.mxu0 0
      %531 = vmatpush1.bf16.msra.mxu0 %v483
      %532 = vmatprep.subr.bf16.mxu0 0
      %533 = vmatpush1.bf16.msra.mxu0 %v484
      %534 = vmatprep.subr.bf16.mxu0 0
      %535 = vmatpush1.bf16.msra.mxu0 %v485
      %536 = vmatprep.subr.bf16.mxu0 0
      %537 = vmatpush1.bf16.msra.mxu0 %v486
      %538 = vmatprep.subr.bf16.mxu0 0
      %539 = vmatpush1.bf16.msra.mxu0 %v487
      %540 = vmatprep.subr.bf16.mxu0 0
      %541 = vmatpush1.bf16.msra.mxu0 %v488
      %542 = vmatprep.subr.bf16.mxu0 0
      %543 = vmatpush1.bf16.msra.mxu0 %v489
      %544 = vmatprep.subr.bf16.mxu0 0
      %545 = vmatpush1.bf16.msra.mxu0 %v490
      %546 = vmatprep.subr.bf16.mxu0 0
      %547 = vmatpush1.bf16.msra.mxu0 %v491
      %548 = vmatprep.mubr.bf16.mxu0 %v233
      %549 = vmatmul.mubr.bf16.gmra.mrb[0].mxu0 %v232
      %v550 = vpop.f32.mrb[0].mxu0
      %v551 = vadd.f32 %v399, %v550
      %v552 = vpop.f32.mrb[0].mxu0
      %v553 = vpop.f32.mrb[0].mxu0
      %v554 = vpop.f32.mrb[0].mxu0
      %555 = vdwg.mxu0
      %556 = vmatprep.subr.bf16.mxu0 0
      %557 = vmatpush1.bf16.msra.mxu0 %v492
      %558 = vmatprep.subr.bf16.mxu0 0
      %559 = vmatpush1.bf16.msra.mxu0 %v493
      %560 = vmatprep.subr.bf16.mxu0 0
      %561 = vmatpush1.bf16.msra.mxu0 0
      %562 = vmatprep.subr.bf16.mxu0 0
      %563 = vmatpush1.bf16.msra.mxu0 0
      %564 = vmatprep.subr.bf16.mxu0 0
      %565 = vmatpush1.bf16.msra.mxu0 0
      %566 = vmatprep.subr.bf16.mxu0 0
      %567 = vmatpush1.bf16.msra.mxu0 0
      %568 = vmatprep.subr.bf16.mxu0 0
      %569 = vmatpush1.bf16.msra.mxu0 0
      %570 = vmatprep.subr.bf16.mxu0 0
      %571 = vmatpush1.bf16.msra.mxu0 0
      %572 = vmatprep.subr.bf16.mxu0 0
      %573 = vmatpush1.bf16.msra.mxu0 0
      %574 = vmatprep.subr.bf16.mxu0 0
      %575 = vmatpush1.bf16.msra.mxu0 0
      %576 = vmatprep.subr.bf16.mxu0 0
      %577 = vmatpush1.bf16.msra.mxu0 0
      %578 = vmatprep.subr.bf16.mxu0 0
      %579 = vmatpush1.bf16.msra.mxu0 0
      %580 = vmatprep.subr.bf16.mxu0 0
      %581 = vmatpush1.bf16.msra.mxu0 0
      %582 = vmatprep.subr.bf16.mxu0 0
      %583 = vmatpush1.bf16.msra.mxu0 0
      %584 = vmatprep.subr.bf16.mxu0 0
      %585 = vmatpush1.bf16.msra.mxu0 0
      %586 = vmatprep.subr.bf16.mxu0 0
      %587 = vmatpush1.bf16.msra.mxu0 0
      %588 = vmatprep.mubr.bf16.mxu0 0
      %589 = vmatmul.mubr.bf16.gmra.mrb[0].mxu0 %v514
      %v590 = vpop.f32.mrb[0].mxu0
      %v591 = vadd.f32 %v551, %v590
      %v592 = vpop.f32.mrb[0].mxu0
      %v593 = vpop.f32.mrb[0].mxu0
      %v594 = vpop.f32.mrb[0].mxu0
      %595 = vdwg.mxu0
      %v596 = vld [vmem:[%s3] sm:$0x1]
      %v598 = vlaneseq
      %v599 = vshrl.u32 %v598, 7
      %v600 = vsub.s32 0, %v599
      %v601 = vrot.slane %v596, %v600
      %v603 = vadd.f32 %v591, %v601
      %vm604 = vcmp.ge.f32.partialorder %v603, 0.0
      %v605 = vld [vmem:[%s4] sm:$0x1]
      %v607 = vlaneseq
      %v608 = vshrl.u32 %v607, 7
      %v609 = vsub.s32 0, %v608
      %v610 = vrot.slane %v605, %v609
      %v612 = vmul.f32 %v610, %v603
      %v613 = vsel %vm604, %v603, %v612
      %v614 = vpack.c.bf16 %v613, %v613
      %vm615 = vcmask 519168
      %616 = vst.msk [vmem:[%s222] sm:$0xf] %vm615, %v614
      %p617 = scmp.lt.s32.totalorder %s16, 1
      %s618 = scalar_select %p617, %s16, 1
      %s619 = smul.addr %s618, 4
      %s620 = scalar_lea.vmem %s5, %s619
      // Predicated region
      $region41: #{fwd.6} parent=39 // pred_check
        %p621 = pneg %p144
      $region42: #{fwd.6} parent=39 // pred_check_branch
        %623 = sbr.rel (%p621) target = $region44
      $region43: #{fwd.6} parent=39 // pred_region
        _
      $region44: #{fwd.6} parent=39 // pred_fallthru
        _
    $region40: #{fwd.6} parent=5 // pred_fallthru
      _
    %p624 = scmp.le.s32.totalorder 2, %s11
    // Predicated region
    $region45: #{fwd.6} parent=5 // pred_check
      %p625 = pneg %p624
    $region46: #{fwd.6} parent=5 // pred_check_branch
      %627 = sbr.rel (%p625) target = $region48
    $region47: #{fwd.6} parent=5 // pred_region
      %s628 = ssub.s32 %s11, 2
      // Predicated region
      $region49: #{fwd.6} parent=47 // pred_check
        %p629 = pneg %p150
      $region50: #{fwd.6} parent=47 // pred_check_branch
        %631 = sbr.rel (%p629) target = $region52
      $region51: #{fwd.6} parent=47 // pred_region
        %p632 = scmp.lt.s32.totalorder %s17, 1
        %s633 = scalar_select %p632, %s17, 1
        %s634 = smul.addr %s633, 4
        %s635 = scalar_lea.vmem %s5, %s634
      $region52: #{fwd.6} parent=47 // pred_fallthru
        _
    $region48: #{fwd.6} parent=5 // pred_fallthru
      _
  $region6: #{fwd.6} parent=0 // loop_footer
    %s15 = sadd.s32 1, %s11
  $region7: #{fwd.6} parent=0 // loop_footer_branch
    %10 = sbr.rel target = $region3
  $region8: #{fwd.6} parent=0 // loop_exit
    _

// kernel: fwd.5
$region0: #{fwd.5}
  #allocation0 [shape = 'u32[]', space=smem, size = 0x4, offset = 0x4, fixed_abs, tag = 'smem constant byte address 0x4 - core index']
  #allocation1 [shape = 'u32[144,128]{1,0:T(1,128)}', space=vmem, size = 0x12000, scoped, tag = 'internal scratch']
  #allocation2 [shape = 'f32[18,144]{1,0:T(8,128)}', space=vmem, size = 0x6000, scoped, tag = 'scratch operand']
  #allocation3 [shape = 'f32[18,144]{1,0:T(8,128)}', space=vmem, size = 0x6000, scoped, tag = 'scratch operand']
  %s0 = inlined_call_operand.vmem [shape: bf16[2,16,128], index: 0, kind: input, shape index: {}]
  %s1 = inlined_call_operand.vmem [shape: bf16[6,144,128], index: 1, kind: input, shape index: {}]
  %s2 = inlined_call_operand.vmem [shape: f32[2,1,128], index: 2, kind: input, shape index: {}]
  %s3 = inlined_call_operand.vmem [shape: bf16[2,18,144], index: 3, kind: output, shape index: {}]
  %s4 = sld [smem:[#allocation0]]
  $region45: #{fwd.5} parent=0
    _
  %s6 = ssub.s32 1, %s4
  %s7 = scalar_select 0, %s6, %s4
  loop: start=0, step=1, limit=4
  $region2: #{fwd.5} parent=0 // loop_pre_header
    _
  $region3: #{fwd.5} parent=0 // loop_header
    %s9 = sphi 0, %s13
    %p10 = scmp.ge.s32.totalorder %s9, 4
    %s19 = sphi 0, %s21
    %s22 = sphi 0, %s19
    %s23 = sphi 0, %s22
    %s39 = sphi 0, %s23
    %s43 = sphi 0, %s43
    %s45 = sphi 0, %s43
    %s46 = sphi 0, %s45
    %s60 = sphi 0, %s46
    %s64 = sphi 0, %s64
    %s66 = sphi 0, %s64
    %s67 = sphi 0, %s66
    %s81 = sphi 0, %s67
    %s87 = sphi 0, %s89
    %s90 = sphi 0, %s87
    %s91 = sphi 0, %s90
    %s107 = sphi 0, %s91
  $region4: #{fwd.5} parent=0 // loop_header_branch
    %12 = sbr.rel (%p10) target = $region8
  $region5: #{fwd.5} parent=0 // loop_body
    %s14 = ssub.s32 %s9, 1
    %s15 = ssub.s32 %s9, 2
    %s16 = sadd.s32 %s9, 1
    %s17 = ssub.s32 %s9, %s16
    %p18 = scmp.eq.s32.totalorder %s17, 0
    %s20 = sadd.s32 %s19, 1
    %s21 = scalar_select %p18, %s19, %s20
    %p24 = pneg %p18
    %p25 = scmp.eq.s32.totalorder %s9, 1
    %p26 = por %p24, %p25
    %p27 = scmp.ne.s32.totalorder %s19, %s22
    %p28 = scmp.eq.s32.totalorder %s9, 0
    %p29 = por %p27, %p28
    %p30 = scmp.ne.s32.totalorder %s19, %s22
    %p31 = scmp.eq.s32.totalorder %s14, 1
    %p32 = por %p30, %p31
    %p33 = scmp.ne.s32.totalorder %s22, %s23
    %p34 = scmp.eq.s32.totalorder %s14, 0
    %p35 = por %p33, %p34
    %p36 = scmp.ne.s32.totalorder %s22, %s23
    %p37 = scmp.eq.s32.totalorder %s15, 1
    %p38 = por %p36, %p37
    %p40 = scmp.ne.s32.totalorder %s23, %s39
    %p41 = scmp.eq.s32.totalorder %s15, 0
    %p42 = por %p40, %p41
    %s44 = sadd.s32 %s43, 1
    %p47 = scmp.eq.s32.totalorder %s9, 1
    %p48 = scmp.ne.s32.totalorder %s43, %s45
    %p49 = scmp.eq.s32.totalorder %s9, 0
    %p50 = por %p48, %p49
    %p51 = scmp.ne.s32.totalorder %s43, %s45
    %p52 = scmp.eq.s32.totalorder %s14, 1
    %p53 = por %p51, %p52
    %p54 = scmp.ne.s32.totalorder %s45, %s46
    %p55 = scmp.eq.s32.totalorder %s14, 0
    %p56 = por %p54, %p55
    %p57 = scmp.ne.s32.totalorder %s45, %s46
    %p58 = scmp.eq.s32.totalorder %s15, 1
    %p59 = por %p57, %p58
    %p61 = scmp.ne.s32.totalorder %s46, %s60
    %p62 = scmp.eq.s32.totalorder %s15, 0
    %p63 = por %p61, %p62
    %s65 = sadd.s32 %s64, 1
    %p68 = scmp.eq.s32.totalorder %s9, 1
    %p69 = scmp.ne.s32.totalorder %s64, %s66
    %p70 = scmp.eq.s32.totalorder %s9, 0
    %p71 = por %p69, %p70
    %p72 = scmp.ne.s32.totalorder %s64, %s66
    %p73 = scmp.eq.s32.totalorder %s14, 1
    %p74 = por %p72, %p73
    %p75 = scmp.ne.s32.totalorder %s66, %s67
    %p76 = scmp.eq.s32.totalorder %s14, 0
    %p77 = por %p75, %p76
    %p78 = scmp.ne.s32.totalorder %s66, %s67
    %p79 = scmp.eq.s32.totalorder %s15, 1
    %p80 = por %p78, %p79
    %p82 = scmp.ne.s32.totalorder %s67, %s81
    %p83 = scmp.eq.s32.totalorder %s15, 0
    %p84 = por %p82, %p83
    %s85 = ssub.s32 %s9, %s16
    %p86 = scmp.eq.s32.totalorder %s85, 0
    %s88 = sadd.s32 %s87, 1
    %s89 = scalar_select %p86, %s87, %s88
    %p92 = pneg %p86
    %p93 = scmp.eq.s32.totalorder %s9, 1
    %p94 = por %p92, %p93
    %p95 = scmp.ne.s32.totalorder %s87, %s90
    %p96 = scmp.eq.s32.totalorder %s9, 0
    %p97 = por %p95, %p96
    %p98 = scmp.ne.s32.totalorder %s87, %s90
    %p99 = scmp.eq.s32.totalorder %s14, 1
    %p100 = por %p98, %p99
    %p101 = scmp.ne.s32.totalorder %s90, %s91
    %p102 = scmp.eq.s32.totalorder %s14, 0
    %p103 = por %p101, %p102
    %p104 = scmp.ne.s32.totalorder %s90, %s91
    %p105 = scmp.eq.s32.totalorder %s15, 1
    %p106 = por %p104, %p105
    %p108 = scmp.ne.s32.totalorder %s91, %s107
    %p109 = scmp.eq.s32.totalorder %s15, 0
    %p110 = por %p108, %p109
    %p111 = scmp.le.s32.totalorder 1, %s9
    %p112 = scmp.lt.s32.totalorder %s9, 3
    %p113 = pnand %p111, %p112
    %p114 = pneg %p113
    // Predicated region
    $region9: #{fwd.5} parent=5 // pred_check
      _
    $region10: #{fwd.5} parent=5 // pred_check_branch
      %116 = sbr.rel (%p113) target = $region12
    $region11: #{fwd.5} parent=5 // pred_region
      %s117 = ssub.s32 %s9, 1
      // Predicated region
      $region13: #{fwd.5} parent=11 // pred_check
        %p118 = pneg %p56
      $region14: #{fwd.5} parent=11 // pred_check_branch
        %120 = sbr.rel (%p118) target = $region16
      $region15: #{fwd.5} parent=11 // pred_region
        _
      $region16: #{fwd.5} parent=11 // pred_fallthru
        _
      // Predicated region
      $region17: #{fwd.5} parent=11 // pred_check
        %p121 = pneg %p77
      $region18: #{fwd.5} parent=11 // pred_check_branch
        %123 = sbr.rel (%p121) target = $region20
      $region19: #{fwd.5} parent=11 // pred_region
        _
      $region20: #{fwd.5} parent=11 // pred_fallthru
        _
    $region12: #{fwd.5} parent=5 // pred_fallthru
      _
    %p124 = scmp.lt.s32.totalorder %s9, 2
    // Predicated region
    $region21: #{fwd.5} parent=5 // pred_check
      %p125 = pneg %p124
    $region22: #{fwd.5} parent=5 // pred_check_branch
      %127 = sbr.rel (%p125) target = $region24
    $region23: #{fwd.5} parent=5 // pred_region
      // Predicated region
      $region25: #{fwd.5} parent=23 // pred_check
        %p128 = pneg %p29
      $region26: #{fwd.5} parent=23 // pred_check_branch
        %130 = sbr.rel (%p128) target = $region28
      $region27: #{fwd.5} parent=23 // pred_region
        %p131 = scmp.lt.s32.totalorder %s9, 1
        %s132 = scalar_select %p131, %s9, 1
        %s133 = smul.addr %s132, 2
        %s134 = smul.addr %s133, 4
        %s135 = scalar_lea.vmem %s0, %s134
      $region28: #{fwd.5} parent=23 // pred_fallthru
        _
    $region24: #{fwd.5} parent=5 // pred_fallthru
      _
    %p136 = scmp.le.s32.totalorder 1, %s9
    %p137 = scmp.lt.s32.totalorder %s9, 3
    %p138 = pnand %p136, %p137
    %p139 = pneg %p138
    // Predicated region
    $region29: #{fwd.5} parent=5 // pred_check
      _
    $region30: #{fwd.5} parent=5 // pred_check_branch
      %141 = sbr.rel (%p138) target = $region32
    $region31: #{fwd.5} parent=5 // pred_region
      %s142 = ssub.s32 %s9, 1
      %p143 = scmp.lt.s32.totalorder %s14, 1
      %s144 = scalar_select %p143, %s14, 1
      %s145 = smul.addr %s144, 2
      %s146 = smul.addr %s145, 4
      %s147 = scalar_lea.vmem %s0, %s146
      %p148 = pneg %p35
      %p149 = pneg %p32
      %p150 = pneg %p56
      %p151 = pneg %p53
      %p152 = pneg %p77
      %p153 = pneg %p74
      %p154 = pneg %p103
      %p155 = pneg %p100
      %p156 = scmp.lt.s32.totalorder %s14, 1
      %s157 = scalar_select %p156, %s14, 1
      %s158 = smul.addr %s157, 6
      %s159 = smul.addr %s158, 4
      %s160 = scalar_lea.vmem %s3, %s159
      %p161 = scmp.lt.s32.totalorder %s14, 1
      %s162 = scalar_select %p161, %s14, 1
      %s163 = smul.addr %s162, 2
      %s164 = smul.addr %s163, 4
      %s165 = scalar_lea.vmem %s0, %s164
      %p166 = scmp.lt.s32.totalorder %s14, 1
      %s167 = scalar_select %p166, %s14, 1
      %s168 = smul.addr %s167, 6
      %s169 = smul.addr %s168, 4
      %s170 = scalar_lea.vmem %s3, %s169
      %172 = vst [vmem:[#allocation2] sm:$0xff] 0.0
      %vm173 = vcmask 130048
      %174 = vst.msk [vmem:[#allocation2 + $0x8] sm:$0xff] %vm173, 0.0
      %175 = vst [vmem:[#allocation2 + $0x10] sm:$0xff] 0.0
      %176 = vst.msk [vmem:[#allocation2 + $0x18] sm:$0xff] %vm173, 0.0
      %177 = vst [vmem:[#allocation2 + $0x20] sm:$0x3] 0.0
      %vm178 = vcmask 123904
      %179 = vst.msk [vmem:[#allocation2 + $0x28] sm:$0x3] %vm178, 0.0
      %180 = vst [vmem:[#allocation3] sm:$0xff] 0.0
      %181 = vst.msk [vmem:[#allocation3 + $0x8] sm:$0xff] %vm173, 0.0
      %182 = vst [vmem:[#allocation3 + $0x10] sm:$0xff] 0.0
      %183 = vst.msk [vmem:[#allocation3 + $0x18] sm:$0xff] %vm173, 0.0
      %184 = vst [vmem:[#allocation3 + $0x20] sm:$0x3] 0.0
      %185 = vst.msk [vmem:[#allocation3 + $0x28] sm:$0x3] %vm178, 0.0
      %v186 = vld [vmem:[%s165] sm:$0xf]
      %v187 = vld [vmem:[%s165 + $0x4] sm:$0xf]
      %v188 = vunpack.c.l.bf16 %v186
      %v189 = vunpack.c.l.bf16 %v187
      %vm192 = vcmask 1040384
      %v193 = vrot.slane %v188, 7
      %v194 = vrot.slane %v189, 7
      %v195 = vsel %vm192, %v193, %v194
      %196 = vrot.lane.b32.xlu0 %v193, 8
      %v197 = vpop.permute.xlu0 %196
      %198 = vrot.lane.b32.xlu0 %v195, 8
      %v199 = vpop.permute.xlu0 %198
      %200 = vrot.lane.b32.xlu0 %v194, 8
      %v201 = vpop.permute.xlu0 %200
      %vm205 = vcmask 1047617
      %206 = vst.msk [vmem:[#allocation2] sm:$0xfe] %vm205, %v197
      %vm207 = vcmask 64513
      %208 = vst.msk [vmem:[#allocation2 + $0x8] sm:$0xfe] %vm207, %v197
      %vm209 = vcmask 1047616
      %210 = vst.msk [vmem:[#allocation2 + $0x10] sm:$0xff] %vm209, %v199
      %vm211 = vcmask 64512
      %212 = vst.msk [vmem:[#allocation2 + $0x18] sm:$0xff] %vm211, %v199
      %vm213 = vcmask 1040448
      %214 = vst.msk [vmem:[#allocation2 + $0x20] sm:$0x1] %vm213, %v201
      %vm215 = vcmask 57344
      %216 = vst.msk [vmem:[#allocation2 + $0x28] sm:$0x1] %vm215, %v201
      %v217 = vld [vmem:[#allocation2] sm:$0xff]
      %v218 = vld [vmem:[#allocation2 + $0x8] sm:$0xff]
      %v219 = vld [vmem:[#allocation2 + $0x10] sm:$0xff]
      %v220 = vld [vmem:[#allocation2 + $0x18] sm:$0xff]
      %v221 = vpack.c.bf16 %v219, %v217
      %v222 = vpack.c.bf16 %v220, %v218
      %v223 = vld [vmem:[%s1] sm:$0xf]
      %v224 = vld [vmem:[%s1 + $0x4] sm:$0xf]
      %v225 = vld [vmem:[%s1 + $0x8] sm:$0xf]
      %v226 = vld [vmem:[%s1 + $0xc] sm:$0xf]
      %v227 = vld [vmem:[%s1 + $0x10] sm:$0xf]
      %v228 = vld [vmem:[%s1 + $0x14] sm:$0xf]
      %v229 = vld [vmem:[%s1 + $0x18] sm:$0xf]
      %v230 = vld [vmem:[%s1 + $0x1c] sm:$0xf]
      %v231 = vld [vmem:[%s1 + $0x20] sm:$0xf]
      %v232 = vld [vmem:[%s1 + $0x24] sm:$0xf]
      %v233 = vld [vmem:[%s1 + $0x28] sm:$0xf]
      %v234 = vld [vmem:[%s1 + $0x2c] sm:$0xf]
      %v235 = vld [vmem:[%s1 + $0x30] sm:$0xf]
      %v236 = vld [vmem:[%s1 + $0x34] sm:$0xf]
      %v237 = vld [vmem:[%s1 + $0x38] sm:$0xf]
      %v238 = vld [vmem:[%s1 + $0x3c] sm:$0xf]
      %v239 = vld [vmem:[%s1 + $0x40] sm:$0xf]
      %v240 = vld [vmem:[%s1 + $0x44] sm:$0xf]
      %v241 = vld [vmem:[#allocation2] sm:$0xfe]
      %v242 = vld [vmem:[#allocation2 + $0x8] sm:$0xfe]
      %v243 = vld [vmem:[#allocation2 + $0x20] sm:$0x1]
      %v244 = vld [vmem:[#allocation2 + $0x28] sm:$0x1]
      %v245 = vpack.c.bf16 %v219, %v241
      %v246 = vpack.c.bf16 %v220, %v242
      %v247 = vpack.c.bf16 %v243, %v243
      %v248 = vpack.c.bf16 %v244, %v244
      %s249 = scalar_lea.vmem %s1, 72
      %v250 = vld [vmem:[%s249] sm:$0xf]
      %v251 = vld [vmem:[%s249 + $0x4] sm:$0xf]
      %v252 = vld [vmem:[%s249 + $0x8] sm:$0xf]
      %v253 = vld [vmem:[%s249 + $0xc] sm:$0xf]
      %v254 = vld [vmem:[%s249 + $0x10] sm:$0xf]
      %v255 = vld [vmem:[%s249 + $0x14] sm:$0xf]
      %v256 = vld [vmem:[%s249 + $0x18] sm:$0xf]
      %v257 = vld [vmem:[%s249 + $0x1c] sm:$0xf]
      %v258 = vld [vmem:[%s249 + $0x20] sm:$0xf]
      %v259 = vld [vmem:[%s249 + $0x24] sm:$0xf]
      %v260 = vld [vmem:[%s249 + $0x28] sm:$0xf]
      %v261 = vld [vmem:[%s249 + $0x2c] sm:$0xf]
      %v262 = vld [vmem:[%s249 + $0x30] sm:$0xf]
      %v263 = vld [vmem:[%s249 + $0x34] sm:$0xf]
      %v264 = vld [vmem:[%s249 + $0x38] sm:$0xf]
      %v265 = vld [vmem:[%s249 + $0x3c] sm:$0xf]
      %v266 = vld [vmem:[%s249 + $0x40] sm:$0xf]
      %v267 = vld [vmem:[%s249 + $0x44] sm:$0xf]
      %vm268 = vsmask.f32 7424
      %v270 = vshrl.u32 %v245, 16
      %v272 = vshll.u32 %v245, 16
      %v274 = vrot.slane %v272, 1
      %v275 = vor.u32 %v270, %v274
      %v277 = vshll.u32 %v247, 16
      %v279 = vrot.slane %v277, 1
      %v280 = vsel %vm268, %v275, %v279
      %v282 = vshrl.u32 %v246, 16
      %v284 = vshll.u32 %v246, 16
      %v286 = vrot.slane %v284, 1
      %v287 = vor.u32 %v282, %v286
      %v289 = vshll.u32 %v248, 16
      %v291 = vrot.slane %v289, 1
      %v292 = vsel %vm268, %v287, %v291
      %v312 = vunpack.c.l.b16 %v250
      %v313 = vunpack.c.l.b16 %v251
      %v314 = vunpack.c.l.b16 %v252
      %v315 = vunpack.c.l.b16 %v253
      %v316 = vunpack.c.l.b16 %v254
      %v317 = vunpack.c.l.b16 %v255
      %v318 = vunpack.c.l.b16 %v256
      %v319 = vunpack.c.l.b16 %v257
      %v320 = vunpack.c.l.b16 %v258
      %v321 = vunpack.c.l.b16 %v259
      %v322 = vunpack.c.l.b16 %v260
      %v323 = vunpack.c.l.b16 %v261
      %v324 = vunpack.c.l.b16 %v262
      %v325 = vunpack.c.l.b16 %v263
      %v326 = vunpack.c.l.b16 %v264
      %v327 = vunpack.c.l.b16 %v265
      %v328 = vunpack.c.l.b16 %v266
      %v329 = vunpack.c.l.b16 %v267
      %v330 = vpack.c.b16 %v313, %v312
      %v331 = vpack.c.b16 %v315, %v314
      %v332 = vpack.c.b16 %v317, %v316
      %v333 = vpack.c.b16 %v319, %v318
      %v334 = vpack.c.b16 %v321, %v320
      %v335 = vpack.c.b16 %v323, %v322
      %v336 = vpack.c.b16 %v325, %v324
      %v337 = vpack.c.b16 %v327, %v326
      %v338 = vpack.c.b16 %v329, %v328
      %v349 = vsel %vm173, %v292, 0
      %351 = vmatprep.subr.bf16.mxu0 0
      %352 = vmatpush1.bf16.msra.mxu0 %v330
      %353 = vmatprep.subr.bf16.mxu0 0
      %354 = vmatpush1.bf16.msra.mxu0 %v331
      %355 = vmatprep.subr.bf16.mxu0 0
      %356 = vmatpush1.bf16.msra.mxu0 %v332
      %357 = vmatprep.subr.bf16.mxu0 0
      %358 = vmatpush1.bf16.msra.mxu0 %v333
      %359 = vmatprep.subr.bf16.mxu0 0
      %360 = vmatpush1.bf16.msra.mxu0 %v334
      %361 = vmatprep.subr.bf16.mxu0 0
      %362 = vmatpush1.bf16.msra.mxu0 %v335
      %363 = vmatprep.subr.bf16.mxu0 0
      %364 = vmatpush1.bf16.msra.mxu0 %v336
      %365 = vmatprep.subr.bf16.mxu0 0
      %366 = vmatpush1.bf16.msra.mxu0 %v337
      %367 = vmatprep.subr.bf16.mxu0 0
      %368 = vmatpush1.bf16.msra.mxu0 %v338
      %369 = vmatprep.subr.bf16.mxu0 0
      %370 = vmatpush1.bf16.msra.mxu0 0
      %371 = vmatprep.subr.bf16.mxu0 0
      %372 = vmatpush1.bf16.msra.mxu0 0
      %373 = vmatprep.subr.bf16.mxu0 0
      %374 = vmatpush1.bf16.msra.mxu0 0
      %375 = vmatprep.subr.bf16.mxu0 0
      %376 = vmatpush1.bf16.msra.mxu0 0
      %377 = vmatprep.subr.bf16.mxu0 0
      %378 = vmatpush1.bf16.msra.mxu0 0
      %379 = vmatprep.subr.bf16.mxu0 0
      %380 = vmatpush1.bf16.msra.mxu0 0
      %381 = vmatprep.subr.bf16.mxu0 0
      %382 = vmatpush1.bf16.msra.mxu0 0
      %383 = vmatprep.mubr.bf16.mxu0 %v349
      %384 = vmatmul.mubr.bf16.gmra.mrb[0].mxu0 %v280
      %v385 = vpop.f32.mrb[0].mxu0
      %v386 = vadd.f32 0.0, %v385
      %v387 = vpop.f32.mrb[0].mxu0
      %v388 = vpop.f32.mrb[0].mxu0
      %v389 = vadd.f32 0.0, %v388
      %v390 = vpop.f32.mrb[0].mxu0
      %391 = vdwg.mxu0
      %v410 = vunpack.c.l.b16 %v223
      %v411 = vunpack.c.l.b16 %v224
      %v412 = vunpack.c.l.b16 %v225
      %v413 = vunpack.c.l.b16 %v226
      %v414 = vunpack.c.l.b16 %v227
      %v415 = vunpack.c.l.b16 %v228
      %v416 = vunpack.c.l.b16 %v229
      %v417 = vunpack.c.l.b16 %v230
      %v418 = vunpack.c.l.b16 %v231
      %v419 = vunpack.c.l.b16 %v232
      %v420 = vunpack.c.l.b16 %v233
      %v421 = vunpack.c.l.b16 %v234
      %v422 = vunpack.c.l.b16 %v235
      %v423 = vunpack.c.l.b16 %v236
      %v424 = vunpack.c.l.b16 %v237
      %v425 = vunpack.c.l.b16 %v238
      %v426 = vunpack.c.l.b16 %v239
      %v427 = vunpack.c.l.b16 %v240
      %v428 = vpack.c.b16 %v411, %v410
      %v429 = vpack.c.b16 %v413, %v412
      %v430 = vpack.c.b16 %v415, %v414
      %v431 = vpack.c.b16 %v417, %v416
      %v432 = vpack.c.b16 %v419, %v418
      %v433 = vpack.c.b16 %v421, %v420
      %v434 = vpack.c.b16 %v423, %v422
      %v435 = vpack.c.b16 %v425, %v424
      %v436 = vpack.c.b16 %v427, %v426
      %v447 = vsel %vm173, %v222, 0
      %449 = vmatprep.subr.bf16.mxu0 0
      %450 = vmatpush1.bf16.msra.mxu0 %v428
      %451 = vmatprep.subr.bf16.mxu0 0
      %452 = vmatpush1.bf16.msra.mxu0 %v429
      %453 = vmatprep.subr.bf16.mxu0 0
      %454 = vmatpush1.bf16.msra.mxu0 %v430
      %455 = vmatprep.subr.bf16.mxu0 0
      %456 = vmatpush1.bf16.msra.mxu0 %v431
      %457 = vmatprep.subr.bf16.mxu0 0
      %458 = vmatpush1.bf16.msra.mxu0 %v432
      %459 = vmatprep.subr.bf16.mxu0 0
      %460 = vmatpush1.bf16.msra.mxu0 %v433
      %461 = vmatprep.subr.bf16.mxu0 0
      %462 = vmatpush1.bf16.msra.mxu0 %v434
      %463 = vmatprep.subr.bf16.mxu0 0
      %464 = vmatpush1.bf16.msra.mxu0 %v435
      %465 = vmatprep.subr.bf16.mxu0 0
      %466 = vmatpush1.bf16.msra.mxu0 %v436
      %467 = vmatprep.subr.bf16.mxu0 0
      %468 = vmatpush1.bf16.msra.mxu0 0
      %469 = vmatprep.subr.bf16.mxu0 0
      %470 = vmatpush1.bf16.msra.mxu0 0
      %471 = vmatprep.subr.bf16.mxu0 0
      %472 = vmatpush1.bf16.msra.mxu0 0
      %473 = vmatprep.subr.bf16.mxu0 0
      %474 = vmatpush1.bf16.msra.mxu0 0
      %475 = vmatprep.subr.bf16.mxu0 0
      %476 = vmatpush1.bf16.msra.mxu0 0
      %477 = vmatprep.subr.bf16.mxu0 0
      %478 = vmatpush1.bf16.msra.mxu0 0
      %479 = vmatprep.subr.bf16.mxu0 0
      %480 = vmatpush1.bf16.msra.mxu0 0
      %481 = vmatprep.mubr.bf16.mxu0 %v447
      %482 = vmatmul.mubr.bf16.gmra.mrb[0].mxu0 %v221
      %v483 = vpop.f32.mrb[0].mxu0
      %v484 = vadd.f32 %v386, %v483
      %v485 = vpop.f32.mrb[0].mxu0
      %v486 = vpop.f32.mrb[0].mxu0
      %v487 = vadd.f32 %v389, %v486
      %v488 = vpop.f32.mrb[0].mxu0
      %489 = vdwg.mxu0
      %v490 = vld [vmem:[#allocation2] sm:$0xfc]
      %v491 = vld [vmem:[#allocation2 + $0x8] sm:$0xfc]
      %v492 = vld [vmem:[#allocation2 + $0x20] sm:$0x3]
      %v493 = vld [vmem:[#allocation2 + $0x28] sm:$0x3]
      %v494 = vpack.c.bf16 %v219, %v490
      %v495 = vpack.c.bf16 %v220, %v491
      %v496 = vpack.c.bf16 %v492, %v492
      %v497 = vpack.c.bf16 %v493, %v493
      %s498 = scalar_lea.vmem %s1, 144
      %v499 = vld [vmem:[%s498] sm:$0xf]
      %v500 = vld [vmem:[%s498 + $0x4] sm:$0xf]
      %v501 = vld [vmem:[%s498 + $0x8] sm:$0xf]
      %v502 = vld [vmem:[%s498 + $0xc] sm:$0xf]
      %v503 = vld [vmem:[%s498 + $0x10] sm:$0xf]
      %v504 = vld [vmem:[%s498 + $0x14] sm:$0xf]
      %v505 = vld [vmem:[%s498 + $0x18] sm:$0xf]
      %v506 = vld [vmem:[%s498 + $0x1c] sm:$0xf]
      %v507 = vld [vmem:[%s498 + $0x20] sm:$0xf]
      %v508 = vld [vmem:[%s498 + $0x24] sm:$0xf]
      %v509 = vld [vmem:[%s498 + $0x28] sm:$0xf]
      %v510 = vld [vmem:[%s498 + $0x2c] sm:$0xf]
      %v511 = vld [vmem:[%s498 + $0x30] sm:$0xf]
      %v512 = vld [vmem:[%s498 + $0x34] sm:$0xf]
      %v513 = vld [vmem:[%s498 + $0x38] sm:$0xf]
      %v514 = vld [vmem:[%s498 + $0x3c] sm:$0xf]
      %v515 = vld [vmem:[%s498 + $0x40] sm:$0xf]
      %v516 = vld [vmem:[%s498 + $0x44] sm:$0xf]
      %vm521 = vcmask 1046528
      %v522 = vrot.slane %v494, 1
      %v523 = vrot.slane %v496, 1
      %v524 = vsel %vm521, %v522, %v523
      %v525 = vrot.slane %v495, 1
      %v526 = vrot.slane %v497, 1
      %v527 = vsel %vm521, %v525, %v526
      %v547 = vunpack.c.l.b16 %v499
      %v548 = vunpack.c.l.b16 %v500
      %v549 = vunpack.c.l.b16 %v501
      %v550 = vunpack.c.l.b16 %v502
      %v551 = vunpack.c.l.b16 %v503
      %v552 = vunpack.c.l.b16 %v504
      %v553 = vunpack.c.l.b16 %v505
      %v554 = vunpack.c.l.b16 %v506
      %v555 = vunpack.c.l.b16 %v507
      %v556 = vunpack.c.l.b16 %v508
      %v557 = vunpack.c.l.b16 %v509
      %v558 = vunpack.c.l.b16 %v510
      %v559 = vunpack.c.l.b16 %v511
      %v560 = vunpack.c.l.b16 %v512
      %v561 = vunpack.c.l.b16 %v513
      %v562 = vunpack.c.l.b16 %v514
      %v563 = vunpack.c.l.b16 %v515
      %v564 = vunpack.c.l.b16 %v516
      %v565 = vpack.c.b16 %v548, %v547
      %v566 = vpack.c.b16 %v550, %v549
      %v567 = vpack.c.b16 %v552, %v551
      %v568 = vpack.c.b16 %v554, %v553
      %v569 = vpack.c.b16 %v556, %v555
      %v570 = vpack.c.b16 %v558, %v557
      %v571 = vpack.c.b16 %v560, %v559
      %v572 = vpack.c.b16 %v562, %v561
      %v573 = vpack.c.b16 %v564, %v563
      %v584 = vsel %vm173, %v527, 0
      %586 = vmatprep.subr.bf16.mxu0 0
      %587 = vmatpush1.bf16.msra.mxu0 %v565
      %588 = vmatprep.subr.bf16.mxu0 0
      %589 = vmatpush1.bf16.msra.mxu0 %v566
      %590 = vmatprep.subr.bf16.mxu0 0
      %591 = vmatpush1.bf16.msra.mxu0 %v567
      %592 = vmatprep.subr.bf16.mxu0 0
      %593 = vmatpush1.bf16.msra.mxu0 %v568
      %594 = vmatprep.subr.bf16.mxu0 0
      %595 = vmatpush1.bf16.msra.mxu0 %v569
      %596 = vmatprep.subr.bf16.mxu0 0
      %597 = vmatpush1.bf16.msra.mxu0 %v570
      %598 = vmatprep.subr.bf16.mxu0 0
      %599 = vmatpush1.bf16.msra.mxu0 %v571
      %600 = vmatprep.subr.bf16.mxu0 0
      %601 = vmatpush1.bf16.msra.mxu0 %v572
      %602 = vmatprep.subr.bf16.mxu0 0
      %603 = vmatpush1.bf16.msra.mxu0 %v573
      %604 = vmatprep.subr.bf16.mxu0 0
      %605 = vmatpush1.bf16.msra.mxu0 0
      %606 = vmatprep.subr.bf16.mxu0 0
      %607 = vmatpush1.bf16.msra.mxu0 0
      %608 = vmatprep.subr.bf16.mxu0 0
      %609 = vmatpush1.bf16.msra.mxu0 0
      %610 = vmatprep.subr.bf16.mxu0 0
      %611 = vmatpush1.bf16.msra.mxu0 0
      %612 = vmatprep.subr.bf16.mxu0 0
      %613 = vmatpush1.bf16.msra.mxu0 0
      %614 = vmatprep.subr.bf16.mxu0 0
      %615 = vmatpush1.bf16.msra.mxu0 0
      %616 = vmatprep.subr.bf16.mxu0 0
      %617 = vmatpush1.bf16.msra.mxu0 0
      %618 = vmatprep.mubr.bf16.mxu0 %v584
      %619 = vmatmul.mubr.bf16.gmra.mrb[0].mxu0 %v524
      %v620 = vpop.f32.mrb[0].mxu0
      %v621 = vadd.f32 0.0, %v620
      %v622 = vpop.f32.mrb[0].mxu0
      %v623 = vpop.f32.mrb[0].mxu0
      %v624 = vadd.f32 0.0, %v623
      %v625 = vpop.f32.mrb[0].mxu0
      %626 = vdwg.mxu0
      %v627 = vadd.f32 %v484, %v621
      %v628 = vadd.f32 %v487, %v624
      %v629 = vld [vmem:[%s2] sm:$0x1]
      %v631 = vlaneseq
      %v632 = vshrl.u32 %v631, 7
      %v633 = vsub.s32 0, %v632
      %v634 = vrot.slane %v629, %v633
      %v636 = vadd.f32 %v627, %v634
      %v637 = vadd.f32 %v628, %v634
      %v638 = vmax.f32 %v636, 0.0
      %v639 = vmax.f32 %v637, 0.0
      %v642 = vrot.slane %v638, 7
      %v643 = vrot.slane %v639, 7
      %v644 = vsel %vm192, %v642, %v643
      %645 = vrot.lane.b32.xlu0 %v642, 8
      %v646 = vpop.permute.xlu0 %645
      %647 = vrot.lane.b32.xlu0 %v644, 8
      %v648 = vpop.permute.xlu0 %647
      %649 = vrot.lane.b32.xlu0 %v643, 8
      %v650 = vpop.permute.xlu0 %649
      %654 = vst.msk [vmem:[#allocation3] sm:$0xfe] %vm205, %v646
      %655 = vst.msk [vmem:[#allocation3 + $0x8] sm:$0xfe] %vm207, %v646
      %656 = vst.msk [vmem:[#allocation3 + $0x10] sm:$0xff] %vm209, %v648
      %657 = vst.msk [vmem:[#allocation3 + $0x18] sm:$0xff] %vm211, %v648
      %658 = vst.msk [vmem:[#allocation3 + $0x20] sm:$0x1] %vm213, %v650
      %659 = vst.msk [vmem:[#allocation3 + $0x28] sm:$0x1] %vm215, %v650
      %v660 = vld [vmem:[#allocation3] sm:$0xff]
      %v661 = vld [vmem:[#allocation3 + $0x8] sm:$0xff]
      %v662 = vld [vmem:[#allocation3 + $0x10] sm:$0xff]
      %v663 = vld [vmem:[#allocation3 + $0x18] sm:$0xff]
      %v664 = vpack.c.bf16 %v662, %v660
      %v665 = vpack.c.bf16 %v663, %v661
      %s666 = scalar_lea.vmem %s1, 216
      %v667 = vld [vmem:[%s666] sm:$0xf]
      %v668 = vld [vmem:[%s666 + $0x4] sm:$0xf]
      %v669 = vld [vmem:[%s666 + $0x8] sm:$0xf]
      %v670 = vld [vmem:[%s666 + $0xc] sm:$0xf]
      %v671 = vld [vmem:[%s666 + $0x10] sm:$0xf]
      %v672 = vld [vmem:[%s666 + $0x14] sm:$0xf]
      %v673 = vld [vmem:[%s666 + $0x18] sm:$0xf]
      %v674 = vld [vmem:[%s666 + $0x1c] sm:$0xf]
      %v675 = vld [vmem:[%s666 + $0x20] sm:$0xf]
      %v676 = vld [vmem:[%s666 + $0x24] sm:$0xf]
      %v677 = vld [vmem:[%s666 + $0x28] sm:$0xf]
      %v678 = vld [vmem:[%s666 + $0x2c] sm:$0xf]
      %v679 = vld [vmem:[%s666 + $0x30] sm:$0xf]
      %v680 = vld [vmem:[%s666 + $0x34] sm:$0xf]
      %v681 = vld [vmem:[%s666 + $0x38] sm:$0xf]
      %v682 = vld [vmem:[%s666 + $0x3c] sm:$0xf]
      %v683 = vld [vmem:[%s666 + $0x40] sm:$0xf]
      %v684 = vld [vmem:[%s666 + $0x44] sm:$0xf]
      %v685 = vld [vmem:[#allocation3] sm:$0xfe]
      %v686 = vld [vmem:[#allocation3 + $0x8] sm:$0xfe]
      %v687 = vld [vmem:[#allocation3 + $0x20] sm:$0x1]
      %v688 = vld [vmem:[#allocation3 + $0x28] sm:$0x1]
      %v689 = vpack.c.bf16 %v662, %v685
      %v690 = vpack.c.bf16 %v663, %v686
      %v691 = vpack.c.bf16 %v687, %v687
      %v692 = vpack.c.bf16 %v688, %v688
      %s693 = scalar_lea.vmem %s1, 288
      %v694 = vld [vmem:[%s693] sm:$0xf]
      %v695 = vld [vmem:[%s693 + $0x4] sm:$0xf]
      %v696 = vld [vmem:[%s693 + $0x8] sm:$0xf]
      %v697 = vld [vmem:[%s693 + $0xc] sm:$0xf]
      %v698 = vld [vmem:[%s693 + $0x10] sm:$0xf]
      %v699 = vld [vmem:[%s693 + $0x14] sm:$0xf]
      %v700 = vld [vmem:[%s693 + $0x18] sm:$0xf]
      %v701 = vld [vmem:[%s693 + $0x1c] sm:$0xf]
      %v702 = vld [vmem:[%s693 + $0x20] sm:$0xf]
      %v703 = vld [vmem:[%s693 + $0x24] sm:$0xf]
      %v704 = vld [vmem:[%s693 + $0x28] sm:$0xf]
      %v705 = vld [vmem:[%s693 + $0x2c] sm:$0xf]
      %v706 = vld [vmem:[%s693 + $0x30] sm:$0xf]
      %v707 = vld [vmem:[%s693 + $0x34] sm:$0xf]
      %v708 = vld [vmem:[%s693 + $0x38] sm:$0xf]
      %v709 = vld [vmem:[%s693 + $0x3c] sm:$0xf]
      %v710 = vld [vmem:[%s693 + $0x40] sm:$0xf]
      %v711 = vld [vmem:[%s693 + $0x44] sm:$0xf]
      %v713 = vshrl.u32 %v689, 16
      %v715 = vshll.u32 %v689, 16
      %v717 = vrot.slane %v715, 1
      %v718 = vor.u32 %v713, %v717
      %v720 = vshll.u32 %v691, 16
      %v722 = vrot.slane %v720, 1
      %v723 = vsel %vm268, %v718, %v722
      %v725 = vshrl.u32 %v690, 16
      %v727 = vshll.u32 %v690, 16
      %v729 = vrot.slane %v727, 1
      %v730 = vor.u32 %v725, %v729
      %v732 = vshll.u32 %v692, 16
      %v734 = vrot.slane %v732, 1
      %v735 = vsel %vm268, %v730, %v734
      %v755 = vunpack.c.l.b16 %v694
      %v756 = vunpack.c.l.b16 %v695
      %v757 = vunpack.c.l.b16 %v696
      %v758 = vunpack.c.l.b16 %v697
      %v759 = vunpack.c.l.b16 %v698
      %v760 = vunpack.c.l.b16 %v699
      %v761 = vunpack.c.l.b16 %v700
      %v762 = vunpack.c.l.b16 %v701
      %v763 = vunpack.c.l.b16 %v702
      %v764 = vunpack.c.l.b16 %v703
      %v765 = vunpack.c.l.b16 %v704
      %v766 = vunpack.c.l.b16 %v705
      %v767 = vunpack.c.l.b16 %v706
      %v768 = vunpack.c.l.b16 %v707
      %v769 = vunpack.c.l.b16 %v708
      %v770 = vunpack.c.l.b16 %v709
      %v771 = vunpack.c.l.b16 %v710
      %v772 = vunpack.c.l.b16 %v711
      %v773 = vpack.c.b16 %v756, %v755
      %v774 = vpack.c.b16 %v758, %v757
      %v775 = vpack.c.b16 %v760, %v759
      %v776 = vpack.c.b16 %v762, %v761
      %v777 = vpack.c.b16 %v764, %v763
      %v778 = vpack.c.b16 %v766, %v765
      %v779 = vpack.c.b16 %v768, %v767
      %v780 = vpack.c.b16 %v770, %v769
      %v781 = vpack.c.b16 %v772, %v771
      %v792 = vsel %vm173, %v735, 0
      %794 = vmatprep.subr.bf16.mxu0 0
      %795 = vmatpush1.bf16.msra.mxu0 %v773
      %796 = vmatprep.subr.bf16.mxu0 0
      %797 = vmatpush1.bf16.msra.mxu0 %v774
      %798 = vmatprep.subr.bf16.mxu0 0
      %799 = vmatpush1.bf16.msra.mxu0 %v775
      %800 = vmatprep.subr.bf16.mxu0 0
      %801 = vmatpush1.bf16.msra.mxu0 %v776
      %802 = vmatprep.subr.bf16.mxu0 0
      %803 = vmatpush1.bf16.msra.mxu0 %v777
      %804 = vmatprep.subr.bf16.mxu0 0
      %805 = vmatpush1.bf16.msra.mxu0 %v778
      %806 = vmatprep.subr.bf16.mxu0 0
      %807 = vmatpush1.bf16.msra.mxu0 %v779
      %808 = vmatprep.subr.bf16.mxu0 0
      %809 = vmatpush1.bf16.msra.mxu0 %v780
      %810 = vmatprep.subr.bf16.mxu0 0
      %811 = vmatpush1.bf16.msra.mxu0 %v781
      %812 = vmatprep.subr.bf16.mxu0 0
      %813 = vmatpush1.bf16.msra.mxu0 0
      %814 = vmatprep.subr.bf16.mxu0 0
      %815 = vmatpush1.bf16.msra.mxu0 0
      %816 = vmatprep.subr.bf16.mxu0 0
      %817 = vmatpush1.bf16.msra.mxu0 0
      %818 = vmatprep.subr.bf16.mxu0 0
      %819 = vmatpush1.bf16.msra.mxu0 0
      %820 = vmatprep.subr.bf16.mxu0 0
      %821 = vmatpush1.bf16.msra.mxu0 0
      %822 = vmatprep.subr.bf16.mxu0 0
      %823 = vmatpush1.bf16.msra.mxu0 0
      %824 = vmatprep.subr.bf16.mxu0 0
      %825 = vmatpush1.bf16.msra.mxu0 0
      %826 = vmatprep.mubr.bf16.mxu0 %v792
      %827 = vmatmul.mubr.bf16.gmra.mrb[0].mxu0 %v723
      %v828 = vpop.f32.mrb[0].mxu0
      %v829 = vadd.f32 0.0, %v828
      %v830 = vpop.f32.mrb[0].mxu0
      %v831 = vpop.f32.mrb[0].mxu0
      %v832 = vadd.f32 0.0, %v831
      %v833 = vpop.f32.mrb[0].mxu0
      %834 = vdwg.mxu0
      %v853 = vunpack.c.l.b16 %v667
      %v854 = vunpack.c.l.b16 %v668
      %v855 = vunpack.c.l.b16 %v669
      %v856 = vunpack.c.l.b16 %v670
      %v857 = vunpack.c.l.b16 %v671
      %v858 = vunpack.c.l.b16 %v672
      %v859 = vunpack.c.l.b16 %v673
      %v860 = vunpack.c.l.b16 %v674
      %v861 = vunpack.c.l.b16 %v675
      %v862 = vunpack.c.l.b16 %v676
      %v863 = vunpack.c.l.b16 %v677
      %v864 = vunpack.c.l.b16 %v678
      %v865 = vunpack.c.l.b16 %v679
      %v866 = vunpack.c.l.b16 %v680
      %v867 = vunpack.c.l.b16 %v681
      %v868 = vunpack.c.l.b16 %v682
      %v869 = vunpack.c.l.b16 %v683
      %v870 = vunpack.c.l.b16 %v684
      %v871 = vpack.c.b16 %v854, %v853
      %v872 = vpack.c.b16 %v856, %v855
      %v873 = vpack.c.b16 %v858, %v857
      %v874 = vpack.c.b16 %v860, %v859
      %v875 = vpack.c.b16 %v862, %v861
      %v876 = vpack.c.b16 %v864, %v863
      %v877 = vpack.c.b16 %v866, %v865
      %v878 = vpack.c.b16 %v868, %v867
      %v879 = vpack.c.b16 %v870, %v869
      %v890 = vsel %vm173, %v665, 0
      %892 = vmatprep.subr.bf16.mxu0 0
      %893 = vmatpush1.bf16.msra.mxu0 %v871
      %894 = vmatprep.subr.bf16.mxu0 0
      %895 = vmatpush1.bf16.msra.mxu0 %v872
      %896 = vmatprep.subr.bf16.mxu0 0
      %897 = vmatpush1.bf16.msra.mxu0 %v873
      %898 = vmatprep.subr.bf16.mxu0 0
      %899 = vmatpush1.bf16.msra.mxu0 %v874
      %900 = vmatprep.subr.bf16.mxu0 0
      %901 = vmatpush1.bf16.msra.mxu0 %v875
      %902 = vmatprep.subr.bf16.mxu0 0
      %903 = vmatpush1.bf16.msra.mxu0 %v876
      %904 = vmatprep.subr.bf16.mxu0 0
      %905 = vmatpush1.bf16.msra.mxu0 %v877
      %906 = vmatprep.subr.bf16.mxu0 0
      %907 = vmatpush1.bf16.msra.mxu0 %v878
      %908 = vmatprep.subr.bf16.mxu0 0
      %909 = vmatpush1.bf16.msra.mxu0 %v879
      %910 = vmatprep.subr.bf16.mxu0 0
      %911 = vmatpush1.bf16.msra.mxu0 0
      %912 = vmatprep.subr.bf16.mxu0 0
      %913 = vmatpush1.bf16.msra.mxu0 0
      %914 = vmatprep.subr.bf16.mxu0 0
      %915 = vmatpush1.bf16.msra.mxu0 0
      %916 = vmatprep.subr.bf16.mxu0 0
      %917 = vmatpush1.bf16.msra.mxu0 0
      %918 = vmatprep.subr.bf16.mxu0 0
      %919 = vmatpush1.bf16.msra.mxu0 0
      %920 = vmatprep.subr.bf16.mxu0 0
      %921 = vmatpush1.bf16.msra.mxu0 0
      %922 = vmatprep.subr.bf16.mxu0 0
      %923 = vmatpush1.bf16.msra.mxu0 0
      %924 = vmatprep.mubr.bf16.mxu0 %v890
      %925 = vmatmul.mubr.bf16.gmra.mrb[0].mxu0 %v664
      %v926 = vpop.f32.mrb[0].mxu0
      %v927 = vadd.f32 %v829, %v926
      %v928 = vpop.f32.mrb[0].mxu0
      %v929 = vpop.f32.mrb[0].mxu0
      %v930 = vadd.f32 %v832, %v929
      %v931 = vpop.f32.mrb[0].mxu0
      %932 = vdwg.mxu0
      %v933 = vld [vmem:[#allocation3] sm:$0xfc]
      %v934 = vld [vmem:[#allocation3 + $0x8] sm:$0xfc]
      %v935 = vld [vmem:[#allocation3 + $0x20] sm:$0x3]
      %v936 = vld [vmem:[#allocation3 + $0x28] sm:$0x3]
      %v937 = vpack.c.bf16 %v662, %v933
      %v938 = vpack.c.bf16 %v663, %v934
      %v939 = vpack.c.bf16 %v935, %v935
      %v940 = vpack.c.bf16 %v936, %v936
      %s941 = scalar_lea.vmem %s1, 360
      %v942 = vld [vmem:[%s941] sm:$0xf]
      %v943 = vld [vmem:[%s941 + $0x4] sm:$0xf]
      %v944 = vld [vmem:[%s941 + $0x8] sm:$0xf]
      %v945 = vld [vmem:[%s941 + $0xc] sm:$0xf]
      %v946 = vld [vmem:[%s941 + $0x10] sm:$0xf]
      %v947 = vld [vmem:[%s941 + $0x14] sm:$0xf]
      %v948 = vld [vmem:[%s941 + $0x18] sm:$0xf]
      %v949 = vld [vmem:[%s941 + $0x1c] sm:$0xf]
      %v950 = vld [vmem:[%s941 + $0x20] sm:$0xf]
      %v951 = vld [vmem:[%s941 + $0x24] sm:$0xf]
      %v952 = vld [vmem:[%s941 + $0x28] sm:$0xf]
      %v953 = vld [vmem:[%s941 + $0x2c] sm:$0xf]
      %v954 = vld [vmem:[%s941 + $0x30] sm:$0xf]
      %v955 = vld [vmem:[%s941 + $0x34] sm:$0xf]
      %v956 = vld [vmem:[%s941 + $0x38] sm:$0xf]
      %v957 = vld [vmem:[%s941 + $0x3c] sm:$0xf]
      %v958 = vld [vmem:[%s941 + $0x40] sm:$0xf]
      %v959 = vld [vmem:[%s941 + $0x44] sm:$0xf]
      %v964 = vrot.slane %v937, 1
      %v965 = vrot.slane %v939, 1
      %v966 = vsel %vm521, %v964, %v965
      %v967 = vrot.slane %v938, 1
      %v968 = vrot.slane %v940, 1
      %v969 = vsel %vm521, %v967, %v968
      %v989 = vunpack.c.l.b16 %v942
      %v990 = vunpack.c.l.b16 %v943
      %v991 = vunpack.c.l.b16 %v944
      %v992 = vunpack.c.l.b16 %v945
      %v993 = vunpack.c.l.b16 %v946
      %v994 = vunpack.c.l.b16 %v947
      %v995 = vunpack.c.l.b16 %v948
      %v996 = vunpack.c.l.b16 %v949
      %v997 = vunpack.c.l.b16 %v950
      %v998 = vunpack.c.l.b16 %v951
      %v999 = vunpack.c.l.b16 %v952
      %v1000 = vunpack.c.l.b16 %v953
      %v1001 = vunpack.c.l.b16 %v954
      %v1002 = vunpack.c.l.b16 %v955
      %v1003 = vunpack.c.l.b16 %v956
      %v1004 = vunpack.c.l.b16 %v957
      %v1005 = vunpack.c.l.b16 %v958
      %v1006 = vunpack.c.l.b16 %v959
      %v1007 = vpack.c.b16 %v990, %v989
      %v1008 = vpack.c.b16 %v992, %v991
      %v1009 = vpack.c.b16 %v994, %v993
      %v1010 = vpack.c.b16 %v996, %v995
      %v1011 = vpack.c.b16 %v998, %v997
      %v1012 = vpack.c.b16 %v1000, %v999
      %v1013 = vpack.c.b16 %v1002, %v1001
      %v1014 = vpack.c.b16 %v1004, %v1003
      %v1015 = vpack.c.b16 %v1006, %v1005
      %v1026 = vsel %vm173, %v969, 0
      %1028 = vmatprep.subr.bf16.mxu0 0
      %1029 = vmatpush1.bf16.msra.mxu0 %v1007
      %1030 = vmatprep.subr.bf16.mxu0 0
      %1031 = vmatpush1.bf16.msra.mxu0 %v1008
      %1032 = vmatprep.subr.bf16.mxu0 0
      %1033 = vmatpush1.bf16.msra.mxu0 %v1009
      %1034 = vmatprep.subr.bf16.mxu0 0
      %1035 = vmatpush1.bf16.msra.mxu0 %v1010
      %1036 = vmatprep.subr.bf16.mxu0 0
      %1037 = vmatpush1.bf16.msra.mxu0 %v1011
      %1038 = vmatprep.subr.bf16.mxu0 0
      %1039 = vmatpush1.bf16.msra.mxu0 %v1012
      %1040 = vmatprep.subr.bf16.mxu0 0
      %1041 = vmatpush1.bf16.msra.mxu0 %v1013
      %1042 = vmatprep.subr.bf16.mxu0 0
      %1043 = vmatpush1.bf16.msra.mxu0 %v1014
      %1044 = vmatprep.subr.bf16.mxu0 0
      %1045 = vmatpush1.bf16.msra.mxu0 %v1015
      %1046 = vmatprep.subr.bf16.mxu0 0
      %1047 = vmatpush1.bf16.msra.mxu0 0
      %1048 = vmatprep.subr.bf16.mxu0 0
      %1049 = vmatpush1.bf16.msra.mxu0 0
      %1050 = vmatprep.subr.bf16.mxu0 0
      %1051 = vmatpush1.bf16.msra.mxu0 0
      %1052 = vmatprep.subr.bf16.mxu0 0
      %1053 = vmatpush1.bf16.msra.mxu0 0
      %1054 = vmatprep.subr.bf16.mxu0 0
      %1055 = vmatpush1.bf16.msra.mxu0 0
      %1056 = vmatprep.subr.bf16.mxu0 0
      %1057 = vmatpush1.bf16.msra.mxu0 0
      %1058 = vmatprep.subr.bf16.mxu0 0
      %1059 = vmatpush1.bf16.msra.mxu0 0
      %1060 = vmatprep.mubr.bf16.mxu0 %v1026
      %1061 = vmatmul.mubr.bf16.gmra.mrb[0].mxu0 %v966
      %v1062 = vpop.f32.mrb[0].mxu0
      %v1063 = vadd.f32 0.0, %v1062
      %v1064 = vpop.f32.mrb[0].mxu0
      %v1065 = vpop.f32.mrb[0].mxu0
      %v1066 = vadd.f32 0.0, %v1065
      %v1067 = vpop.f32.mrb[0].mxu0
      %1068 = vdwg.mxu0
      %v1069 = vadd.f32 %v927, %v1063
      %v1070 = vadd.f32 %v930, %v1066
      %s1071 = scalar_lea.vmem %s2, 1
      %v1072 = vld [vmem:[%s1071] sm:$0x1]
      %v1074 = vlaneseq
      %v1075 = vshrl.u32 %v1074, 7
      %v1076 = vsub.s32 0, %v1075
      %v1077 = vrot.slane %v1072, %v1076
      %v1079 = vadd.f32 %v1069, %v1077
      %v1080 = vadd.f32 %v1070, %v1077
      %v1081 = vld [vmem:[#allocation2] sm:$0xfe]
      %v1082 = vld [vmem:[#allocation2 + $0x8] sm:$0xfe]
      %v1083 = vld [vmem:[#allocation2 + $0x10] sm:$0xff]
      %v1084 = vld [vmem:[#allocation2 + $0x18] sm:$0xff]
      %v1085 = vld [vmem:[#allocation2 + $0x20] sm:$0x1]
      %v1086 = vld [vmem:[#allocation2 + $0x28] sm:$0x1]
      %v1089 = vrot.slane %v1079, 7
      %v1090 = vrot.slane %v1080, 7
      %v1091 = vsel %vm192, %v1089, %v1090
      %1092 = vrot.lane.b32.xlu0 %v1089, 8
      %v1093 = vpop.permute.xlu0 %1092
      %1094 = vrot.lane.b32.xlu0 %v1091, 8
      %v1095 = vpop.permute.xlu0 %1094
      %1096 = vrot.lane.b32.xlu0 %v1090, 8
      %v1097 = vpop.permute.xlu0 %1096
      %v1101 = vadd.f32 %v1081, %v1093
      %v1102 = vadd.f32 %v1082, %v1093
      %v1103 = vadd.f32 %v1083, %v1095
      %v1104 = vadd.f32 %v1084, %v1095
      %v1105 = vadd.f32 %v1085, %v1097
      %v1106 = vadd.f32 %v1086, %v1097
      %1107 = vst.msk [vmem:[#allocation2] sm:$0xfe] %vm205, %v1101
      %1108 = vst.msk [vmem:[#allocation2 + $0x8] sm:$0xfe] %vm207, %v1102
      %1109 = vst.msk [vmem:[#allocation2 + $0x10] sm:$0xff] %vm209, %v1103
      %1110 = vst.msk [vmem:[#allocation2 + $0x18] sm:$0xff] %vm211, %v1104
      %1111 = vst.msk [vmem:[#allocation2 + $0x20] sm:$0x1] %vm213, %v1105
      %1112 = vst.msk [vmem:[#allocation2 + $0x28] sm:$0x1] %vm215, %v1106
      %v1113 = vld [vmem:[#allocation2] sm:$0xff]
      %v1114 = vld [vmem:[#allocation2 + $0x8] sm:$0xff]
      %v1115 = vld [vmem:[#allocation2 + $0x10] sm:$0xff]
      %v1116 = vld [vmem:[#allocation2 + $0x18] sm:$0xff]
      %v1117 = vld [vmem:[#allocation2 + $0x20] sm:$0x3]
      %v1118 = vld [vmem:[#allocation2 + $0x28] sm:$0x3]
      %v1119 = vpack.c.bf16 %v1115, %v1113
      %v1120 = vpack.c.bf16 %v1116, %v1114
      %v1121 = vpack.c.bf16 %v1117, %v1117
      %v1122 = vpack.c.bf16 %v1118, %v1118
      %v1127 = vunpack.c.l.b16 %v1119
      %v1128 = vunpack.c.l.b16 %v1120
      %v1129 = vunpack.c.h.b16 %v1119
      %v1130 = vunpack.c.h.b16 %v1120
      %v1131 = vunpack.c.l.b16 %v1121
      %v1132 = vunpack.c.l.b16 %v1122
      %v1133 = vpack.c.b16 %v1128, %v1127
      %v1134 = vpack.c.b16 %v1130, %v1129
      %v1135 = vpack.c.b16 %v1132, %v1131
      %vm1139 = vcmask 1043456
      %vm1140 = vcmask 130052
      %vm1141 = vmor %vm1140, %vm1139
      %1142 = vst.msk [vmem:[%s170] sm:$0xff] %vm1141, %v1133
      %1143 = vst.msk [vmem:[%s170 + $0x8] sm:$0xff] %vm1141, %v1134
      %vm1144 = vcmask 126980
      %vm1145 = vmor %vm1144, %vm192
      %1146 = vst.msk [vmem:[%s170 + $0x10] sm:$0x11] %vm1145, %v1135
      %p1147 = scmp.lt.s32.totalorder %s14, 1
      %s1148 = scalar_select %p1147, %s14, 1
      %s1149 = smul.addr %s1148, 6
      %s1150 = smul.addr %s1149, 4
      %s1151 = scalar_lea.vmem %s3, %s1150
      // Predicated region
      $region33: #{fwd.5} parent=31 // pred_check
        %p1152 = pneg %p100
      $region34: #{fwd.5} parent=31 // pred_check_branch
        %1154 = sbr.rel (%p1152) target = $region36
      $region35: #{fwd.5} parent=31 // pred_region
        _
      $region36: #{fwd.5} parent=31 // pred_fallthru
        _
    $region32: #{fwd.5} parent=5 // pred_fallthru
      _
    %p1155 = scmp.le.s32.totalorder 2, %s9
    // Predicated region
    $region37: #{fwd.5} parent=5 // pred_check
      %p1156 = pneg %p1155
    $region38: #{fwd.5} parent=5 // pred_check_branch
      %1158 = sbr.rel (%p1156) target = $region40
    $region39: #{fwd.5} parent=5 // pred_region
      %s1159 = ssub.s32 %s9, 2
      // Predicated region
      $region41: #{fwd.5} parent=39 // pred_check
        %p1160 = pneg %p106
      $region42: #{fwd.5} parent=39 // pred_check_branch
        %1162 = sbr.rel (%p1160) target = $region44
      $region43: #{fwd.5} parent=39 // pred_region
        %p1163 = scmp.lt.s32.totalorder %s15, 1
        %s1164 = scalar_select %p1163, %s15, 1
        %s1165 = smul.addr %s1164, 6
        %s1166 = smul.addr %s1165, 4
        %s1167 = scalar_lea.vmem %s3, %s1166
      $region44: #{fwd.5} parent=39 // pred_fallthru
        _
    $region40: #{fwd.5} parent=5 // pred_fallthru
      _
  $region6: #{fwd.5} parent=0 // loop_footer
    %s13 = sadd.s32 1, %s9
  $region7: #{fwd.5} parent=0 // loop_footer_branch
    %8 = sbr.rel target = $region3
  $region8: #{fwd.5} parent=0 // loop_exit
    _

// kernel: fwd.7
$region0: #{fwd.7}
  #allocation0 [shape = 'u32[]', space=smem, size = 0x4, offset = 0x4, fixed_abs, tag = 'smem constant byte address 0x4 - core index']
  #allocation1 [shape = 'u32[144,128]{1,0:T(1,128)}', space=vmem, size = 0x12000, scoped, tag = 'internal scratch']
  #allocation2 [shape = 'f32[10,80]{1,0:T(8,128)}', space=vmem, size = 0x2000, scoped, tag = 'scratch operand']
  #allocation3 [shape = 'f32[10,80]{1,0:T(8,128)}', space=vmem, size = 0x2000, scoped, tag = 'scratch operand']
  %s0 = inlined_call_operand.vmem [shape: bf16[2,8,64], index: 0, kind: input, shape index: {}]
  %s1 = inlined_call_operand.vmem [shape: bf16[6,80,64], index: 1, kind: input, shape index: {}]
  %s2 = inlined_call_operand.vmem [shape: f32[2,1,64], index: 2, kind: input, shape index: {}]
  %s3 = inlined_call_operand.vmem [shape: bf16[2,10,80], index: 3, kind: output, shape index: {}]
  %s4 = sld [smem:[#allocation0]]
  $region45: #{fwd.7} parent=0
    _
  %s6 = ssub.s32 1, %s4
  %s7 = scalar_select 0, %s6, %s4
  loop: start=0, step=1, limit=4
  $region2: #{fwd.7} parent=0 // loop_pre_header
    _
  $region3: #{fwd.7} parent=0 // loop_header
    %s9 = sphi 0, %s13
    %p10 = scmp.ge.s32.totalorder %s9, 4
    %s19 = sphi 0, %s21
    %s22 = sphi 0, %s19
    %s23 = sphi 0, %s22
    %s39 = sphi 0, %s23
    %s43 = sphi 0, %s43
    %s45 = sphi 0, %s43
    %s46 = sphi 0, %s45
    %s60 = sphi 0, %s46
    %s64 = sphi 0, %s64
    %s66 = sphi 0, %s64
    %s67 = sphi 0, %s66
    %s81 = sphi 0, %s67
    %s87 = sphi 0, %s89
    %s90 = sphi 0, %s87
    %s91 = sphi 0, %s90
    %s107 = sphi 0, %s91
  $region4: #{fwd.7} parent=0 // loop_header_branch
    %12 = sbr.rel (%p10) target = $region8
  $region5: #{fwd.7} parent=0 // loop_body
    %s14 = ssub.s32 %s9, 1
    %s15 = ssub.s32 %s9, 2
    %s16 = sadd.s32 %s9, 1
    %s17 = ssub.s32 %s9, %s16
    %p18 = scmp.eq.s32.totalorder %s17, 0
    %s20 = sadd.s32 %s19, 1
    %s21 = scalar_select %p18, %s19, %s20
    %p24 = pneg %p18
    %p25 = scmp.eq.s32.totalorder %s9, 1
    %p26 = por %p24, %p25
    %p27 = scmp.ne.s32.totalorder %s19, %s22
    %p28 = scmp.eq.s32.totalorder %s9, 0
    %p29 = por %p27, %p28
    %p30 = scmp.ne.s32.totalorder %s19, %s22
    %p31 = scmp.eq.s32.totalorder %s14, 1
    %p32 = por %p30, %p31
    %p33 = scmp.ne.s32.totalorder %s22, %s23
    %p34 = scmp.eq.s32.totalorder %s14, 0
    %p35 = por %p33, %p34
    %p36 = scmp.ne.s32.totalorder %s22, %s23
    %p37 = scmp.eq.s32.totalorder %s15, 1
    %p38 = por %p36, %p37
    %p40 = scmp.ne.s32.totalorder %s23, %s39
    %p41 = scmp.eq.s32.totalorder %s15, 0
    %p42 = por %p40, %p41
    %s44 = sadd.s32 %s43, 1
    %p47 = scmp.eq.s32.totalorder %s9, 1
    %p48 = scmp.ne.s32.totalorder %s43, %s45
    %p49 = scmp.eq.s32.totalorder %s9, 0
    %p50 = por %p48, %p49
    %p51 = scmp.ne.s32.totalorder %s43, %s45
    %p52 = scmp.eq.s32.totalorder %s14, 1
    %p53 = por %p51, %p52
    %p54 = scmp.ne.s32.totalorder %s45, %s46
    %p55 = scmp.eq.s32.totalorder %s14, 0
    %p56 = por %p54, %p55
    %p57 = scmp.ne.s32.totalorder %s45, %s46
    %p58 = scmp.eq.s32.totalorder %s15, 1
    %p59 = por %p57, %p58
    %p61 = scmp.ne.s32.totalorder %s46, %s60
    %p62 = scmp.eq.s32.totalorder %s15, 0
    %p63 = por %p61, %p62
    %s65 = sadd.s32 %s64, 1
    %p68 = scmp.eq.s32.totalorder %s9, 1
    %p69 = scmp.ne.s32.totalorder %s64, %s66
    %p70 = scmp.eq.s32.totalorder %s9, 0
    %p71 = por %p69, %p70
    %p72 = scmp.ne.s32.totalorder %s64, %s66
    %p73 = scmp.eq.s32.totalorder %s14, 1
    %p74 = por %p72, %p73
    %p75 = scmp.ne.s32.totalorder %s66, %s67
    %p76 = scmp.eq.s32.totalorder %s14, 0
    %p77 = por %p75, %p76
    %p78 = scmp.ne.s32.totalorder %s66, %s67
    %p79 = scmp.eq.s32.totalorder %s15, 1
    %p80 = por %p78, %p79
    %p82 = scmp.ne.s32.totalorder %s67, %s81
    %p83 = scmp.eq.s32.totalorder %s15, 0
    %p84 = por %p82, %p83
    %s85 = ssub.s32 %s9, %s16
    %p86 = scmp.eq.s32.totalorder %s85, 0
    %s88 = sadd.s32 %s87, 1
    %s89 = scalar_select %p86, %s87, %s88
    %p92 = pneg %p86
    %p93 = scmp.eq.s32.totalorder %s9, 1
    %p94 = por %p92, %p93
    %p95 = scmp.ne.s32.totalorder %s87, %s90
    %p96 = scmp.eq.s32.totalorder %s9, 0
    %p97 = por %p95, %p96
    %p98 = scmp.ne.s32.totalorder %s87, %s90
    %p99 = scmp.eq.s32.totalorder %s14, 1
    %p100 = por %p98, %p99
    %p101 = scmp.ne.s32.totalorder %s90, %s91
    %p102 = scmp.eq.s32.totalorder %s14, 0
    %p103 = por %p101, %p102
    %p104 = scmp.ne.s32.totalorder %s90, %s91
    %p105 = scmp.eq.s32.totalorder %s15, 1
    %p106 = por %p104, %p105
    %p108 = scmp.ne.s32.totalorder %s91, %s107
    %p109 = scmp.eq.s32.totalorder %s15, 0
    %p110 = por %p108, %p109
    %p111 = scmp.le.s32.totalorder 1, %s9
    %p112 = scmp.lt.s32.totalorder %s9, 3
    %p113 = pnand %p111, %p112
    %p114 = pneg %p113
    // Predicated region
    $region9: #{fwd.7} parent=5 // pred_check
      _
    $region10: #{fwd.7} parent=5 // pred_check_branch
      %116 = sbr.rel (%p113) target = $region12
    $region11: #{fwd.7} parent=5 // pred_region
      %s117 = ssub.s32 %s9, 1
      // Predicated region
      $region13: #{fwd.7} parent=11 // pred_check
        %p118 = pneg %p56
      $region14: #{fwd.7} parent=11 // pred_check_branch
        %120 = sbr.rel (%p118) target = $region16
      $region15: #{fwd.7} parent=11 // pred_region
        _
      $region16: #{fwd.7} parent=11 // pred_fallthru
        _
      // Predicated region
      $region17: #{fwd.7} parent=11 // pred_check
        %p121 = pneg %p77
      $region18: #{fwd.7} parent=11 // pred_check_branch
        %123 = sbr.rel (%p121) target = $region20
      $region19: #{fwd.7} parent=11 // pred_region
        _
      $region20: #{fwd.7} parent=11 // pred_fallthru
        _
    $region12: #{fwd.7} parent=5 // pred_fallthru
      _
    %p124 = scmp.lt.s32.totalorder %s9, 2
    // Predicated region
    $region21: #{fwd.7} parent=5 // pred_check
      %p125 = pneg %p124
    $region22: #{fwd.7} parent=5 // pred_check_branch
      %127 = sbr.rel (%p125) target = $region24
    $region23: #{fwd.7} parent=5 // pred_region
      // Predicated region
      $region25: #{fwd.7} parent=23 // pred_check
        %p128 = pneg %p29
      $region26: #{fwd.7} parent=23 // pred_check_branch
        %130 = sbr.rel (%p128) target = $region28
      $region27: #{fwd.7} parent=23 // pred_region
        %p131 = scmp.lt.s32.totalorder %s9, 1
        %s132 = scalar_select %p131, %s9, 1
        %s133 = smul.addr %s132, 4
        %s134 = scalar_lea.vmem %s0, %s133
      $region28: #{fwd.7} parent=23 // pred_fallthru
        _
    $region24: #{fwd.7} parent=5 // pred_fallthru
      _
    %p135 = scmp.le.s32.totalorder 1, %s9
    %p136 = scmp.lt.s32.totalorder %s9, 3
    %p137 = pnand %p135, %p136
    %p138 = pneg %p137
    // Predicated region
    $region29: #{fwd.7} parent=5 // pred_check
      _
    $region30: #{fwd.7} parent=5 // pred_check_branch
      %140 = sbr.rel (%p137) target = $region32
    $region31: #{fwd.7} parent=5 // pred_region
      %s141 = ssub.s32 %s9, 1
      %p142 = scmp.lt.s32.totalorder %s14, 1
      %s143 = scalar_select %p142, %s14, 1
      %s144 = smul.addr %s143, 4
      %s145 = scalar_lea.vmem %s0, %s144
      %p146 = pneg %p35
      %p147 = pneg %p32
      %p148 = pneg %p56
      %p149 = pneg %p53
      %p150 = pneg %p77
      %p151 = pneg %p74
      %p152 = pneg %p103
      %p153 = pneg %p100
      %p154 = scmp.lt.s32.totalorder %s14, 1
      %s155 = scalar_select %p154, %s14, 1
      %s156 = smul.addr %s155, 2
      %s157 = smul.addr %s156, 4
      %s158 = scalar_lea.vmem %s3, %s157
      %p159 = scmp.lt.s32.totalorder %s14, 1
      %s160 = scalar_select %p159, %s14, 1
      %s161 = smul.addr %s160, 4
      %s162 = scalar_lea.vmem %s0, %s161
      %p163 = scmp.lt.s32.totalorder %s14, 1
      %s164 = scalar_select %p163, %s14, 1
      %s165 = smul.addr %s164, 2
      %s166 = smul.addr %s165, 4
      %s167 = scalar_lea.vmem %s3, %s166
      %vm169 = vcmask 654336
      %170 = vst.msk [vmem:[#allocation2] sm:$0xff] %vm169, 0.0
      %vm171 = vcmask 648192
      %172 = vst.msk [vmem:[#allocation2 + $0x8] sm:$0x3] %vm171, 0.0
      %173 = vst.msk [vmem:[#allocation3] sm:$0xff] %vm169, 0.0
      %174 = vst.msk [vmem:[#allocation3 + $0x8] sm:$0x3] %vm171, 0.0
      %v175 = vld [vmem:[%s162] sm:$0xf]
      %v176 = vunpack.c.l.bf16 %v175
      %178 = vrot.lane.b32.xlu0 %v176, 8
      %v179 = vpop.permute.xlu0 %178
      %vm181 = vcmask 588864
      %182 = vst.msk [vmem:[#allocation2 + $0x1] sm:$0xff] %vm181, %v179
      %v183 = vld [vmem:[#allocation2] sm:$0xff]
      %v184 = vpack.c.bf16 %v183, %v183
      %v185 = vld [vmem:[%s1] sm:$0xf]
      %v186 = vld [vmem:[%s1 + $0x4] sm:$0xf]
      %v187 = vld [vmem:[%s1 + $0x8] sm:$0xf]
      %v188 = vld [vmem:[%s1 + $0xc] sm:$0xf]
      %v189 = vld [vmem:[%s1 + $0x10] sm:$0xf]
      %v190 = vld [vmem:[%s1 + $0x14] sm:$0xf]
      %v191 = vld [vmem:[%s1 + $0x18] sm:$0xf]
      %v192 = vld [vmem:[%s1 + $0x1c] sm:$0xf]
      %v193 = vld [vmem:[%s1 + $0x20] sm:$0xf]
      %v194 = vld [vmem:[%s1 + $0x24] sm:$0xf]
      %v195 = vld [vmem:[#allocation2 + $0x1] sm:$0xff]
      %v196 = vpack.c.bf16 %v195, %v195
      %s197 = scalar_lea.vmem %s1, 40
      %v198 = vld [vmem:[%s197] sm:$0xf]
      %v199 = vld [vmem:[%s197 + $0x4] sm:$0xf]
      %v200 = vld [vmem:[%s197 + $0x8] sm:$0xf]
      %v201 = vld [vmem:[%s197 + $0xc] sm:$0xf]
      %v202 = vld [vmem:[%s197 + $0x10] sm:$0xf]
      %v203 = vld [vmem:[%s197 + $0x14] sm:$0xf]
      %v204 = vld [vmem:[%s197 + $0x18] sm:$0xf]
      %v205 = vld [vmem:[%s197 + $0x1c] sm:$0xf]
      %v206 = vld [vmem:[%s197 + $0x20] sm:$0xf]
      %v207 = vld [vmem:[%s197 + $0x24] sm:$0xf]
      %v218 = vunpack.c.l.b16 %v198
      %v219 = vunpack.c.l.b16 %v199
      %v220 = vunpack.c.l.b16 %v200
      %v221 = vunpack.c.l.b16 %v201
      %v222 = vunpack.c.l.b16 %v202
      %v223 = vunpack.c.l.b16 %v203
      %v224 = vunpack.c.l.b16 %v204
      %v225 = vunpack.c.l.b16 %v205
      %v226 = vunpack.c.l.b16 %v206
      %v227 = vunpack.c.l.b16 %v207
      %v228 = vpack.c.b16 %v219, %v218
      %v229 = vpack.c.b16 %v221, %v220
      %v230 = vpack.c.b16 %v223, %v222
      %v231 = vpack.c.b16 %v225, %v224
      %v232 = vpack.c.b16 %v227, %v226
      %v239 = vsel %vm169, %v196, 0
      %241 = vmatprep.subr.bf16.mxu0 0
      %242 = vmatpush1.bf16.msra.mxu0 %v228
      %243 = vmatprep.subr.bf16.mxu0 0
      %244 = vmatpush1.bf16.msra.mxu0 %v229
      %245 = vmatprep.subr.bf16.mxu0 0
      %246 = vmatpush1.bf16.msra.mxu0 %v230
      %247 = vmatprep.subr.bf16.mxu0 0
      %248 = vmatpush1.bf16.msra.mxu0 %v231
      %249 = vmatprep.subr.bf16.mxu0 0
      %250 = vmatpush1.bf16.msra.mxu0 %v232
      %251 = vmatprep.subr.bf16.mxu0 0
      %252 = vmatpush1.bf16.msra.mxu0 0
      %253 = vmatprep.subr.bf16.mxu0 0
      %254 = vmatpush1.bf16.msra.mxu0 0
      %255 = vmatprep.subr.bf16.mxu0 0
      %256 = vmatpush1.bf16.msra.mxu0 0
      %257 = vmatprep.subr.bf16.mxu0 0
      %258 = vmatpush1.bf16.msra.mxu0 0
      %259 = vmatprep.subr.bf16.mxu0 0
      %260 = vmatpush1.bf16.msra.mxu0 0
      %261 = vmatprep.subr.bf16.mxu0 0
      %262 = vmatpush1.bf16.msra.mxu0 0
      %263 = vmatprep.subr.bf16.mxu0 0
      %264 = vmatpush1.bf16.msra.mxu0 0
      %265 = vmatprep.subr.bf16.mxu0 0
      %266 = vmatpush1.bf16.msra.mxu0 0
      %267 = vmatprep.subr.bf16.mxu0 0
      %268 = vmatpush1.bf16.msra.mxu0 0
      %269 = vmatprep.subr.bf16.mxu0 0
      %270 = vmatpush1.bf16.msra.mxu0 0
      %271 = vmatprep.subr.bf16.mxu0 0
      %272 = vmatpush1.bf16.msra.mxu0 0
      %273 = vmatprep.mubr.bf16.mxu0 0
      %274 = vmatmul.mubr.bf16.gmra.mrb[0].mxu0 %v239
      %v275 = vpop.f32.mrb[0].mxu0
      %v276 = vadd.f32 0.0, %v275
      %v277 = vpop.f32.mrb[0].mxu0
      %v278 = vpop.f32.mrb[0].mxu0
      %v279 = vpop.f32.mrb[0].mxu0
      %280 = vdwg.mxu0
      %v291 = vunpack.c.l.b16 %v185
      %v292 = vunpack.c.l.b16 %v186
      %v293 = vunpack.c.l.b16 %v187
      %v294 = vunpack.c.l.b16 %v188
      %v295 = vunpack.c.l.b16 %v189
      %v296 = vunpack.c.l.b16 %v190
      %v297 = vunpack.c.l.b16 %v191
      %v298 = vunpack.c.l.b16 %v192
      %v299 = vunpack.c.l.b16 %v193
      %v300 = vunpack.c.l.b16 %v194
      %v301 = vpack.c.b16 %v292, %v291
      %v302 = vpack.c.b16 %v294, %v293
      %v303 = vpack.c.b16 %v296, %v295
      %v304 = vpack.c.b16 %v298, %v297
      %v305 = vpack.c.b16 %v300, %v299
      %v312 = vsel %vm169, %v184, 0
      %314 = vmatprep.subr.bf16.mxu0 0
      %315 = vmatpush1.bf16.msra.mxu0 %v301
      %316 = vmatprep.subr.bf16.mxu0 0
      %317 = vmatpush1.bf16.msra.mxu0 %v302
      %318 = vmatprep.subr.bf16.mxu0 0
      %319 = vmatpush1.bf16.msra.mxu0 %v303
      %320 = vmatprep.subr.bf16.mxu0 0
      %321 = vmatpush1.bf16.msra.mxu0 %v304
      %322 = vmatprep.subr.bf16.mxu0 0
      %323 = vmatpush1.bf16.msra.mxu0 %v305
      %324 = vmatprep.subr.bf16.mxu0 0
      %325 = vmatpush1.bf16.msra.mxu0 0
      %326 = vmatprep.subr.bf16.mxu0 0
      %327 = vmatpush1.bf16.msra.mxu0 0
      %328 = vmatprep.subr.bf16.mxu0 0
      %329 = vmatpush1.bf16.msra.mxu0 0
      %330 = vmatprep.subr.bf16.mxu0 0
      %331 = vmatpush1.bf16.msra.mxu0 0
      %332 = vmatprep.subr.bf16.mxu0 0
      %333 = vmatpush1.bf16.msra.mxu0 0
      %334 = vmatprep.subr.bf16.mxu0 0
      %335 = vmatpush1.bf16.msra.mxu0 0
      %336 = vmatprep.subr.bf16.mxu0 0
      %337 = vmatpush1.bf16.msra.mxu0 0
      %338 = vmatprep.subr.bf16.mxu0 0
      %339 = vmatpush1.bf16.msra.mxu0 0
      %340 = vmatprep.subr.bf16.mxu0 0
      %341 = vmatpush1.bf16.msra.mxu0 0
      %342 = vmatprep.subr.bf16.mxu0 0
      %343 = vmatpush1.bf16.msra.mxu0 0
      %344 = vmatprep.subr.bf16.mxu0 0
      %345 = vmatpush1.bf16.msra.mxu0 0
      %346 = vmatprep.mubr.bf16.mxu0 0
      %347 = vmatmul.mubr.bf16.gmra.mrb[0].mxu0 %v312
      %v348 = vpop.f32.mrb[0].mxu0
      %v349 = vadd.f32 %v276, %v348
      %v350 = vpop.f32.mrb[0].mxu0
      %v351 = vpop.f32.mrb[0].mxu0
      %v352 = vpop.f32.mrb[0].mxu0
      %353 = vdwg.mxu0
      %v354 = vld [vmem:[#allocation2 + $0x2] sm:$0xff]
      %v355 = vpack.c.bf16 %v354, %v354
      %s356 = scalar_lea.vmem %s1, 80
      %v357 = vld [vmem:[%s356] sm:$0xf]
      %v358 = vld [vmem:[%s356 + $0x4] sm:$0xf]
      %v359 = vld [vmem:[%s356 + $0x8] sm:$0xf]
      %v360 = vld [vmem:[%s356 + $0xc] sm:$0xf]
      %v361 = vld [vmem:[%s356 + $0x10] sm:$0xf]
      %v362 = vld [vmem:[%s356 + $0x14] sm:$0xf]
      %v363 = vld [vmem:[%s356 + $0x18] sm:$0xf]
      %v364 = vld [vmem:[%s356 + $0x1c] sm:$0xf]
      %v365 = vld [vmem:[%s356 + $0x20] sm:$0xf]
      %v366 = vld [vmem:[%s356 + $0x24] sm:$0xf]
      %v377 = vunpack.c.l.b16 %v357
      %v378 = vunpack.c.l.b16 %v358
      %v379 = vunpack.c.l.b16 %v359
      %v380 = vunpack.c.l.b16 %v360
      %v381 = vunpack.c.l.b16 %v361
      %v382 = vunpack.c.l.b16 %v362
      %v383 = vunpack.c.l.b16 %v363
      %v384 = vunpack.c.l.b16 %v364
      %v385 = vunpack.c.l.b16 %v365
      %v386 = vunpack.c.l.b16 %v366
      %v387 = vpack.c.b16 %v378, %v377
      %v388 = vpack.c.b16 %v380, %v379
      %v389 = vpack.c.b16 %v382, %v381
      %v390 = vpack.c.b16 %v384, %v383
      %v391 = vpack.c.b16 %v386, %v385
      %v398 = vsel %vm169, %v355, 0
      %400 = vmatprep.subr.bf16.mxu0 0
      %401 = vmatpush1.bf16.msra.mxu0 %v387
      %402 = vmatprep.subr.bf16.mxu0 0
      %403 = vmatpush1.bf16.msra.mxu0 %v388
      %404 = vmatprep.subr.bf16.mxu0 0
      %405 = vmatpush1.bf16.msra.mxu0 %v389
      %406 = vmatprep.subr.bf16.mxu0 0
      %407 = vmatpush1.bf16.msra.mxu0 %v390
      %408 = vmatprep.subr.bf16.mxu0 0
      %409 = vmatpush1.bf16.msra.mxu0 %v391
      %410 = vmatprep.subr.bf16.mxu0 0
      %411 = vmatpush1.bf16.msra.mxu0 0
      %412 = vmatprep.subr.bf16.mxu0 0
      %413 = vmatpush1.bf16.msra.mxu0 0
      %414 = vmatprep.subr.bf16.mxu0 0
      %415 = vmatpush1.bf16.msra.mxu0 0
      %416 = vmatprep.subr.bf16.mxu0 0
      %417 = vmatpush1.bf16.msra.mxu0 0
      %418 = vmatprep.subr.bf16.mxu0 0
      %419 = vmatpush1.bf16.msra.mxu0 0
      %420 = vmatprep.subr.bf16.mxu0 0
      %421 = vmatpush1.bf16.msra.mxu0 0
      %422 = vmatprep.subr.bf16.mxu0 0
      %423 = vmatpush1.bf16.msra.mxu0 0
      %424 = vmatprep.subr.bf16.mxu0 0
      %425 = vmatpush1.bf16.msra.mxu0 0
      %426 = vmatprep.subr.bf16.mxu0 0
      %427 = vmatpush1.bf16.msra.mxu0 0
      %428 = vmatprep.subr.bf16.mxu0 0
      %429 = vmatpush1.bf16.msra.mxu0 0
      %430 = vmatprep.subr.bf16.mxu0 0
      %431 = vmatpush1.bf16.msra.mxu0 0
      %432 = vmatprep.mubr.bf16.mxu0 0
      %433 = vmatmul.mubr.bf16.gmra.mrb[0].mxu0 %v398
      %v434 = vpop.f32.mrb[0].mxu0
      %v435 = vadd.f32 0.0, %v434
      %v436 = vpop.f32.mrb[0].mxu0
      %v437 = vpop.f32.mrb[0].mxu0
      %v438 = vpop.f32.mrb[0].mxu0
      %439 = vdwg.mxu0
      %v440 = vadd.f32 %v349, %v435
      %v441 = vld [vmem:[%s2] sm:$0x1]
      %v443 = vlaneseq
      %v444 = vshrl.u32 %v443, 7
      %v445 = vsub.s32 0, %v444
      %v446 = vrot.slane %v441, %v445
      %v448 = vadd.f32 %v440, %v446
      %v449 = vmax.f32 %v448, 0.0
      %451 = vrot.lane.b32.xlu0 %v449, 8
      %v452 = vpop.permute.xlu0 %451
      %454 = vst.msk [vmem:[#allocation3 + $0x1] sm:$0xff] %vm181, %v452
      %v455 = vld [vmem:[#allocation3] sm:$0xff]
      %v456 = vpack.c.bf16 %v455, %v455
      %s457 = scalar_lea.vmem %s1, 120
      %v458 = vld [vmem:[%s457] sm:$0xf]
      %v459 = vld [vmem:[%s457 + $0x4] sm:$0xf]
      %v460 = vld [vmem:[%s457 + $0x8] sm:$0xf]
      %v461 = vld [vmem:[%s457 + $0xc] sm:$0xf]
      %v462 = vld [vmem:[%s457 + $0x10] sm:$0xf]
      %v463 = vld [vmem:[%s457 + $0x14] sm:$0xf]
      %v464 = vld [vmem:[%s457 + $0x18] sm:$0xf]
      %v465 = vld [vmem:[%s457 + $0x1c] sm:$0xf]
      %v466 = vld [vmem:[%s457 + $0x20] sm:$0xf]
      %v467 = vld [vmem:[%s457 + $0x24] sm:$0xf]
      %v468 = vld [vmem:[#allocation3 + $0x1] sm:$0xff]
      %v469 = vpack.c.bf16 %v468, %v468
      %s470 = scalar_lea.vmem %s1, 160
      %v471 = vld [vmem:[%s470] sm:$0xf]
      %v472 = vld [vmem:[%s470 + $0x4] sm:$0xf]
      %v473 = vld [vmem:[%s470 + $0x8] sm:$0xf]
      %v474 = vld [vmem:[%s470 + $0xc] sm:$0xf]
      %v475 = vld [vmem:[%s470 + $0x10] sm:$0xf]
      %v476 = vld [vmem:[%s470 + $0x14] sm:$0xf]
      %v477 = vld [vmem:[%s470 + $0x18] sm:$0xf]
      %v478 = vld [vmem:[%s470 + $0x1c] sm:$0xf]
      %v479 = vld [vmem:[%s470 + $0x20] sm:$0xf]
      %v480 = vld [vmem:[%s470 + $0x24] sm:$0xf]
      %v491 = vunpack.c.l.b16 %v471
      %v492 = vunpack.c.l.b16 %v472
      %v493 = vunpack.c.l.b16 %v473
      %v494 = vunpack.c.l.b16 %v474
      %v495 = vunpack.c.l.b16 %v475
      %v496 = vunpack.c.l.b16 %v476
      %v497 = vunpack.c.l.b16 %v477
      %v498 = vunpack.c.l.b16 %v478
      %v499 = vunpack.c.l.b16 %v479
      %v500 = vunpack.c.l.b16 %v480
      %v501 = vpack.c.b16 %v492, %v491
      %v502 = vpack.c.b16 %v494, %v493
      %v503 = vpack.c.b16 %v496, %v495
      %v504 = vpack.c.b16 %v498, %v497
      %v505 = vpack.c.b16 %v500, %v499
      %v512 = vsel %vm169, %v469, 0
      %514 = vmatprep.subr.bf16.mxu0 0
      %515 = vmatpush1.bf16.msra.mxu0 %v501
      %516 = vmatprep.subr.bf16.mxu0 0
      %517 = vmatpush1.bf16.msra.mxu0 %v502
      %518 = vmatprep.subr.bf16.mxu0 0
      %519 = vmatpush1.bf16.msra.mxu0 %v503
      %520 = vmatprep.subr.bf16.mxu0 0
      %521 = vmatpush1.bf16.msra.mxu0 %v504
      %522 = vmatprep.subr.bf16.mxu0 0
      %523 = vmatpush1.bf16.msra.mxu0 %v505
      %524 = vmatprep.subr.bf16.mxu0 0
      %525 = vmatpush1.bf16.msra.mxu0 0
      %526 = vmatprep.subr.bf16.mxu0 0
      %527 = vmatpush1.bf16.msra.mxu0 0
      %528 = vmatprep.subr.bf16.mxu0 0
      %529 = vmatpush1.bf16.msra.mxu0 0
      %530 = vmatprep.subr.bf16.mxu0 0
      %531 = vmatpush1.bf16.msra.mxu0 0
      %532 = vmatprep.subr.bf16.mxu0 0
      %533 = vmatpush1.bf16.msra.mxu0 0
      %534 = vmatprep.subr.bf16.mxu0 0
      %535 = vmatpush1.bf16.msra.mxu0 0
      %536 = vmatprep.subr.bf16.mxu0 0
      %537 = vmatpush1.bf16.msra.mxu0 0
      %538 = vmatprep.subr.bf16.mxu0 0
      %539 = vmatpush1.bf16.msra.mxu0 0
      %540 = vmatprep.subr.bf16.mxu0 0
      %541 = vmatpush1.bf16.msra.mxu0 0
      %542 = vmatprep.subr.bf16.mxu0 0
      %543 = vmatpush1.bf16.msra.mxu0 0
      %544 = vmatprep.subr.bf16.mxu0 0
      %545 = vmatpush1.bf16.msra.mxu0 0
      %546 = vmatprep.mubr.bf16.mxu0 0
      %547 = vmatmul.mubr.bf16.gmra.mrb[0].mxu0 %v512
      %v548 = vpop.f32.mrb[0].mxu0
      %v549 = vadd.f32 0.0, %v548
      %v550 = vpop.f32.mrb[0].mxu0
      %v551 = vpop.f32.mrb[0].mxu0
      %v552 = vpop.f32.mrb[0].mxu0
      %553 = vdwg.mxu0
      %v564 = vunpack.c.l.b16 %v458
      %v565 = vunpack.c.l.b16 %v459
      %v566 = vunpack.c.l.b16 %v460
      %v567 = vunpack.c.l.b16 %v461
      %v568 = vunpack.c.l.b16 %v462
      %v569 = vunpack.c.l.b16 %v463
      %v570 = vunpack.c.l.b16 %v464
      %v571 = vunpack.c.l.b16 %v465
      %v572 = vunpack.c.l.b16 %v466
      %v573 = vunpack.c.l.b16 %v467
      %v574 = vpack.c.b16 %v565, %v564
      %v575 = vpack.c.b16 %v567, %v566
      %v576 = vpack.c.b16 %v569, %v568
      %v577 = vpack.c.b16 %v571, %v570
      %v578 = vpack.c.b16 %v573, %v572
      %v585 = vsel %vm169, %v456, 0
      %587 = vmatprep.subr.bf16.mxu0 0
      %588 = vmatpush1.bf16.msra.mxu0 %v574
      %589 = vmatprep.subr.bf16.mxu0 0
      %590 = vmatpush1.bf16.msra.mxu0 %v575
      %591 = vmatprep.subr.bf16.mxu0 0
      %592 = vmatpush1.bf16.msra.mxu0 %v576
      %593 = vmatprep.subr.bf16.mxu0 0
      %594 = vmatpush1.bf16.msra.mxu0 %v577
      %595 = vmatprep.subr.bf16.mxu0 0
      %596 = vmatpush1.bf16.msra.mxu0 %v578
      %597 = vmatprep.subr.bf16.mxu0 0
      %598 = vmatpush1.bf16.msra.mxu0 0
      %599 = vmatprep.subr.bf16.mxu0 0
      %600 = vmatpush1.bf16.msra.mxu0 0
      %601 = vmatprep.subr.bf16.mxu0 0
      %602 = vmatpush1.bf16.msra.mxu0 0
      %603 = vmatprep.subr.bf16.mxu0 0
      %604 = vmatpush1.bf16.msra.mxu0 0
      %605 = vmatprep.subr.bf16.mxu0 0
      %606 = vmatpush1.bf16.msra.mxu0 0
      %607 = vmatprep.subr.bf16.mxu0 0
      %608 = vmatpush1.bf16.msra.mxu0 0
      %609 = vmatprep.subr.bf16.mxu0 0
      %610 = vmatpush1.bf16.msra.mxu0 0
      %611 = vmatprep.subr.bf16.mxu0 0
      %612 = vmatpush1.bf16.msra.mxu0 0
      %613 = vmatprep.subr.bf16.mxu0 0
      %614 = vmatpush1.bf16.msra.mxu0 0
      %615 = vmatprep.subr.bf16.mxu0 0
      %616 = vmatpush1.bf16.msra.mxu0 0
      %617 = vmatprep.subr.bf16.mxu0 0
      %618 = vmatpush1.bf16.msra.mxu0 0
      %619 = vmatprep.mubr.bf16.mxu0 0
      %620 = vmatmul.mubr.bf16.gmra.mrb[0].mxu0 %v585
      %v621 = vpop.f32.mrb[0].mxu0
      %v622 = vadd.f32 %v549, %v621
      %v623 = vpop.f32.mrb[0].mxu0
      %v624 = vpop.f32.mrb[0].mxu0
      %v625 = vpop.f32.mrb[0].mxu0
      %626 = vdwg.mxu0
      %v627 = vld [vmem:[#allocation3 + $0x2] sm:$0xff]
      %v628 = vpack.c.bf16 %v627, %v627
      %s629 = scalar_lea.vmem %s1, 200
      %v630 = vld [vmem:[%s629] sm:$0xf]
      %v631 = vld [vmem:[%s629 + $0x4] sm:$0xf]
      %v632 = vld [vmem:[%s629 + $0x8] sm:$0xf]
      %v633 = vld [vmem:[%s629 + $0xc] sm:$0xf]
      %v634 = vld [vmem:[%s629 + $0x10] sm:$0xf]
      %v635 = vld [vmem:[%s629 + $0x14] sm:$0xf]
      %v636 = vld [vmem:[%s629 + $0x18] sm:$0xf]
      %v637 = vld [vmem:[%s629 + $0x1c] sm:$0xf]
      %v638 = vld [vmem:[%s629 + $0x20] sm:$0xf]
      %v639 = vld [vmem:[%s629 + $0x24] sm:$0xf]
      %v650 = vunpack.c.l.b16 %v630
      %v651 = vunpack.c.l.b16 %v631
      %v652 = vunpack.c.l.b16 %v632
      %v653 = vunpack.c.l.b16 %v633
      %v654 = vunpack.c.l.b16 %v634
      %v655 = vunpack.c.l.b16 %v635
      %v656 = vunpack.c.l.b16 %v636
      %v657 = vunpack.c.l.b16 %v637
      %v658 = vunpack.c.l.b16 %v638
      %v659 = vunpack.c.l.b16 %v639
      %v660 = vpack.c.b16 %v651, %v650
      %v661 = vpack.c.b16 %v653, %v652
      %v662 = vpack.c.b16 %v655, %v654
      %v663 = vpack.c.b16 %v657, %v656
      %v664 = vpack.c.b16 %v659, %v658
      %v671 = vsel %vm169, %v628, 0
      %673 = vmatprep.subr.bf16.mxu0 0
      %674 = vmatpush1.bf16.msra.mxu0 %v660
      %675 = vmatprep.subr.bf16.mxu0 0
      %676 = vmatpush1.bf16.msra.mxu0 %v661
      %677 = vmatprep.subr.bf16.mxu0 0
      %678 = vmatpush1.bf16.msra.mxu0 %v662
      %679 = vmatprep.subr.bf16.mxu0 0
      %680 = vmatpush1.bf16.msra.mxu0 %v663
      %681 = vmatprep.subr.bf16.mxu0 0
      %682 = vmatpush1.bf16.msra.mxu0 %v664
      %683 = vmatprep.subr.bf16.mxu0 0
      %684 = vmatpush1.bf16.msra.mxu0 0
      %685 = vmatprep.subr.bf16.mxu0 0
      %686 = vmatpush1.bf16.msra.mxu0 0
      %687 = vmatprep.subr.bf16.mxu0 0
      %688 = vmatpush1.bf16.msra.mxu0 0
      %689 = vmatprep.subr.bf16.mxu0 0
      %690 = vmatpush1.bf16.msra.mxu0 0
      %691 = vmatprep.subr.bf16.mxu0 0
      %692 = vmatpush1.bf16.msra.mxu0 0
      %693 = vmatprep.subr.bf16.mxu0 0
      %694 = vmatpush1.bf16.msra.mxu0 0
      %695 = vmatprep.subr.bf16.mxu0 0
      %696 = vmatpush1.bf16.msra.mxu0 0
      %697 = vmatprep.subr.bf16.mxu0 0
      %698 = vmatpush1.bf16.msra.mxu0 0
      %699 = vmatprep.subr.bf16.mxu0 0
      %700 = vmatpush1.bf16.msra.mxu0 0
      %701 = vmatprep.subr.bf16.mxu0 0
      %702 = vmatpush1.bf16.msra.mxu0 0
      %703 = vmatprep.subr.bf16.mxu0 0
      %704 = vmatpush1.bf16.msra.mxu0 0
      %705 = vmatprep.mubr.bf16.mxu0 0
      %706 = vmatmul.mubr.bf16.gmra.mrb[0].mxu0 %v671
      %v707 = vpop.f32.mrb[0].mxu0
      %v708 = vadd.f32 0.0, %v707
      %v709 = vpop.f32.mrb[0].mxu0
      %v710 = vpop.f32.mrb[0].mxu0
      %v711 = vpop.f32.mrb[0].mxu0
      %712 = vdwg.mxu0
      %v713 = vadd.f32 %v622, %v708
      %s714 = scalar_lea.vmem %s2, 1
      %v715 = vld [vmem:[%s714] sm:$0x1]
      %v717 = vlaneseq
      %v718 = vshrl.u32 %v717, 7
      %v719 = vsub.s32 0, %v718
      %v720 = vrot.slane %v715, %v719
      %v722 = vadd.f32 %v713, %v720
      %v723 = vld [vmem:[#allocation2 + $0x1] sm:$0xff]
      %725 = vrot.lane.b32.xlu0 %v722, 8
      %v726 = vpop.permute.xlu0 %725
      %v728 = vadd.f32 %v723, %v726
      %729 = vst.msk [vmem:[#allocation2 + $0x1] sm:$0xff] %vm181, %v728
      %v730 = vld [vmem:[#allocation2] sm:$0xff]
      %v731 = vld [vmem:[#allocation2 + $0x8] sm:$0x3]
      %v732 = vpack.c.bf16 %v731, %v730
      %v734 = vunpack.c.l.b16 %v732
      %v735 = vunpack.c.h.b16 %v732
      %v736 = vpack.c.b16 %v734, %v734
      %v737 = vpack.c.b16 %v735, %v735
      %vm740 = vcmask 650240
      %741 = vst.msk [vmem:[%s167] sm:$0xf] %vm740, %v736
      %vm742 = vcmask 647168
      %743 = vst.msk [vmem:[%s167 + $0x4] sm:$0x1] %vm742, %v737
      %p744 = scmp.lt.s32.totalorder %s14, 1
      %s745 = scalar_select %p744, %s14, 1
      %s746 = smul.addr %s745, 2
      %s747 = smul.addr %s746, 4
      %s748 = scalar_lea.vmem %s3, %s747
      // Predicated region
      $region33: #{fwd.7} parent=31 // pred_check
        %p749 = pneg %p100
      $region34: #{fwd.7} parent=31 // pred_check_branch
        %751 = sbr.rel (%p749) target = $region36
      $region35: #{fwd.7} parent=31 // pred_region
        _
      $region36: #{fwd.7} parent=31 // pred_fallthru
        _
    $region32: #{fwd.7} parent=5 // pred_fallthru
      _
    %p752 = scmp.le.s32.totalorder 2, %s9
    // Predicated region
    $region37: #{fwd.7} parent=5 // pred_check
      %p753 = pneg %p752
    $region38: #{fwd.7} parent=5 // pred_check_branch
      %755 = sbr.rel (%p753) target = $region40
    $region39: #{fwd.7} parent=5 // pred_region
      %s756 = ssub.s32 %s9, 2
      // Predicated region
      $region41: #{fwd.7} parent=39 // pred_check
        %p757 = pneg %p106
      $region42: #{fwd.7} parent=39 // pred_check_branch
        %759 = sbr.rel (%p757) target = $region44
      $region43: #{fwd.7} parent=39 // pred_region
        %p760 = scmp.lt.s32.totalorder %s15, 1
        %s761 = scalar_select %p760, %s15, 1
        %s762 = smul.addr %s761, 2
        %s763 = smul.addr %s762, 4
        %s764 = scalar_lea.vmem %s3, %s763
      $region44: #{fwd.7} parent=39 // pred_fallthru
        _
    $region40: #{fwd.7} parent=5 // pred_fallthru
      _
  $region6: #{fwd.7} parent=0 // loop_footer
    %s13 = sadd.s32 1, %s9
  $region7: #{fwd.7} parent=0 // loop_footer_branch
    %8 = sbr.rel target = $region3
  $region8: #{fwd.7} parent=0 // loop_exit
    _

// kernel: fwd.8
$region0: #{fwd.8}
  #allocation0 [shape = 'u32[]', space=smem, size = 0x4, offset = 0x4, fixed_abs, tag = 'smem constant byte address 0x4 - core index']
  #allocation1 [shape = 'u32[144,128]{1,0:T(1,128)}', space=vmem, size = 0x12000, scoped, tag = 'internal scratch']
  %s0 = inlined_call_operand.vmem [shape: bf16[2,5,160], index: 0, kind: input, shape index: {}]
  %s1 = inlined_call_operand.vmem [shape: bf16[160,32], index: 1, kind: input, shape index: {}]
  %s2 = inlined_call_operand.vmem [shape: bf16[80,32], index: 2, kind: input, shape index: {}]
  %s3 = inlined_call_operand.vmem [shape: f32[1,32], index: 3, kind: input, shape index: {}]
  %s4 = inlined_call_operand.vmem [shape: f32[1,32], index: 4, kind: input, shape index: {}]
  %s5 = inlined_call_operand.vmem [shape: bf16[2,4,32], index: 5, kind: output, shape index: {}]
  %s6 = sld [smem:[#allocation0]]
  $region53: #{fwd.8} parent=0
    _
  %s8 = ssub.s32 1, %s6
  %s9 = scalar_select 0, %s8, %s6
  loop: start=0, step=1, limit=4
  $region2: #{fwd.8} parent=0 // loop_pre_header
    _
  $region3: #{fwd.8} parent=0 // loop_header
    %s11 = sphi 0, %s15
    %p12 = scmp.ge.s32.totalorder %s11, 4
    %s21 = sphi 0, %s23
    %s24 = sphi 0, %s21
    %s25 = sphi 0, %s24
    %s41 = sphi 0, %s25
    %s45 = sphi 0, %s45
    %s47 = sphi 0, %s45
    %s48 = sphi 0, %s47
    %s62 = sphi 0, %s48
    %s66 = sphi 0, %s66
    %s68 = sphi 0, %s66
    %s69 = sphi 0, %s68
    %s83 = sphi 0, %s69
    %s87 = sphi 0, %s87
    %s89 = sphi 0, %s87
    %s90 = sphi 0, %s89
    %s104 = sphi 0, %s90
    %s108 = sphi 0, %s108
    %s110 = sphi 0, %s108
    %s111 = sphi 0, %s110
    %s125 = sphi 0, %s111
    %s131 = sphi 0, %s133
    %s134 = sphi 0, %s131
    %s135 = sphi 0, %s134
    %s151 = sphi 0, %s135
  $region4: #{fwd.8} parent=0 // loop_header_branch
    %14 = sbr.rel (%p12) target = $region8
  $region5: #{fwd.8} parent=0 // loop_body
    %s16 = ssub.s32 %s11, 1
    %s17 = ssub.s32 %s11, 2
    %s18 = sadd.s32 %s11, 1
    %s19 = ssub.s32 %s11, %s18
    %p20 = scmp.eq.s32.totalorder %s19, 0
    %s22 = sadd.s32 %s21, 1
    %s23 = scalar_select %p20, %s21, %s22
    %p26 = pneg %p20
    %p27 = scmp.eq.s32.totalorder %s11, 1
    %p28 = por %p26, %p27
    %p29 = scmp.ne.s32.totalorder %s21, %s24
    %p30 = scmp.eq.s32.totalorder %s11, 0
    %p31 = por %p29, %p30
    %p32 = scmp.ne.s32.totalorder %s21, %s24
    %p33 = scmp.eq.s32.totalorder %s16, 1
    %p34 = por %p32, %p33
    %p35 = scmp.ne.s32.totalorder %s24, %s25
    %p36 = scmp.eq.s32.totalorder %s16, 0
    %p37 = por %p35, %p36
    %p38 = scmp.ne.s32.totalorder %s24, %s25
    %p39 = scmp.eq.s32.totalorder %s17, 1
    %p40 = por %p38, %p39
    %p42 = scmp.ne.s32.totalorder %s25, %s41
    %p43 = scmp.eq.s32.totalorder %s17, 0
    %p44 = por %p42, %p43
    %s46 = sadd.s32 %s45, 1
    %p49 = scmp.eq.s32.totalorder %s11, 1
    %p50 = scmp.ne.s32.totalorder %s45, %s47
    %p51 = scmp.eq.s32.totalorder %s11, 0
    %p52 = por %p50, %p51
    %p53 = scmp.ne.s32.totalorder %s45, %s47
    %p54 = scmp.eq.s32.totalorder %s16, 1
    %p55 = por %p53, %p54
    %p56 = scmp.ne.s32.totalorder %s47, %s48
    %p57 = scmp.eq.s32.totalorder %s16, 0
    %p58 = por %p56, %p57
    %p59 = scmp.ne.s32.totalorder %s47, %s48
    %p60 = scmp.eq.s32.totalorder %s17, 1
    %p61 = por %p59, %p60
    %p63 = scmp.ne.s32.totalorder %s48, %s62
    %p64 = scmp.eq.s32.totalorder %s17, 0
    %p65 = por %p63, %p64
    %s67 = sadd.s32 %s66, 1
    %p70 = scmp.eq.s32.totalorder %s11, 1
    %p71 = scmp.ne.s32.totalorder %s66, %s68
    %p72 = scmp.eq.s32.totalorder %s11, 0
    %p73 = por %p71, %p72
    %p74 = scmp.ne.s32.totalorder %s66, %s68
    %p75 = scmp.eq.s32.totalorder %s16, 1
    %p76 = por %p74, %p75
    %p77 = scmp.ne.s32.totalorder %s68, %s69
    %p78 = scmp.eq.s32.totalorder %s16, 0
    %p79 = por %p77, %p78
    %p80 = scmp.ne.s32.totalorder %s68, %s69
    %p81 = scmp.eq.s32.totalorder %s17, 1
    %p82 = por %p80, %p81
    %p84 = scmp.ne.s32.totalorder %s69, %s83
    %p85 = scmp.eq.s32.totalorder %s17, 0
    %p86 = por %p84, %p85
    %s88 = sadd.s32 %s87, 1
    %p91 = scmp.eq.s32.totalorder %s11, 1
    %p92 = scmp.ne.s32.totalorder %s87, %s89
    %p93 = scmp.eq.s32.totalorder %s11, 0
    %p94 = por %p92, %p93
    %p95 = scmp.ne.s32.totalorder %s87, %s89
    %p96 = scmp.eq.s32.totalorder %s16, 1
    %p97 = por %p95, %p96
    %p98 = scmp.ne.s32.totalorder %s89, %s90
    %p99 = scmp.eq.s32.totalorder %s16, 0
    %p100 = por %p98, %p99
    %p101 = scmp.ne.s32.totalorder %s89, %s90
    %p102 = scmp.eq.s32.totalorder %s17, 1
    %p103 = por %p101, %p102
    %p105 = scmp.ne.s32.totalorder %s90, %s104
    %p106 = scmp.eq.s32.totalorder %s17, 0
    %p107 = por %p105, %p106
    %s109 = sadd.s32 %s108, 1
    %p112 = scmp.eq.s32.totalorder %s11, 1
    %p113 = scmp.ne.s32.totalorder %s108, %s110
    %p114 = scmp.eq.s32.totalorder %s11, 0
    %p115 = por %p113, %p114
    %p116 = scmp.ne.s32.totalorder %s108, %s110
    %p117 = scmp.eq.s32.totalorder %s16, 1
    %p118 = por %p116, %p117
    %p119 = scmp.ne.s32.totalorder %s110, %s111
    %p120 = scmp.eq.s32.totalorder %s16, 0
    %p121 = por %p119, %p120
    %p122 = scmp.ne.s32.totalorder %s110, %s111
    %p123 = scmp.eq.s32.totalorder %s17, 1
    %p124 = por %p122, %p123
    %p126 = scmp.ne.s32.totalorder %s111, %s125
    %p127 = scmp.eq.s32.totalorder %s17, 0
    %p128 = por %p126, %p127
    %s129 = ssub.s32 %s11, %s18
    %p130 = scmp.eq.s32.totalorder %s129, 0
    %s132 = sadd.s32 %s131, 1
    %s133 = scalar_select %p130, %s131, %s132
    %p136 = pneg %p130
    %p137 = scmp.eq.s32.totalorder %s11, 1
    %p138 = por %p136, %p137
    %p139 = scmp.ne.s32.totalorder %s131, %s134
    %p140 = scmp.eq.s32.totalorder %s11, 0
    %p141 = por %p139, %p140
    %p142 = scmp.ne.s32.totalorder %s131, %s134
    %p143 = scmp.eq.s32.totalorder %s16, 1
    %p144 = por %p142, %p143
    %p145 = scmp.ne.s32.totalorder %s134, %s135
    %p146 = scmp.eq.s32.totalorder %s16, 0
    %p147 = por %p145, %p146
    %p148 = scmp.ne.s32.totalorder %s134, %s135
    %p149 = scmp.eq.s32.totalorder %s17, 1
    %p150 = por %p148, %p149
    %p152 = scmp.ne.s32.totalorder %s135, %s151
    %p153 = scmp.eq.s32.totalorder %s17, 0
    %p154 = por %p152, %p153
    %p155 = scmp.le.s32.totalorder 1, %s11
    %p156 = scmp.lt.s32.totalorder %s11, 3
    %p157 = pnand %p155, %p156
    %p158 = pneg %p157
    // Predicated region
    $region9: #{fwd.8} parent=5 // pred_check
      _
    $region10: #{fwd.8} parent=5 // pred_check_branch
      %160 = sbr.rel (%p157) target = $region12
    $region11: #{fwd.8} parent=5 // pred_region
      %s161 = ssub.s32 %s11, 1
      // Predicated region
      $region13: #{fwd.8} parent=11 // pred_check
        %p162 = pneg %p58
      $region14: #{fwd.8} parent=11 // pred_check_branch
        %164 = sbr.rel (%p162) target = $region16
      $region15: #{fwd.8} parent=11 // pred_region
        _
      $region16: #{fwd.8} parent=11 // pred_fallthru
        _
      // Predicated region
      $region17: #{fwd.8} parent=11 // pred_check
        %p165 = pneg %p79
      $region18: #{fwd.8} parent=11 // pred_check_branch
        %167 = sbr.rel (%p165) target = $region20
      $region19: #{fwd.8} parent=11 // pred_region
        _
      $region20: #{fwd.8} parent=11 // pred_fallthru
        _
      // Predicated region
      $region21: #{fwd.8} parent=11 // pred_check
        %p168 = pneg %p100
      $region22: #{fwd.8} parent=11 // pred_check_branch
        %170 = sbr.rel (%p168) target = $region24
      $region23: #{fwd.8} parent=11 // pred_region
        _
      $region24: #{fwd.8} parent=11 // pred_fallthru
        _
      // Predicated region
      $region25: #{fwd.8} parent=11 // pred_check
        %p171 = pneg %p121
      $region26: #{fwd.8} parent=11 // pred_check_branch
        %173 = sbr.rel (%p171) target = $region28
      $region27: #{fwd.8} parent=11 // pred_region
        _
      $region28: #{fwd.8} parent=11 // pred_fallthru
        _
    $region12: #{fwd.8} parent=5 // pred_fallthru
      _
    %p174 = scmp.lt.s32.totalorder %s11, 2
    // Predicated region
    $region29: #{fwd.8} parent=5 // pred_check
      %p175 = pneg %p174
    $region30: #{fwd.8} parent=5 // pred_check_branch
      %177 = sbr.rel (%p175) target = $region32
    $region31: #{fwd.8} parent=5 // pred_region
      // Predicated region
      $region33: #{fwd.8} parent=31 // pred_check
        %p178 = pneg %p31
      $region34: #{fwd.8} parent=31 // pred_check_branch
        %180 = sbr.rel (%p178) target = $region36
      $region35: #{fwd.8} parent=31 // pred_region
        %p181 = scmp.lt.s32.totalorder %s11, 1
        %s182 = scalar_select %p181, %s11, 1
        %s183 = smul.addr %s182, 2
        %s184 = smul.addr %s183, 4
        %s185 = scalar_lea.vmem %s0, %s184
      $region36: #{fwd.8} parent=31 // pred_fallthru
        _
    $region32: #{fwd.8} parent=5 // pred_fallthru
      _
    %p186 = scmp.le.s32.totalorder 1, %s11
    %p187 = scmp.lt.s32.totalorder %s11, 3
    %p188 = pnand %p186, %p187
    %p189 = pneg %p188
    // Predicated region
    $region37: #{fwd.8} parent=5 // pred_check
      _
    $region38: #{fwd.8} parent=5 // pred_check_branch
      %191 = sbr.rel (%p188) target = $region40
    $region39: #{fwd.8} parent=5 // pred_region
      %s192 = ssub.s32 %s11, 1
      %p193 = scmp.lt.s32.totalorder %s16, 1
      %s194 = scalar_select %p193, %s16, 1
      %s195 = smul.addr %s194, 2
      %s196 = smul.addr %s195, 4
      %s197 = scalar_lea.vmem %s0, %s196
      %p198 = pneg %p37
      %p199 = pneg %p34
      %p200 = pneg %p58
      %p201 = pneg %p55
      %p202 = pneg %p79
      %p203 = pneg %p76
      %p204 = pneg %p100
      %p205 = pneg %p97
      %p206 = pneg %p121
      %p207 = pneg %p118
      %p208 = pneg %p147
      %p209 = pneg %p144
      %p210 = scmp.lt.s32.totalorder %s16, 1
      %s211 = scalar_select %p210, %s16, 1
      %s212 = smul.addr %s211, 2
      %s213 = scalar_lea.vmem %s5, %s212
      %p214 = scmp.lt.s32.totalorder %s16, 1
      %s215 = scalar_select %p214, %s16, 1
      %s216 = smul.addr %s215, 2
      %s217 = smul.addr %s216, 4
      %s218 = scalar_lea.vmem %s0, %s217
      %p219 = scmp.lt.s32.totalorder %s16, 1
      %s220 = scalar_select %p219, %s16, 1
      %s221 = smul.addr %s220, 2
      %s222 = scalar_lea.vmem %s5, %s221
      %v224 = vld [vmem:[%s218] sm:$0x77]
      %v225 = vunpack.c.l.bf16 %v224
      %v226 = vunpack.c.h.bf16 %v224
      %v227 = vpack.c.bf16 %v225, %v225
      %v228 = vpack.c.bf16 %v226, %v226
      %v229 = vld [vmem:[%s1] sm:$0xf]
      %v230 = vld [vmem:[%s1 + $0x4] sm:$0xf]
      %v231 = vld [vmem:[%s1 + $0x8] sm:$0xf]
      %v232 = vld [vmem:[%s1 + $0xc] sm:$0xf]
      %v233 = vld [vmem:[%s1 + $0x10] sm:$0xf]
      %v234 = vld [vmem:[%s1 + $0x14] sm:$0xf]
      %v235 = vld [vmem:[%s1 + $0x18] sm:$0xf]
      %v236 = vld [vmem:[%s1 + $0x1c] sm:$0xf]
      %v237 = vld [vmem:[%s1 + $0x20] sm:$0xf]
      %v238 = vld [vmem:[%s1 + $0x24] sm:$0xf]
      %v239 = vld [vmem:[%s1 + $0x28] sm:$0xf]
      %v240 = vld [vmem:[%s1 + $0x2c] sm:$0xf]
      %v241 = vld [vmem:[%s1 + $0x30] sm:$0xf]
      %v242 = vld [vmem:[%s1 + $0x34] sm:$0xf]
      %v243 = vld [vmem:[%s1 + $0x38] sm:$0xf]
      %v244 = vld [vmem:[%s1 + $0x3c] sm:$0xf]
      %v245 = vld [vmem:[%s1 + $0x40] sm:$0xf]
      %v246 = vld [vmem:[%s1 + $0x44] sm:$0xf]
      %v247 = vld [vmem:[%s1 + $0x48] sm:$0xf]
      %v248 = vld [vmem:[%s1 + $0x4c] sm:$0xf]
      %v249 = vld [vmem:[%s2] sm:$0xf]
      %v250 = vld [vmem:[%s2 + $0x4] sm:$0xf]
      %v251 = vld [vmem:[%s2 + $0x8] sm:$0xf]
      %v252 = vld [vmem:[%s2 + $0xc] sm:$0xf]
      %v253 = vld [vmem:[%s2 + $0x10] sm:$0xf]
      %v254 = vld [vmem:[%s2 + $0x14] sm:$0xf]
      %v255 = vld [vmem:[%s2 + $0x18] sm:$0xf]
      %v256 = vld [vmem:[%s2 + $0x1c] sm:$0xf]
      %v257 = vld [vmem:[%s2 + $0x20] sm:$0xf]
      %v258 = vld [vmem:[%s2 + $0x24] sm:$0xf]
      %v260 = vshrl.u32 %v227, 16
      %v262 = vshll.u32 %v227, 16
      %v264 = vrot.slane %v262, 1
      %v265 = vor.u32 %v260, %v264
      %v276 = vunpack.c.l.b16 %v249
      %v277 = vunpack.c.l.b16 %v250
      %v278 = vunpack.c.l.b16 %v251
      %v279 = vunpack.c.l.b16 %v252
      %v280 = vunpack.c.l.b16 %v253
      %v281 = vunpack.c.l.b16 %v254
      %v282 = vunpack.c.l.b16 %v255
      %v283 = vunpack.c.l.b16 %v256
      %v284 = vunpack.c.l.b16 %v257
      %v285 = vunpack.c.l.b16 %v258
      %v286 = vpack.c.b16 %v277, %v276
      %v287 = vpack.c.b16 %v279, %v278
      %v288 = vpack.c.b16 %v281, %v280
      %v289 = vpack.c.b16 %v283, %v282
      %v290 = vpack.c.b16 %v285, %v284
      %vm296 = vcmask 654336
      %v298 = vsel %vm296, %v265, 0
      %300 = vmatprep.subr.bf16.mxu0 0
      %301 = vmatpush1.bf16.msra.mxu0 %v286
      %302 = vmatprep.subr.bf16.mxu0 0
      %303 = vmatpush1.bf16.msra.mxu0 %v287
      %304 = vmatprep.subr.bf16.mxu0 0
      %305 = vmatpush1.bf16.msra.mxu0 %v288
      %306 = vmatprep.subr.bf16.mxu0 0
      %307 = vmatpush1.bf16.msra.mxu0 %v289
      %308 = vmatprep.subr.bf16.mxu0 0
      %309 = vmatpush1.bf16.msra.mxu0 %v290
      %310 = vmatprep.subr.bf16.mxu0 0
      %311 = vmatpush1.bf16.msra.mxu0 0
      %312 = vmatprep.subr.bf16.mxu0 0
      %313 = vmatpush1.bf16.msra.mxu0 0
      %314 = vmatprep.subr.bf16.mxu0 0
      %315 = vmatpush1.bf16.msra.mxu0 0
      %316 = vmatprep.subr.bf16.mxu0 0
      %317 = vmatpush1.bf16.msra.mxu0 0
      %318 = vmatprep.subr.bf16.mxu0 0
      %319 = vmatpush1.bf16.msra.mxu0 0
      %320 = vmatprep.subr.bf16.mxu0 0
      %321 = vmatpush1.bf16.msra.mxu0 0
      %322 = vmatprep.subr.bf16.mxu0 0
      %323 = vmatpush1.bf16.msra.mxu0 0
      %324 = vmatprep.subr.bf16.mxu0 0
      %325 = vmatpush1.bf16.msra.mxu0 0
      %326 = vmatprep.subr.bf16.mxu0 0
      %327 = vmatpush1.bf16.msra.mxu0 0
      %328 = vmatprep.subr.bf16.mxu0 0
      %329 = vmatpush1.bf16.msra.mxu0 0
      %330 = vmatprep.subr.bf16.mxu0 0
      %331 = vmatpush1.bf16.msra.mxu0 0
      %332 = vmatprep.mubr.bf16.mxu0 0
      %333 = vmatmul.mubr.bf16.gmra.mrb[0].mxu0 %v298
      %v334 = vpop.f32.mrb[0].mxu0
      %v335 = vadd.f32 0.0, %v334
      %v336 = vpop.f32.mrb[0].mxu0
      %v337 = vpop.f32.mrb[0].mxu0
      %v338 = vpop.f32.mrb[0].mxu0
      %339 = vdwg.mxu0
      %v360 = vunpack.c.l.b16 %v229
      %v361 = vunpack.c.l.b16 %v230
      %v362 = vunpack.c.l.b16 %v231
      %v363 = vunpack.c.l.b16 %v232
      %v364 = vunpack.c.l.b16 %v233
      %v365 = vunpack.c.l.b16 %v234
      %v366 = vunpack.c.l.b16 %v235
      %v367 = vunpack.c.l.b16 %v236
      %v368 = vunpack.c.l.b16 %v237
      %v369 = vunpack.c.l.b16 %v238
      %v370 = vunpack.c.l.b16 %v239
      %v371 = vunpack.c.l.b16 %v240
      %v372 = vunpack.c.l.b16 %v241
      %v373 = vunpack.c.l.b16 %v242
      %v374 = vunpack.c.l.b16 %v243
      %v375 = vunpack.c.l.b16 %v244
      %v376 = vunpack.c.l.b16 %v245
      %v377 = vunpack.c.l.b16 %v246
      %v378 = vunpack.c.l.b16 %v247
      %v379 = vunpack.c.l.b16 %v248
      %v380 = vpack.c.b16 %v361, %v360
      %v381 = vpack.c.b16 %v363, %v362
      %v382 = vpack.c.b16 %v365, %v364
      %v383 = vpack.c.b16 %v367, %v366
      %v384 = vpack.c.b16 %v369, %v368
      %v385 = vpack.c.b16 %v371, %v370
      %v386 = vpack.c.b16 %v373, %v372
      %v387 = vpack.c.b16 %v375, %v374
      %v388 = vpack.c.b16 %v377, %v376
      %v389 = vpack.c.b16 %v379, %v378
      %vm400 = vcmask 261120
      %v402 = vsel %vm400, %v228, 0
      %404 = vmatprep.subr.bf16.mxu0 0
      %405 = vmatpush1.bf16.msra.mxu0 %v380
      %406 = vmatprep.subr.bf16.mxu0 0
      %407 = vmatpush1.bf16.msra.mxu0 %v381
      %408 = vmatprep.subr.bf16.mxu0 0
      %409 = vmatpush1.bf16.msra.mxu0 %v382
      %410 = vmatprep.subr.bf16.mxu0 0
      %411 = vmatpush1.bf16.msra.mxu0 %v383
      %412 = vmatprep.subr.bf16.mxu0 0
      %413 = vmatpush1.bf16.msra.mxu0 %v384
      %414 = vmatprep.subr.bf16.mxu0 0
      %415 = vmatpush1.bf16.msra.mxu0 %v385
      %416 = vmatprep.subr.bf16.mxu0 0
      %417 = vmatpush1.bf16.msra.mxu0 %v386
      %418 = vmatprep.subr.bf16.mxu0 0
      %419 = vmatpush1.bf16.msra.mxu0 %v387
      %420 = vmatprep.subr.bf16.mxu0 0
      %421 = vmatpush1.bf16.msra.mxu0 %v388
      %422 = vmatprep.subr.bf16.mxu0 0
      %423 = vmatpush1.bf16.msra.mxu0 %v389
      %424 = vmatprep.subr.bf16.mxu0 0
      %425 = vmatpush1.bf16.msra.mxu0 0
      %426 = vmatprep.subr.bf16.mxu0 0
      %427 = vmatpush1.bf16.msra.mxu0 0
      %428 = vmatprep.subr.bf16.mxu0 0
      %429 = vmatpush1.bf16.msra.mxu0 0
      %430 = vmatprep.subr.bf16.mxu0 0
      %431 = vmatpush1.bf16.msra.mxu0 0
      %432 = vmatprep.subr.bf16.mxu0 0
      %433 = vmatpush1.bf16.msra.mxu0 0
      %434 = vmatprep.subr.bf16.mxu0 0
      %435 = vmatpush1.bf16.msra.mxu0 0
      %436 = vmatprep.mubr.bf16.mxu0 %v402
      %437 = vmatmul.mubr.bf16.gmra.mrb[0].mxu0 %v227
      %v438 = vpop.f32.mrb[0].mxu0
      %v439 = vadd.f32 %v335, %v438
      %v440 = vpop.f32.mrb[0].mxu0
      %v441 = vpop.f32.mrb[0].mxu0
      %v442 = vpop.f32.mrb[0].mxu0
      %443 = vdwg.mxu0
      %v444 = vld [vmem:[%s3] sm:$0x1]
      %v446 = vlaneseq
      %v447 = vshrl.u32 %v446, 7
      %v448 = vsub.s32 0, %v447
      %v449 = vrot.slane %v444, %v448
      %v451 = vadd.f32 %v439, %v449
      %vm452 = vcmp.ge.f32.partialorder %v451, 0.0
      %v453 = vld [vmem:[%s4] sm:$0x1]
      %v455 = vlaneseq
      %v456 = vshrl.u32 %v455, 7
      %v457 = vsub.s32 0, %v456
      %v458 = vrot.slane %v453, %v457
      %v460 = vmul.f32 %v458, %v451
      %v461 = vsel %vm452, %v451, %v460
      %v462 = vpack.c.bf16 %v461, %v461
      %vm463 = vcmask 254976
      %464 = vst.msk [vmem:[%s222] sm:$0x3] %vm463, %v462
      %p465 = scmp.lt.s32.totalorder %s16, 1
      %s466 = scalar_select %p465, %s16, 1
      %s467 = smul.addr %s466, 2
      %s468 = scalar_lea.vmem %s5, %s467
      // Predicated region
      $region41: #{fwd.8} parent=39 // pred_check
        %p469 = pneg %p144
      $region42: #{fwd.8} parent=39 // pred_check_branch
        %471 = sbr.rel (%p469) target = $region44
      $region43: #{fwd.8} parent=39 // pred_region
        _
      $region44: #{fwd.8} parent=39 // pred_fallthru
        _
    $region40: #{fwd.8} parent=5 // pred_fallthru
      _
    %p472 = scmp.le.s32.totalorder 2, %s11
    // Predicated region
    $region45: #{fwd.8} parent=5 // pred_check
      %p473 = pneg %p472
    $region46: #{fwd.8} parent=5 // pred_check_branch
      %475 = sbr.rel (%p473) target = $region48
    $region47: #{fwd.8} parent=5 // pred_region
      %s476 = ssub.s32 %s11, 2
      // Predicated region
      $region49: #{fwd.8} parent=47 // pred_check
        %p477 = pneg %p150
      $region50: #{fwd.8} parent=47 // pred_check_branch
        %479 = sbr.rel (%p477) target = $region52
      $region51: #{fwd.8} parent=47 // pred_region
        %p480 = scmp.lt.s32.totalorder %s17, 1
        %s481 = scalar_select %p480, %s17, 1
        %s482 = smul.addr %s481, 2
        %s483 = scalar_lea.vmem %s5, %s482
      $region52: #{fwd.8} parent=47 // pred_fallthru
        _
    $region48: #{fwd.8} parent=5 // pred_fallthru
      _
  $region6: #{fwd.8} parent=0 // loop_footer
    %s15 = sadd.s32 1, %s11
  $region7: #{fwd.8} parent=0 // loop_footer_branch
    %10 = sbr.rel target = $region3
  $region8: #{fwd.8} parent=0 // loop_exit
    _

// kernel: fwd.9
$region0: #{fwd.9}
  #allocation0 [shape = 'u32[]', space=smem, size = 0x4, offset = 0x4, fixed_abs, tag = 'smem constant byte address 0x4 - core index']
  #allocation1 [shape = 'u32[144,128]{1,0:T(1,128)}', space=vmem, size = 0x12000, scoped, tag = 'internal scratch']
  #allocation2 [shape = 'f32[6,48]{1,0:T(8,128)}', space=vmem, size = 0x1000, scoped, tag = 'scratch operand']
  #allocation3 [shape = 'f32[6,48]{1,0:T(8,128)}', space=vmem, size = 0x1000, scoped, tag = 'scratch operand']
  %s0 = inlined_call_operand.vmem [shape: bf16[2,4,32], index: 0, kind: input, shape index: {}]
  %s1 = inlined_call_operand.vmem [shape: bf16[6,48,32], index: 1, kind: input, shape index: {}]
  %s2 = inlined_call_operand.vmem [shape: f32[2,1,32], index: 2, kind: input, shape index: {}]
  %s3 = inlined_call_operand.vmem [shape: bf16[2,6,48], index: 3, kind: output, shape index: {}]
  %s4 = sld [smem:[#allocation0]]
  $region45: #{fwd.9} parent=0
    _
  %s6 = ssub.s32 1, %s4
  %s7 = scalar_select 0, %s6, %s4
  loop: start=0, step=1, limit=4
  $region2: #{fwd.9} parent=0 // loop_pre_header
    _
  $region3: #{fwd.9} parent=0 // loop_header
    %s9 = sphi 0, %s13
    %p10 = scmp.ge.s32.totalorder %s9, 4
    %s19 = sphi 0, %s21
    %s22 = sphi 0, %s19
    %s23 = sphi 0, %s22
    %s39 = sphi 0, %s23
    %s43 = sphi 0, %s43
    %s45 = sphi 0, %s43
    %s46 = sphi 0, %s45
    %s60 = sphi 0, %s46
    %s64 = sphi 0, %s64
    %s66 = sphi 0, %s64
    %s67 = sphi 0, %s66
    %s81 = sphi 0, %s67
    %s87 = sphi 0, %s89
    %s90 = sphi 0, %s87
    %s91 = sphi 0, %s90
    %s107 = sphi 0, %s91
  $region4: #{fwd.9} parent=0 // loop_header_branch
    %12 = sbr.rel (%p10) target = $region8
  $region5: #{fwd.9} parent=0 // loop_body
    %s14 = ssub.s32 %s9, 1
    %s15 = ssub.s32 %s9, 2
    %s16 = sadd.s32 %s9, 1
    %s17 = ssub.s32 %s9, %s16
    %p18 = scmp.eq.s32.totalorder %s17, 0
    %s20 = sadd.s32 %s19, 1
    %s21 = scalar_select %p18, %s19, %s20
    %p24 = pneg %p18
    %p25 = scmp.eq.s32.totalorder %s9, 1
    %p26 = por %p24, %p25
    %p27 = scmp.ne.s32.totalorder %s19, %s22
    %p28 = scmp.eq.s32.totalorder %s9, 0
    %p29 = por %p27, %p28
    %p30 = scmp.ne.s32.totalorder %s19, %s22
    %p31 = scmp.eq.s32.totalorder %s14, 1
    %p32 = por %p30, %p31
    %p33 = scmp.ne.s32.totalorder %s22, %s23
    %p34 = scmp.eq.s32.totalorder %s14, 0
    %p35 = por %p33, %p34
    %p36 = scmp.ne.s32.totalorder %s22, %s23
    %p37 = scmp.eq.s32.totalorder %s15, 1
    %p38 = por %p36, %p37
    %p40 = scmp.ne.s32.totalorder %s23, %s39
    %p41 = scmp.eq.s32.totalorder %s15, 0
    %p42 = por %p40, %p41
    %s44 = sadd.s32 %s43, 1
    %p47 = scmp.eq.s32.totalorder %s9, 1
    %p48 = scmp.ne.s32.totalorder %s43, %s45
    %p49 = scmp.eq.s32.totalorder %s9, 0
    %p50 = por %p48, %p49
    %p51 = scmp.ne.s32.totalorder %s43, %s45
    %p52 = scmp.eq.s32.totalorder %s14, 1
    %p53 = por %p51, %p52
    %p54 = scmp.ne.s32.totalorder %s45, %s46
    %p55 = scmp.eq.s32.totalorder %s14, 0
    %p56 = por %p54, %p55
    %p57 = scmp.ne.s32.totalorder %s45, %s46
    %p58 = scmp.eq.s32.totalorder %s15, 1
    %p59 = por %p57, %p58
    %p61 = scmp.ne.s32.totalorder %s46, %s60
    %p62 = scmp.eq.s32.totalorder %s15, 0
    %p63 = por %p61, %p62
    %s65 = sadd.s32 %s64, 1
    %p68 = scmp.eq.s32.totalorder %s9, 1
    %p69 = scmp.ne.s32.totalorder %s64, %s66
    %p70 = scmp.eq.s32.totalorder %s9, 0
    %p71 = por %p69, %p70
    %p72 = scmp.ne.s32.totalorder %s64, %s66
    %p73 = scmp.eq.s32.totalorder %s14, 1
    %p74 = por %p72, %p73
    %p75 = scmp.ne.s32.totalorder %s66, %s67
    %p76 = scmp.eq.s32.totalorder %s14, 0
    %p77 = por %p75, %p76
    %p78 = scmp.ne.s32.totalorder %s66, %s67
    %p79 = scmp.eq.s32.totalorder %s15, 1
    %p80 = por %p78, %p79
    %p82 = scmp.ne.s32.totalorder %s67, %s81
    %p83 = scmp.eq.s32.totalorder %s15, 0
    %p84 = por %p82, %p83
    %s85 = ssub.s32 %s9, %s16
    %p86 = scmp.eq.s32.totalorder %s85, 0
    %s88 = sadd.s32 %s87, 1
    %s89 = scalar_select %p86, %s87, %s88
    %p92 = pneg %p86
    %p93 = scmp.eq.s32.totalorder %s9, 1
    %p94 = por %p92, %p93
    %p95 = scmp.ne.s32.totalorder %s87, %s90
    %p96 = scmp.eq.s32.totalorder %s9, 0
    %p97 = por %p95, %p96
    %p98 = scmp.ne.s32.totalorder %s87, %s90
    %p99 = scmp.eq.s32.totalorder %s14, 1
    %p100 = por %p98, %p99
    %p101 = scmp.ne.s32.totalorder %s90, %s91
    %p102 = scmp.eq.s32.totalorder %s14, 0
    %p103 = por %p101, %p102
    %p104 = scmp.ne.s32.totalorder %s90, %s91
    %p105 = scmp.eq.s32.totalorder %s15, 1
    %p106 = por %p104, %p105
    %p108 = scmp.ne.s32.totalorder %s91, %s107
    %p109 = scmp.eq.s32.totalorder %s15, 0
    %p110 = por %p108, %p109
    %p111 = scmp.le.s32.totalorder 1, %s9
    %p112 = scmp.lt.s32.totalorder %s9, 3
    %p113 = pnand %p111, %p112
    %p114 = pneg %p113
    // Predicated region
    $region9: #{fwd.9} parent=5 // pred_check
      _
    $region10: #{fwd.9} parent=5 // pred_check_branch
      %116 = sbr.rel (%p113) target = $region12
    $region11: #{fwd.9} parent=5 // pred_region
      %s117 = ssub.s32 %s9, 1
      // Predicated region
      $region13: #{fwd.9} parent=11 // pred_check
        %p118 = pneg %p56
      $region14: #{fwd.9} parent=11 // pred_check_branch
        %120 = sbr.rel (%p118) target = $region16
      $region15: #{fwd.9} parent=11 // pred_region
        _
      $region16: #{fwd.9} parent=11 // pred_fallthru
        _
      // Predicated region
      $region17: #{fwd.9} parent=11 // pred_check
        %p121 = pneg %p77
      $region18: #{fwd.9} parent=11 // pred_check_branch
        %123 = sbr.rel (%p121) target = $region20
      $region19: #{fwd.9} parent=11 // pred_region
        _
      $region20: #{fwd.9} parent=11 // pred_fallthru
        _
    $region12: #{fwd.9} parent=5 // pred_fallthru
      _
    %p124 = scmp.lt.s32.totalorder %s9, 2
    // Predicated region
    $region21: #{fwd.9} parent=5 // pred_check
      %p125 = pneg %p124
    $region22: #{fwd.9} parent=5 // pred_check_branch
      %127 = sbr.rel (%p125) target = $region24
    $region23: #{fwd.9} parent=5 // pred_region
      // Predicated region
      $region25: #{fwd.9} parent=23 // pred_check
        %p128 = pneg %p29
      $region26: #{fwd.9} parent=23 // pred_check_branch
        %130 = sbr.rel (%p128) target = $region28
      $region27: #{fwd.9} parent=23 // pred_region
        %p131 = scmp.lt.s32.totalorder %s9, 1
        %s132 = scalar_select %p131, %s9, 1
        %s133 = smul.addr %s132, 2
        %s134 = scalar_lea.vmem %s0, %s133
      $region28: #{fwd.9} parent=23 // pred_fallthru
        _
    $region24: #{fwd.9} parent=5 // pred_fallthru
      _
    %p135 = scmp.le.s32.totalorder 1, %s9
    %p136 = scmp.lt.s32.totalorder %s9, 3
    %p137 = pnand %p135, %p136
    %p138 = pneg %p137
    // Predicated region
    $region29: #{fwd.9} parent=5 // pred_check
      _
    $region30: #{fwd.9} parent=5 // pred_check_branch
      %140 = sbr.rel (%p137) target = $region32
    $region31: #{fwd.9} parent=5 // pred_region
      %s141 = ssub.s32 %s9, 1
      %p142 = scmp.lt.s32.totalorder %s14, 1
      %s143 = scalar_select %p142, %s14, 1
      %s144 = smul.addr %s143, 2
      %s145 = scalar_lea.vmem %s0, %s144
      %p146 = pneg %p35
      %p147 = pneg %p32
      %p148 = pneg %p56
      %p149 = pneg %p53
      %p150 = pneg %p77
      %p151 = pneg %p74
      %p152 = pneg %p103
      %p153 = pneg %p100
      %p154 = scmp.lt.s32.totalorder %s14, 1
      %s155 = scalar_select %p154, %s14, 1
      %s156 = smul.addr %s155, 4
      %s157 = scalar_lea.vmem %s3, %s156
      %p158 = scmp.lt.s32.totalorder %s14, 1
      %s159 = scalar_select %p158, %s14, 1
      %s160 = smul.addr %s159, 2
      %s161 = scalar_lea.vmem %s0, %s160
      %p162 = scmp.lt.s32.totalorder %s14, 1
      %s163 = scalar_select %p162, %s14, 1
      %s164 = smul.addr %s163, 4
      %s165 = scalar_lea.vmem %s3, %s164
      %vm167 = vcmask 390144
      %168 = vst.msk [vmem:[#allocation2] sm:$0x3f] %vm167, 0.0
      %169 = vst.msk [vmem:[#allocation3] sm:$0x3f] %vm167, 0.0
      %v170 = vld [vmem:[%s161] sm:$0x3]
      %v171 = vunpack.c.l.bf16 %v170
      %173 = vrot.lane.b32.xlu0 %v171, 8
      %v174 = vpop.permute.xlu0 %173
      %vm176 = vcmask 322624
      %177 = vst.msk [vmem:[#allocation2 + $0x1] sm:$0xf] %vm176, %v174
      %v178 = vld [vmem:[#allocation2] sm:$0xf]
      %v179 = vpack.c.bf16 %v178, %v178
      %v180 = vld [vmem:[%s1] sm:$0xf]
      %v181 = vld [vmem:[%s1 + $0x4] sm:$0xf]
      %v182 = vld [vmem:[%s1 + $0x8] sm:$0xf]
      %v183 = vld [vmem:[%s1 + $0xc] sm:$0xf]
      %v184 = vld [vmem:[%s1 + $0x10] sm:$0xf]
      %v185 = vld [vmem:[%s1 + $0x14] sm:$0xf]
      %v186 = vld [vmem:[#allocation2 + $0x1] sm:$0xf]
      %v187 = vpack.c.bf16 %v186, %v186
      %s188 = scalar_lea.vmem %s1, 24
      %v189 = vld [vmem:[%s188] sm:$0xf]
      %v190 = vld [vmem:[%s188 + $0x4] sm:$0xf]
      %v191 = vld [vmem:[%s188 + $0x8] sm:$0xf]
      %v192 = vld [vmem:[%s188 + $0xc] sm:$0xf]
      %v193 = vld [vmem:[%s188 + $0x10] sm:$0xf]
      %v194 = vld [vmem:[%s188 + $0x14] sm:$0xf]
      %v201 = vunpack.c.l.b16 %v189
      %v202 = vunpack.c.l.b16 %v190
      %v203 = vunpack.c.l.b16 %v191
      %v204 = vunpack.c.l.b16 %v192
      %v205 = vunpack.c.l.b16 %v193
      %v206 = vunpack.c.l.b16 %v194
      %v207 = vpack.c.b16 %v202, %v201
      %v208 = vpack.c.b16 %v204, %v203
      %v209 = vpack.c.b16 %v206, %v205
      %vm213 = vcmask 392192
      %v215 = vsel %vm213, %v187, 0
      %217 = vmatprep.subr.bf16.mxu0 0
      %218 = vmatpush1.bf16.msra.mxu0 %v207
      %219 = vmatprep.subr.bf16.mxu0 0
      %220 = vmatpush1.bf16.msra.mxu0 %v208
      %221 = vmatprep.subr.bf16.mxu0 0
      %222 = vmatpush1.bf16.msra.mxu0 %v209
      %223 = vmatprep.subr.bf16.mxu0 0
      %224 = vmatpush1.bf16.msra.mxu0 0
      %225 = vmatprep.subr.bf16.mxu0 0
      %226 = vmatpush1.bf16.msra.mxu0 0
      %227 = vmatprep.subr.bf16.mxu0 0
      %228 = vmatpush1.bf16.msra.mxu0 0
      %229 = vmatprep.subr.bf16.mxu0 0
      %230 = vmatpush1.bf16.msra.mxu0 0
      %231 = vmatprep.subr.bf16.mxu0 0
      %232 = vmatpush1.bf16.msra.mxu0 0
      %233 = vmatprep.subr.bf16.mxu0 0
      %234 = vmatpush1.bf16.msra.mxu0 0
      %235 = vmatprep.subr.bf16.mxu0 0
      %236 = vmatpush1.bf16.msra.mxu0 0
      %237 = vmatprep.subr.bf16.mxu0 0
      %238 = vmatpush1.bf16.msra.mxu0 0
      %239 = vmatprep.subr.bf16.mxu0 0
      %240 = vmatpush1.bf16.msra.mxu0 0
      %241 = vmatprep.subr.bf16.mxu0 0
      %242 = vmatpush1.bf16.msra.mxu0 0
      %243 = vmatprep.subr.bf16.mxu0 0
      %244 = vmatpush1.bf16.msra.mxu0 0
      %245 = vmatprep.subr.bf16.mxu0 0
      %246 = vmatpush1.bf16.msra.mxu0 0
      %247 = vmatprep.subr.bf16.mxu0 0
      %248 = vmatpush1.bf16.msra.mxu0 0
      %249 = vmatprep.mubr.bf16.mxu0 0
      %250 = vmatmul.mubr.bf16.gmra.mrb[0].mxu0 %v215
      %v251 = vpop.f32.mrb[0].mxu0
      %v252 = vadd.f32 0.0, %v251
      %v253 = vpop.f32.mrb[0].mxu0
      %v254 = vpop.f32.mrb[0].mxu0
      %v255 = vpop.f32.mrb[0].mxu0
      %256 = vdwg.mxu0
      %v263 = vunpack.c.l.b16 %v180
      %v264 = vunpack.c.l.b16 %v181
      %v265 = vunpack.c.l.b16 %v182
      %v266 = vunpack.c.l.b16 %v183
      %v267 = vunpack.c.l.b16 %v184
      %v268 = vunpack.c.l.b16 %v185
      %v269 = vpack.c.b16 %v264, %v263
      %v270 = vpack.c.b16 %v266, %v265
      %v271 = vpack.c.b16 %v268, %v267
      %v276 = vsel %vm213, %v179, 0
      %278 = vmatprep.subr.bf16.mxu0 0
      %279 = vmatpush1.bf16.msra.mxu0 %v269
      %280 = vmatprep.subr.bf16.mxu0 0
      %281 = vmatpush1.bf16.msra.mxu0 %v270
      %282 = vmatprep.subr.bf16.mxu0 0
      %283 = vmatpush1.bf16.msra.mxu0 %v271
      %284 = vmatprep.subr.bf16.mxu0 0
      %285 = vmatpush1.bf16.msra.mxu0 0
      %286 = vmatprep.subr.bf16.mxu0 0
      %287 = vmatpush1.bf16.msra.mxu0 0
      %288 = vmatprep.subr.bf16.mxu0 0
      %289 = vmatpush1.bf16.msra.mxu0 0
      %290 = vmatprep.subr.bf16.mxu0 0
      %291 = vmatpush1.bf16.msra.mxu0 0
      %292 = vmatprep.subr.bf16.mxu0 0
      %293 = vmatpush1.bf16.msra.mxu0 0
      %294 = vmatprep.subr.bf16.mxu0 0
      %295 = vmatpush1.bf16.msra.mxu0 0
      %296 = vmatprep.subr.bf16.mxu0 0
      %297 = vmatpush1.bf16.msra.mxu0 0
      %298 = vmatprep.subr.bf16.mxu0 0
      %299 = vmatpush1.bf16.msra.mxu0 0
      %300 = vmatprep.subr.bf16.mxu0 0
      %301 = vmatpush1.bf16.msra.mxu0 0
      %302 = vmatprep.subr.bf16.mxu0 0
      %303 = vmatpush1.bf16.msra.mxu0 0
      %304 = vmatprep.subr.bf16.mxu0 0
      %305 = vmatpush1.bf16.msra.mxu0 0
      %306 = vmatprep.subr.bf16.mxu0 0
      %307 = vmatpush1.bf16.msra.mxu0 0
      %308 = vmatprep.subr.bf16.mxu0 0
      %309 = vmatpush1.bf16.msra.mxu0 0
      %310 = vmatprep.mubr.bf16.mxu0 0
      %311 = vmatmul.mubr.bf16.gmra.mrb[0].mxu0 %v276
      %v312 = vpop.f32.mrb[0].mxu0
      %v313 = vadd.f32 %v252, %v312
      %v314 = vpop.f32.mrb[0].mxu0
      %v315 = vpop.f32.mrb[0].mxu0
      %v316 = vpop.f32.mrb[0].mxu0
      %317 = vdwg.mxu0
      %v318 = vld [vmem:[#allocation2 + $0x2] sm:$0xf]
      %v319 = vpack.c.bf16 %v318, %v318
      %s320 = scalar_lea.vmem %s1, 48
      %v321 = vld [vmem:[%s320] sm:$0xf]
      %v322 = vld [vmem:[%s320 + $0x4] sm:$0xf]
      %v323 = vld [vmem:[%s320 + $0x8] sm:$0xf]
      %v324 = vld [vmem:[%s320 + $0xc] sm:$0xf]
      %v325 = vld [vmem:[%s320 + $0x10] sm:$0xf]
      %v326 = vld [vmem:[%s320 + $0x14] sm:$0xf]
      %v333 = vunpack.c.l.b16 %v321
      %v334 = vunpack.c.l.b16 %v322
      %v335 = vunpack.c.l.b16 %v323
      %v336 = vunpack.c.l.b16 %v324
      %v337 = vunpack.c.l.b16 %v325
      %v338 = vunpack.c.l.b16 %v326
      %v339 = vpack.c.b16 %v334, %v333
      %v340 = vpack.c.b16 %v336, %v335
      %v341 = vpack.c.b16 %v338, %v337
      %v346 = vsel %vm213, %v319, 0
      %348 = vmatprep.subr.bf16.mxu0 0
      %349 = vmatpush1.bf16.msra.mxu0 %v339
      %350 = vmatprep.subr.bf16.mxu0 0
      %351 = vmatpush1.bf16.msra.mxu0 %v340
      %352 = vmatprep.subr.bf16.mxu0 0
      %353 = vmatpush1.bf16.msra.mxu0 %v341
      %354 = vmatprep.subr.bf16.mxu0 0
      %355 = vmatpush1.bf16.msra.mxu0 0
      %356 = vmatprep.subr.bf16.mxu0 0
      %357 = vmatpush1.bf16.msra.mxu0 0
      %358 = vmatprep.subr.bf16.mxu0 0
      %359 = vmatpush1.bf16.msra.mxu0 0
      %360 = vmatprep.subr.bf16.mxu0 0
      %361 = vmatpush1.bf16.msra.mxu0 0
      %362 = vmatprep.subr.bf16.mxu0 0
      %363 = vmatpush1.bf16.msra.mxu0 0
      %364 = vmatprep.subr.bf16.mxu0 0
      %365 = vmatpush1.bf16.msra.mxu0 0
      %366 = vmatprep.subr.bf16.mxu0 0
      %367 = vmatpush1.bf16.msra.mxu0 0
      %368 = vmatprep.subr.bf16.mxu0 0
      %369 = vmatpush1.bf16.msra.mxu0 0
      %370 = vmatprep.subr.bf16.mxu0 0
      %371 = vmatpush1.bf16.msra.mxu0 0
      %372 = vmatprep.subr.bf16.mxu0 0
      %373 = vmatpush1.bf16.msra.mxu0 0
      %374 = vmatprep.subr.bf16.mxu0 0
      %375 = vmatpush1.bf16.msra.mxu0 0
      %376 = vmatprep.subr.bf16.mxu0 0
      %377 = vmatpush1.bf16.msra.mxu0 0
      %378 = vmatprep.subr.bf16.mxu0 0
      %379 = vmatpush1.bf16.msra.mxu0 0
      %380 = vmatprep.mubr.bf16.mxu0 0
      %381 = vmatmul.mubr.bf16.gmra.mrb[0].mxu0 %v346
      %v382 = vpop.f32.mrb[0].mxu0
      %v383 = vadd.f32 0.0, %v382
      %v384 = vpop.f32.mrb[0].mxu0
      %v385 = vpop.f32.mrb[0].mxu0
      %v386 = vpop.f32.mrb[0].mxu0
      %387 = vdwg.mxu0
      %v388 = vadd.f32 %v313, %v383
      %v389 = vld [vmem:[%s2] sm:$0x1]
      %v391 = vlaneseq
      %v392 = vshrl.u32 %v391, 7
      %v393 = vsub.s32 0, %v392
      %v394 = vrot.slane %v389, %v393
      %v396 = vadd.f32 %v388, %v394
      %v397 = vmax.f32 %v396, 0.0
      %399 = vrot.lane.b32.xlu0 %v397, 8
      %v400 = vpop.permute.xlu0 %399
      %402 = vst.msk [vmem:[#allocation3 + $0x1] sm:$0xf] %vm176, %v400
      %v403 = vld [vmem:[#allocation3] sm:$0xf]
      %v404 = vpack.c.bf16 %v403, %v403
      %s405 = scalar_lea.vmem %s1, 72
      %v406 = vld [vmem:[%s405] sm:$0xf]
      %v407 = vld [vmem:[%s405 + $0x4] sm:$0xf]
      %v408 = vld [vmem:[%s405 + $0x8] sm:$0xf]
      %v409 = vld [vmem:[%s405 + $0xc] sm:$0xf]
      %v410 = vld [vmem:[%s405 + $0x10] sm:$0xf]
      %v411 = vld [vmem:[%s405 + $0x14] sm:$0xf]
      %v412 = vld [vmem:[#allocation3 + $0x1] sm:$0xf]
      %v413 = vpack.c.bf16 %v412, %v412
      %s414 = scalar_lea.vmem %s1, 96
      %v415 = vld [vmem:[%s414] sm:$0xf]
      %v416 = vld [vmem:[%s414 + $0x4] sm:$0xf]
      %v417 = vld [vmem:[%s414 + $0x8] sm:$0xf]
      %v418 = vld [vmem:[%s414 + $0xc] sm:$0xf]
      %v419 = vld [vmem:[%s414 + $0x10] sm:$0xf]
      %v420 = vld [vmem:[%s414 + $0x14] sm:$0xf]
      %v427 = vunpack.c.l.b16 %v415
      %v428 = vunpack.c.l.b16 %v416
      %v429 = vunpack.c.l.b16 %v417
      %v430 = vunpack.c.l.b16 %v418
      %v431 = vunpack.c.l.b16 %v419
      %v432 = vunpack.c.l.b16 %v420
      %v433 = vpack.c.b16 %v428, %v427
      %v434 = vpack.c.b16 %v430, %v429
      %v435 = vpack.c.b16 %v432, %v431
      %v440 = vsel %vm213, %v413, 0
      %442 = vmatprep.subr.bf16.mxu0 0
      %443 = vmatpush1.bf16.msra.mxu0 %v433
      %444 = vmatprep.subr.bf16.mxu0 0
      %445 = vmatpush1.bf16.msra.mxu0 %v434
      %446 = vmatprep.subr.bf16.mxu0 0
      %447 = vmatpush1.bf16.msra.mxu0 %v435
      %448 = vmatprep.subr.bf16.mxu0 0
      %449 = vmatpush1.bf16.msra.mxu0 0
      %450 = vmatprep.subr.bf16.mxu0 0
      %451 = vmatpush1.bf16.msra.mxu0 0
      %452 = vmatprep.subr.bf16.mxu0 0
      %453 = vmatpush1.bf16.msra.mxu0 0
      %454 = vmatprep.subr.bf16.mxu0 0
      %455 = vmatpush1.bf16.msra.mxu0 0
      %456 = vmatprep.subr.bf16.mxu0 0
      %457 = vmatpush1.bf16.msra.mxu0 0
      %458 = vmatprep.subr.bf16.mxu0 0
      %459 = vmatpush1.bf16.msra.mxu0 0
      %460 = vmatprep.subr.bf16.mxu0 0
      %461 = vmatpush1.bf16.msra.mxu0 0
      %462 = vmatprep.subr.bf16.mxu0 0
      %463 = vmatpush1.bf16.msra.mxu0 0
      %464 = vmatprep.subr.bf16.mxu0 0
      %465 = vmatpush1.bf16.msra.mxu0 0
      %466 = vmatprep.subr.bf16.mxu0 0
      %467 = vmatpush1.bf16.msra.mxu0 0
      %468 = vmatprep.subr.bf16.mxu0 0
      %469 = vmatpush1.bf16.msra.mxu0 0
      %470 = vmatprep.subr.bf16.mxu0 0
      %471 = vmatpush1.bf16.msra.mxu0 0
      %472 = vmatprep.subr.bf16.mxu0 0
      %473 = vmatpush1.bf16.msra.mxu0 0
      %474 = vmatprep.mubr.bf16.mxu0 0
      %475 = vmatmul.mubr.bf16.gmra.mrb[0].mxu0 %v440
      %v476 = vpop.f32.mrb[0].mxu0
      %v477 = vadd.f32 0.0, %v476
      %v478 = vpop.f32.mrb[0].mxu0
      %v479 = vpop.f32.mrb[0].mxu0
      %v480 = vpop.f32.mrb[0].mxu0
      %481 = vdwg.mxu0
      %v488 = vunpack.c.l.b16 %v406
      %v489 = vunpack.c.l.b16 %v407
      %v490 = vunpack.c.l.b16 %v408
      %v491 = vunpack.c.l.b16 %v409
      %v492 = vunpack.c.l.b16 %v410
      %v493 = vunpack.c.l.b16 %v411
      %v494 = vpack.c.b16 %v489, %v488
      %v495 = vpack.c.b16 %v491, %v490
      %v496 = vpack.c.b16 %v493, %v492
      %v501 = vsel %vm213, %v404, 0
      %503 = vmatprep.subr.bf16.mxu0 0
      %504 = vmatpush1.bf16.msra.mxu0 %v494
      %505 = vmatprep.subr.bf16.mxu0 0
      %506 = vmatpush1.bf16.msra.mxu0 %v495
      %507 = vmatprep.subr.bf16.mxu0 0
      %508 = vmatpush1.bf16.msra.mxu0 %v496
      %509 = vmatprep.subr.bf16.mxu0 0
      %510 = vmatpush1.bf16.msra.mxu0 0
      %511 = vmatprep.subr.bf16.mxu0 0
      %512 = vmatpush1.bf16.msra.mxu0 0
      %513 = vmatprep.subr.bf16.mxu0 0
      %514 = vmatpush1.bf16.msra.mxu0 0
      %515 = vmatprep.subr.bf16.mxu0 0
      %516 = vmatpush1.bf16.msra.mxu0 0
      %517 = vmatprep.subr.bf16.mxu0 0
      %518 = vmatpush1.bf16.msra.mxu0 0
      %519 = vmatprep.subr.bf16.mxu0 0
      %520 = vmatpush1.bf16.msra.mxu0 0
      %521 = vmatprep.subr.bf16.mxu0 0
      %522 = vmatpush1.bf16.msra.mxu0 0
      %523 = vmatprep.subr.bf16.mxu0 0
      %524 = vmatpush1.bf16.msra.mxu0 0
      %525 = vmatprep.subr.bf16.mxu0 0
      %526 = vmatpush1.bf16.msra.mxu0 0
      %527 = vmatprep.subr.bf16.mxu0 0
      %528 = vmatpush1.bf16.msra.mxu0 0
      %529 = vmatprep.subr.bf16.mxu0 0
      %530 = vmatpush1.bf16.msra.mxu0 0
      %531 = vmatprep.subr.bf16.mxu0 0
      %532 = vmatpush1.bf16.msra.mxu0 0
      %533 = vmatprep.subr.bf16.mxu0 0
      %534 = vmatpush1.bf16.msra.mxu0 0
      %535 = vmatprep.mubr.bf16.mxu0 0
      %536 = vmatmul.mubr.bf16.gmra.mrb[0].mxu0 %v501
      %v537 = vpop.f32.mrb[0].mxu0
      %v538 = vadd.f32 %v477, %v537
      %v539 = vpop.f32.mrb[0].mxu0
      %v540 = vpop.f32.mrb[0].mxu0
      %v541 = vpop.f32.mrb[0].mxu0
      %542 = vdwg.mxu0
      %v543 = vld [vmem:[#allocation3 + $0x2] sm:$0xf]
      %v544 = vpack.c.bf16 %v543, %v543
      %s545 = scalar_lea.vmem %s1, 120
      %v546 = vld [vmem:[%s545] sm:$0xf]
      %v547 = vld [vmem:[%s545 + $0x4] sm:$0xf]
      %v548 = vld [vmem:[%s545 + $0x8] sm:$0xf]
      %v549 = vld [vmem:[%s545 + $0xc] sm:$0xf]
      %v550 = vld [vmem:[%s545 + $0x10] sm:$0xf]
      %v551 = vld [vmem:[%s545 + $0x14] sm:$0xf]
      %v558 = vunpack.c.l.b16 %v546
      %v559 = vunpack.c.l.b16 %v547
      %v560 = vunpack.c.l.b16 %v548
      %v561 = vunpack.c.l.b16 %v549
      %v562 = vunpack.c.l.b16 %v550
      %v563 = vunpack.c.l.b16 %v551
      %v564 = vpack.c.b16 %v559, %v558
      %v565 = vpack.c.b16 %v561, %v560
      %v566 = vpack.c.b16 %v563, %v562
      %v571 = vsel %vm213, %v544, 0
      %573 = vmatprep.subr.bf16.mxu0 0
      %574 = vmatpush1.bf16.msra.mxu0 %v564
      %575 = vmatprep.subr.bf16.mxu0 0
      %576 = vmatpush1.bf16.msra.mxu0 %v565
      %577 = vmatprep.subr.bf16.mxu0 0
      %578 = vmatpush1.bf16.msra.mxu0 %v566
      %579 = vmatprep.subr.bf16.mxu0 0
      %580 = vmatpush1.bf16.msra.mxu0 0
      %581 = vmatprep.subr.bf16.mxu0 0
      %582 = vmatpush1.bf16.msra.mxu0 0
      %583 = vmatprep.subr.bf16.mxu0 0
      %584 = vmatpush1.bf16.msra.mxu0 0
      %585 = vmatprep.subr.bf16.mxu0 0
      %586 = vmatpush1.bf16.msra.mxu0 0
      %587 = vmatprep.subr.bf16.mxu0 0
      %588 = vmatpush1.bf16.msra.mxu0 0
      %589 = vmatprep.subr.bf16.mxu0 0
      %590 = vmatpush1.bf16.msra.mxu0 0
      %591 = vmatprep.subr.bf16.mxu0 0
      %592 = vmatpush1.bf16.msra.mxu0 0
      %593 = vmatprep.subr.bf16.mxu0 0
      %594 = vmatpush1.bf16.msra.mxu0 0
      %595 = vmatprep.subr.bf16.mxu0 0
      %596 = vmatpush1.bf16.msra.mxu0 0
      %597 = vmatprep.subr.bf16.mxu0 0
      %598 = vmatpush1.bf16.msra.mxu0 0
      %599 = vmatprep.subr.bf16.mxu0 0
      %600 = vmatpush1.bf16.msra.mxu0 0
      %601 = vmatprep.subr.bf16.mxu0 0
      %602 = vmatpush1.bf16.msra.mxu0 0
      %603 = vmatprep.subr.bf16.mxu0 0
      %604 = vmatpush1.bf16.msra.mxu0 0
      %605 = vmatprep.mubr.bf16.mxu0 0
      %606 = vmatmul.mubr.bf16.gmra.mrb[0].mxu0 %v571
      %v607 = vpop.f32.mrb[0].mxu0
      %v608 = vadd.f32 0.0, %v607
      %v609 = vpop.f32.mrb[0].mxu0
      %v610 = vpop.f32.mrb[0].mxu0
      %v611 = vpop.f32.mrb[0].mxu0
      %612 = vdwg.mxu0
      %v613 = vadd.f32 %v538, %v608
      %s614 = scalar_lea.vmem %s2, 1
      %v615 = vld [vmem:[%s614] sm:$0x1]
      %v617 = vlaneseq
      %v618 = vshrl.u32 %v617, 7
      %v619 = vsub.s32 0, %v618
      %v620 = vrot.slane %v615, %v619
      %v622 = vadd.f32 %v613, %v620
      %v623 = vld [vmem:[#allocation2 + $0x1] sm:$0xf]
      %625 = vrot.lane.b32.xlu0 %v622, 8
      %v626 = vpop.permute.xlu0 %625
      %v628 = vadd.f32 %v623, %v626
      %629 = vst.msk [vmem:[#allocation2 + $0x1] sm:$0xf] %vm176, %v628
      %v630 = vld [vmem:[#allocation2] sm:$0x3f]
      %v631 = vpack.c.bf16 %v630, %v630
      %vm632 = vcmask 387072
      %633 = vst.msk [vmem:[%s165] sm:$0x7] %vm632, %v631
      %p634 = scmp.lt.s32.totalorder %s14, 1
      %s635 = scalar_select %p634, %s14, 1
      %s636 = smul.addr %s635, 4
      %s637 = scalar_lea.vmem %s3, %s636
      // Predicated region
      $region33: #{fwd.9} parent=31 // pred_check
        %p638 = pneg %p100
      $region34: #{fwd.9} parent=31 // pred_check_branch
        %640 = sbr.rel (%p638) target = $region36
      $region35: #{fwd.9} parent=31 // pred_region
        _
      $region36: #{fwd.9} parent=31 // pred_fallthru
        _
    $region32: #{fwd.9} parent=5 // pred_fallthru
      _
    %p641 = scmp.le.s32.totalorder 2, %s9
    // Predicated region
    $region37: #{fwd.9} parent=5 // pred_check
      %p642 = pneg %p641
    $region38: #{fwd.9} parent=5 // pred_check_branch
      %644 = sbr.rel (%p642) target = $region40
    $region39: #{fwd.9} parent=5 // pred_region
      %s645 = ssub.s32 %s9, 2
      // Predicated region
      $region41: #{fwd.9} parent=39 // pred_check
        %p646 = pneg %p106
      $region42: #{fwd.9} parent=39 // pred_check_branch
        %648 = sbr.rel (%p646) target = $region44
      $region43: #{fwd.9} parent=39 // pred_region
        %p649 = scmp.lt.s32.totalorder %s15, 1
        %s650 = scalar_select %p649, %s15, 1
        %s651 = smul.addr %s650, 4
        %s652 = scalar_lea.vmem %s3, %s651
      $region44: #{fwd.9} parent=39 // pred_fallthru
        _
    $region40: #{fwd.9} parent=5 // pred_fallthru
      _
  $region6: #{fwd.9} parent=0 // loop_footer
    %s13 = sadd.s32 1, %s9
  $region7: #{fwd.9} parent=0 // loop_footer_branch
    %8 = sbr.rel target = $region3
  $region8: #{fwd.9} parent=0 // loop_exit
    _

</llo_original>
